<compile_context>
chip_gen: v7x
topology: tpu7x:2x2x1
jax: 0.10.0
libtpu: 0.0.40
codegen_flags: <defaults>
</compile_context>

<pallas_src>
import functools

import jax
import jax.numpy as jnp
from jax.experimental import pallas as pl
from jax.experimental.pallas import tpu as pltpu


# --------------------------------------------------------------------------
# Kernel 1: 3x3 conv (+ optional fused BN-apply/ReLU on its input)
#           + per-batch BatchNorm sum / sum-of-squares partial statistics
# --------------------------------------------------------------------------
def _conv3x3_stats_kernel(*refs, apply_act):
    if apply_act:
        xp_ref, w_ref, scale_ref, shift_ref, y_ref, s_ref = refs
    else:
        xp_ref, w_ref, y_ref, s_ref = refs
        scale_ref = shift_ref = None

    H, W, Cout = y_ref.shape[1], y_ref.shape[2], y_ref.shape[3]
    Cin = xp_ref.shape[3]

    xp = xp_ref[0]                                    # (H+2, W+2, Cin) f32
    if apply_act:
        # Fused BatchNorm-apply + ReLU of the *previous* conv's output.
        # relu(0*scale+shift) != 0 in general, so mask the halo back to zero.
        a = jnp.maximum(xp * scale_ref[0, :] + shift_ref[0, :], 0.0)
        ii = jax.lax.broadcasted_iota(jnp.int32, (H + 2, W + 2, Cin), 0)
        jj = jax.lax.broadcasted_iota(jnp.int32, (H + 2, W + 2, Cin), 1)
        interior = (ii >= 1) & (ii <= H) & (jj >= 1) & (jj <= W)
        xp = jnp.where(interior, a, 0.0)

    # 9 whole-tile taps: each is ONE (H*W, Cin) x (Cin, Cout) MXU dot
    # (bf16 operands, fp32 accumulation).
    acc = jnp.zeros((H * W, Cout), jnp.float32)
    for dy in range(3):
        for dx in range(3):
            tap = xp[dy:dy + H, dx:dx + W, :].reshape(H * W, Cin)
            acc += jnp.dot(tap.astype(jnp.bfloat16), w_ref[dy, dx],
                           preferred_element_type=jnp.float32)

    y_ref[0] = acc.reshape(H, W, Cout).astype(y_ref.dtype)
    # Per-batch partial BN statistics (summed over the batch axis in JAX).
    s_ref[0, 0:1, :] = jnp.sum(acc, axis=0, keepdims=True)
    s_ref[0, 1:2, :] = jnp.sum(acc * acc, axis=0, keepdims=True)


def conv3x3_bn_stats(x, w, scale=None, shift=None):
    """3x3 'same' conv (no bias) + BN batch statistics.

    x            : (N, H, W, Cin) fp32 (pre-activation if scale/shift given)
    w            : (3, 3, Cin, Cout) bf16
    scale, shift : optional (Cin,) fp32 -> fuse relu(x*scale+shift) before conv
    returns y (N, H, W, Cout) fp32, stats (2, Cout) fp32 [sum, sum_sq] over NHW
    """
    N, H, W, Cin = x.shape
    Cout = w.shape[-1]
    apply_act = scale is not None

    xp = jnp.pad(x, ((0, 0), (1, 1), (1, 1), (0, 0)))

    in_specs = [
        pl.BlockSpec((1, H + 2, W + 2, Cin), lambda n: (n, 0, 0, 0)),
        pl.BlockSpec((3, 3, Cin, Cout), lambda n: (0, 0, 0, 0)),
    ]
    args = [xp, w]
    if apply_act:
        in_specs += [pl.BlockSpec((1, Cin), lambda n: (0, 0)),
                     pl.BlockSpec((1, Cin), lambda n: (0, 0))]
        args += [scale.reshape(1, -1), shift.reshape(1, -1)]

    y, stats = pl.pallas_call(
        functools.partial(_conv3x3_stats_kernel, apply_act=apply_act),
        out_shape=(jax.ShapeDtypeStruct((N, H, W, Cout), jnp.float32),
                   jax.ShapeDtypeStruct((N, 2, Cout), jnp.float32)),
        grid_spec=pltpu.PrefetchScalarGridSpec(
            num_scalar_prefetch=0,
            grid=(N,),
            in_specs=in_specs,
            out_specs=[pl.BlockSpec((1, H, W, Cout), lambda n: (n, 0, 0, 0)),
                       pl.BlockSpec((1, 2, Cout), lambda n: (n, 0, 0))],
        ),
        compiler_params=pltpu.CompilerParams(
            dimension_semantics=("parallel",)),
    )(*args)
    return y, jnp.sum(stats, axis=0)                   # (2, Cout)


# --------------------------------------------------------------------------
# Kernel 2: final BatchNorm-apply (per-channel affine) + ReLU, in place
# --------------------------------------------------------------------------
def _bn_relu_kernel(y_ref, scale_ref, shift_ref, o_ref):
    z = y_ref[...] * scale_ref[0, :] + shift_ref[0, :]
    o_ref[...] = jnp.maximum(z, 0.0).astype(o_ref.dtype)


def bn_relu(y, scale, shift):
    N, H, W, C = y.shape
    M = N * H * W                                      # flatten N*H*W together
    out = pl.pallas_call(
        _bn_relu_kernel,
        out_shape=jax.ShapeDtypeStruct((M, C), jnp.float32),
        grid=(1,),
        in_specs=[pl.BlockSpec((M, C), lambda i: (0, 0)),
                  pl.BlockSpec((1, C), lambda i: (0, 0)),
                  pl.BlockSpec((1, C), lambda i: (0, 0))],
        out_specs=pl.BlockSpec((M, C), lambda i: (0, 0)),
        input_output_aliases={0: 0},                   # update y in place
    )(y.reshape(M, C), scale.reshape(1, -1), shift.reshape(1, -1))
    return out.reshape(N, H, W, C)


# --------------------------------------------------------------------------
# JAX glue
# --------------------------------------------------------------------------
def bilinear_upsample_align_corners(x, scale=2):
    """NHWC bilinear upsample, align_corners=True (matches nn.Upsample)."""
    N, H, W, C = x.shape
    Ho, Wo = H * scale, W * scale

    def axis_coords(inp, out):
        if out == 1 or inp == 1:
            c = jnp.zeros((out,), jnp.float32)
        else:
            c = jnp.arange(out, dtype=jnp.float32) * ((inp - 1) / (out - 1))
        lo = jnp.floor(c).astype(jnp.int32)
        hi = jnp.minimum(lo + 1, inp - 1)
        return lo, hi, c - lo.astype(jnp.float32)

    y0, y1, wy = axis_coords(H, Ho)
    x0, x1, wx = axis_coords(W, Wo)
    wxb = wx[None, None, :, None]
    wyb = wy[None, :, None, None]
    top = x[:, y0][:, :, x0, :] * (1.0 - wxb) + x[:, y0][:, :, x1, :] * wxb
    bot = x[:, y1][:, :, x0, :] * (1.0 - wxb) + x[:, y1][:, :, x1, :] * wxb
    return top * (1.0 - wyb) + bot * wyb


def bn_scale_shift(stats, count, gamma, beta, eps=1e-5):
    # training-mode BatchNorm: biased batch variance over N*H*W.
    mean = stats[0] / count
    var = jnp.maximum(stats[1] / count - mean * mean, 0.0)  # guard cancellation
    scale = gamma * jax.lax.rsqrt(var + eps)
    shift = beta - mean * scale
    return scale, shift


def up_forward(x1_nchw, x2_nchw, params):
    """Forward of `Up`: inputs/outputs NCHW (PyTorch convention)."""
    x1 = jnp.transpose(x1_nchw, (0, 2, 3, 1)).astype(jnp.float32)  # -> NHWC
    x2 = jnp.transpose(x2_nchw, (0, 2, 3, 1)).astype(jnp.float32)

    x1u = bilinear_upsample_align_corners(x1, scale=2)
    x = jnp.concatenate([x2, x1u], axis=-1)            # channel concat (NHWC)

    N, H, W, _ = x.shape
    count = N * H * W

    w1 = params["w1"].astype(jnp.bfloat16)             # MXU operands in bf16
    w2 = params["w2"].astype(jnp.bfloat16)

    # conv1 -> BN1 batch stats
    y1, s1 = conv3x3_bn_stats(x, w1)
    sc1, sh1 = bn_scale_shift(s1, count, params["g1"], params["b1"])

    # fused [BN1-apply + ReLU] + conv2 -> BN2 batch stats
    y2, s2 = conv3x3_bn_stats(y1, w2, sc1, sh1)
    sc2, sh2 = bn_scale_shift(s2, count, params["g2"], params["b2"])

    # final BN2-apply + ReLU (in-place aliased elementwise pass)
    out = bn_relu(y2, sc2, sh2)
    return jnp.transpose(out, (0, 3, 1, 2))            # -> NCHW


# --------------------------------------------------------------------------
# Demo
# --------------------------------------------------------------------------
if __name__ == "__main__":
    key = jax.random.PRNGKey(0)
    k_x1, k_x2, k_w1, k_w2 = jax.random.split(key, 4)

    N = 2
    c_x1, c_x2 = 4, 4                   # x1 channels, x2 (skip) channels
    in_channels = c_x1 + c_x2           # = 8 (channels seen by first conv)
    out_channels = 4
    H1 = W1 = 8                          # x1 spatial; x2 spatial = 16

    x1 = jax.random.normal(k_x1, (N, c_x1, H1, W1), jnp.float32)
    x2 = jax.random.normal(k_x2, (N, c_x2, 2 * H1, 2 * W1), jnp.float32)

    # Deterministic parameter init (synthetic, HWIO conv weights, no bias).
    w1 = jax.random.normal(k_w1, (3, 3, in_channels, out_channels),
                           jnp.float32) * (1.0 / jnp.sqrt(9.0 * in_channels))
    w2 = jax.random.normal(k_w2, (3, 3, out_channels, out_channels),
                           jnp.float32) * (1.0 / jnp.sqrt(9.0 * out_channels))
    params = {
        "w1": w1, "g1": jnp.ones((out_channels,), jnp.float32),
        "b1": jnp.zeros((out_channels,), jnp.float32),
        "w2": w2, "g2": jnp.ones((out_channels,), jnp.float32),
        "b2": jnp.zeros((out_channels,), jnp.float32),
    }

    out = jax.jit(up_forward)(x1, x2, params)
    out = jax.block_until_ready(out)
    assert out.shape == (N, out_channels, 2 * H1, 2 * W1)
    assert bool(jnp.all(jnp.isfinite(out)))
    print("KERNEL_OK")
</pallas_src>

<mosaic_0001>
module attributes {stable_mosaic.version = 11 : i64} {
  func.func @_conv3x3_stats_kernel(%arg0: i32, %arg1: memref<1x18x18x8xf32, #tpu.memory_space<vmem>>, %arg2: memref<3x3x8x4xbf16, #tpu.memory_space<vmem>>, %arg3: memref<1x16x16x4xf32, #tpu.memory_space<vmem>>, %arg4: memref<1x2x4xf32, #tpu.memory_space<vmem>>) attributes {dimension_semantics = [#tpu.dimension_semantics<parallel>], iteration_bounds = array<i64: 2>, scalar_prefetch = 0 : i64, scratch_operands = 0 : i64, tpu.core_type = #tpu.core_type<tc>, window_params = [{transform_indices = @transform_0, window_bounds = array<i64: 1, 18, 18, 8>}, {pipeline_mode = #tpu.pipeline_mode<synchronous>, transform_indices = @transform_1, window_bounds = array<i64: 3, 3, 8, 4>}, {transform_indices = @transform_2, window_bounds = array<i64: 1, 16, 16, 4>}, {transform_indices = @transform_3, window_bounds = array<i64: 1, 2, 4>}]} {
    %c0 = arith.constant 0 : index
    %c0_0 = arith.constant 0 : index
    %c0_1 = arith.constant 0 : index
    %c0_2 = arith.constant 0 : index
    %0 = vector.load %arg1[%c0, %c0_0, %c0_1, %c0_2] : memref<1x18x18x8xf32, #tpu.memory_space<vmem>>, vector<1x18x18x8xf32>
    %1 = vector.shape_cast %0 : vector<1x18x18x8xf32> to vector<18x18x8xf32>
    %cst = arith.constant 0.000000e+00 : f32
    %2 = vector.broadcast %cst : f32 to vector<256x4xf32>
    %3 = vector.extract_strided_slice %1 {offsets = [0, 0, 0], sizes = [16, 16, 8], strides = [1, 1, 1]} : vector<18x18x8xf32> to vector<16x16x8xf32>
    %4 = vector.shape_cast %3 : vector<16x16x8xf32> to vector<256x8xf32>
    %5 = arith.truncf %4 : vector<256x8xf32> to vector<256x8xbf16>
    %c0_3 = arith.constant 0 : index
    %c0_4 = arith.constant 0 : index
    %c0_5 = arith.constant 0 : index
    %c0_6 = arith.constant 0 : index
    %6 = vector.load %arg2[%c0_3, %c0_4, %c0_5, %c0_6] : memref<3x3x8x4xbf16, #tpu.memory_space<vmem>>, vector<1x1x8x4xbf16>
    %7 = vector.shape_cast %6 : vector<1x1x8x4xbf16> to vector<8x4xbf16>
    %cst_7 = arith.constant dense<0.000000e+00> : vector<256x4xf32>
    %8 = tpu.matmul %5, %7, %cst_7 {dimension_numbers = #tpu.dot_dimension_numbers<[1], [0], [0], [1], [0, 0, 1, 1], [], []>} : vector<256x8xbf16>, vector<8x4xbf16>, vector<256x4xf32> -> vector<256x4xf32>
    %9 = arith.addf %2, %8 : vector<256x4xf32>
    %10 = vector.extract_strided_slice %1 {offsets = [0, 1, 0], sizes = [16, 16, 8], strides = [1, 1, 1]} : vector<18x18x8xf32> to vector<16x16x8xf32>
    %11 = vector.shape_cast %10 : vector<16x16x8xf32> to vector<256x8xf32>
    %12 = arith.truncf %11 : vector<256x8xf32> to vector<256x8xbf16>
    %c0_8 = arith.constant 0 : index
    %c1 = arith.constant 1 : index
    %c0_9 = arith.constant 0 : index
    %c0_10 = arith.constant 0 : index
    %13 = vector.load %arg2[%c0_8, %c1, %c0_9, %c0_10] : memref<3x3x8x4xbf16, #tpu.memory_space<vmem>>, vector<1x1x8x4xbf16>
    %14 = vector.shape_cast %13 : vector<1x1x8x4xbf16> to vector<8x4xbf16>
    %cst_11 = arith.constant dense<0.000000e+00> : vector<256x4xf32>
    %15 = tpu.matmul %12, %14, %cst_11 {dimension_numbers = #tpu.dot_dimension_numbers<[1], [0], [0], [1], [0, 0, 1, 1], [], []>} : vector<256x8xbf16>, vector<8x4xbf16>, vector<256x4xf32> -> vector<256x4xf32>
    %16 = arith.addf %9, %15 : vector<256x4xf32>
    %17 = vector.extract_strided_slice %1 {offsets = [0, 2, 0], sizes = [16, 16, 8], strides = [1, 1, 1]} : vector<18x18x8xf32> to vector<16x16x8xf32>
    %18 = vector.shape_cast %17 : vector<16x16x8xf32> to vector<256x8xf32>
    %19 = arith.truncf %18 : vector<256x8xf32> to vector<256x8xbf16>
    %c0_12 = arith.constant 0 : index
    %c2 = arith.constant 2 : index
    %c0_13 = arith.constant 0 : index
    %c0_14 = arith.constant 0 : index
    %20 = vector.load %arg2[%c0_12, %c2, %c0_13, %c0_14] : memref<3x3x8x4xbf16, #tpu.memory_space<vmem>>, vector<1x1x8x4xbf16>
    %21 = vector.shape_cast %20 : vector<1x1x8x4xbf16> to vector<8x4xbf16>
    %cst_15 = arith.constant dense<0.000000e+00> : vector<256x4xf32>
    %22 = tpu.matmul %19, %21, %cst_15 {dimension_numbers = #tpu.dot_dimension_numbers<[1], [0], [0], [1], [0, 0, 1, 1], [], []>} : vector<256x8xbf16>, vector<8x4xbf16>, vector<256x4xf32> -> vector<256x4xf32>
    %23 = arith.addf %16, %22 : vector<256x4xf32>
    %24 = vector.extract_strided_slice %1 {offsets = [1, 0, 0], sizes = [16, 16, 8], strides = [1, 1, 1]} : vector<18x18x8xf32> to vector<16x16x8xf32>
    %25 = vector.shape_cast %24 : vector<16x16x8xf32> to vector<256x8xf32>
    %26 = arith.truncf %25 : vector<256x8xf32> to vector<256x8xbf16>
    %c1_16 = arith.constant 1 : index
    %c0_17 = arith.constant 0 : index
    %c0_18 = arith.constant 0 : index
    %c0_19 = arith.constant 0 : index
    %27 = vector.load %arg2[%c1_16, %c0_17, %c0_18, %c0_19] : memref<3x3x8x4xbf16, #tpu.memory_space<vmem>>, vector<1x1x8x4xbf16>
    %28 = vector.shape_cast %27 : vector<1x1x8x4xbf16> to vector<8x4xbf16>
    %cst_20 = arith.constant dense<0.000000e+00> : vector<256x4xf32>
    %29 = tpu.matmul %26, %28, %cst_20 {dimension_numbers = #tpu.dot_dimension_numbers<[1], [0], [0], [1], [0, 0, 1, 1], [], []>} : vector<256x8xbf16>, vector<8x4xbf16>, vector<256x4xf32> -> vector<256x4xf32>
    %30 = arith.addf %23, %29 : vector<256x4xf32>
    %31 = vector.extract_strided_slice %1 {offsets = [1, 1, 0], sizes = [16, 16, 8], strides = [1, 1, 1]} : vector<18x18x8xf32> to vector<16x16x8xf32>
    %32 = vector.shape_cast %31 : vector<16x16x8xf32> to vector<256x8xf32>
    %33 = arith.truncf %32 : vector<256x8xf32> to vector<256x8xbf16>
    %c1_21 = arith.constant 1 : index
    %c1_22 = arith.constant 1 : index
    %c0_23 = arith.constant 0 : index
    %c0_24 = arith.constant 0 : index
    %34 = vector.load %arg2[%c1_21, %c1_22, %c0_23, %c0_24] : memref<3x3x8x4xbf16, #tpu.memory_space<vmem>>, vector<1x1x8x4xbf16>
    %35 = vector.shape_cast %34 : vector<1x1x8x4xbf16> to vector<8x4xbf16>
    %cst_25 = arith.constant dense<0.000000e+00> : vector<256x4xf32>
    %36 = tpu.matmul %33, %35, %cst_25 {dimension_numbers = #tpu.dot_dimension_numbers<[1], [0], [0], [1], [0, 0, 1, 1], [], []>} : vector<256x8xbf16>, vector<8x4xbf16>, vector<256x4xf32> -> vector<256x4xf32>
    %37 = arith.addf %30, %36 : vector<256x4xf32>
    %38 = vector.extract_strided_slice %1 {offsets = [1, 2, 0], sizes = [16, 16, 8], strides = [1, 1, 1]} : vector<18x18x8xf32> to vector<16x16x8xf32>
    %39 = vector.shape_cast %38 : vector<16x16x8xf32> to vector<256x8xf32>
    %40 = arith.truncf %39 : vector<256x8xf32> to vector<256x8xbf16>
    %c1_26 = arith.constant 1 : index
    %c2_27 = arith.constant 2 : index
    %c0_28 = arith.constant 0 : index
    %c0_29 = arith.constant 0 : index
    %41 = vector.load %arg2[%c1_26, %c2_27, %c0_28, %c0_29] : memref<3x3x8x4xbf16, #tpu.memory_space<vmem>>, vector<1x1x8x4xbf16>
    %42 = vector.shape_cast %41 : vector<1x1x8x4xbf16> to vector<8x4xbf16>
    %cst_30 = arith.constant dense<0.000000e+00> : vector<256x4xf32>
    %43 = tpu.matmul %40, %42, %cst_30 {dimension_numbers = #tpu.dot_dimension_numbers<[1], [0], [0], [1], [0, 0, 1, 1], [], []>} : vector<256x8xbf16>, vector<8x4xbf16>, vector<256x4xf32> -> vector<256x4xf32>
    %44 = arith.addf %37, %43 : vector<256x4xf32>
    %45 = vector.extract_strided_slice %1 {offsets = [2, 0, 0], sizes = [16, 16, 8], strides = [1, 1, 1]} : vector<18x18x8xf32> to vector<16x16x8xf32>
    %46 = vector.shape_cast %45 : vector<16x16x8xf32> to vector<256x8xf32>
    %47 = arith.truncf %46 : vector<256x8xf32> to vector<256x8xbf16>
    %c2_31 = arith.constant 2 : index
    %c0_32 = arith.constant 0 : index
    %c0_33 = arith.constant 0 : index
    %c0_34 = arith.constant 0 : index
    %48 = vector.load %arg2[%c2_31, %c0_32, %c0_33, %c0_34] : memref<3x3x8x4xbf16, #tpu.memory_space<vmem>>, vector<1x1x8x4xbf16>
    %49 = vector.shape_cast %48 : vector<1x1x8x4xbf16> to vector<8x4xbf16>
    %cst_35 = arith.constant dense<0.000000e+00> : vector<256x4xf32>
    %50 = tpu.matmul %47, %49, %cst_35 {dimension_numbers = #tpu.dot_dimension_numbers<[1], [0], [0], [1], [0, 0, 1, 1], [], []>} : vector<256x8xbf16>, vector<8x4xbf16>, vector<256x4xf32> -> vector<256x4xf32>
    %51 = arith.addf %44, %50 : vector<256x4xf32>
    %52 = vector.extract_strided_slice %1 {offsets = [2, 1, 0], sizes = [16, 16, 8], strides = [1, 1, 1]} : vector<18x18x8xf32> to vector<16x16x8xf32>
    %53 = vector.shape_cast %52 : vector<16x16x8xf32> to vector<256x8xf32>
    %54 = arith.truncf %53 : vector<256x8xf32> to vector<256x8xbf16>
    %c2_36 = arith.constant 2 : index
    %c1_37 = arith.constant 1 : index
    %c0_38 = arith.constant 0 : index
    %c0_39 = arith.constant 0 : index
    %55 = vector.load %arg2[%c2_36, %c1_37, %c0_38, %c0_39] : memref<3x3x8x4xbf16, #tpu.memory_space<vmem>>, vector<1x1x8x4xbf16>
    %56 = vector.shape_cast %55 : vector<1x1x8x4xbf16> to vector<8x4xbf16>
    %cst_40 = arith.constant dense<0.000000e+00> : vector<256x4xf32>
    %57 = tpu.matmul %54, %56, %cst_40 {dimension_numbers = #tpu.dot_dimension_numbers<[1], [0], [0], [1], [0, 0, 1, 1], [], []>} : vector<256x8xbf16>, vector<8x4xbf16>, vector<256x4xf32> -> vector<256x4xf32>
    %58 = arith.addf %51, %57 : vector<256x4xf32>
    %59 = vector.extract_strided_slice %1 {offsets = [2, 2, 0], sizes = [16, 16, 8], strides = [1, 1, 1]} : vector<18x18x8xf32> to vector<16x16x8xf32>
    %60 = vector.shape_cast %59 : vector<16x16x8xf32> to vector<256x8xf32>
    %61 = arith.truncf %60 : vector<256x8xf32> to vector<256x8xbf16>
    %c2_41 = arith.constant 2 : index
    %c2_42 = arith.constant 2 : index
    %c0_43 = arith.constant 0 : index
    %c0_44 = arith.constant 0 : index
    %62 = vector.load %arg2[%c2_41, %c2_42, %c0_43, %c0_44] : memref<3x3x8x4xbf16, #tpu.memory_space<vmem>>, vector<1x1x8x4xbf16>
    %63 = vector.shape_cast %62 : vector<1x1x8x4xbf16> to vector<8x4xbf16>
    %cst_45 = arith.constant dense<0.000000e+00> : vector<256x4xf32>
    %64 = tpu.matmul %61, %63, %cst_45 {dimension_numbers = #tpu.dot_dimension_numbers<[1], [0], [0], [1], [0, 0, 1, 1], [], []>} : vector<256x8xbf16>, vector<8x4xbf16>, vector<256x4xf32> -> vector<256x4xf32>
    %65 = arith.addf %58, %64 : vector<256x4xf32>
    %66 = vector.shape_cast %65 : vector<256x4xf32> to vector<16x16x4xf32>
    %c0_46 = arith.constant 0 : index
    %c0_47 = arith.constant 0 : index
    %c0_48 = arith.constant 0 : index
    %c0_49 = arith.constant 0 : index
    %67 = vector.load %arg3[%c0_46, %c0_47, %c0_48, %c0_49] : memref<1x16x16x4xf32, #tpu.memory_space<vmem>>, vector<1x16x16x4xf32>
    %68 = vector.shape_cast %67 : vector<1x16x16x4xf32> to vector<16x16x4xf32>
    %69 = vector.shape_cast %66 : vector<16x16x4xf32> to vector<1x16x16x4xf32>
    tpu.vector_store %arg3[%c0_46, %c0_47, %c0_48, %c0_49], %69 {strides = array<i32>} : memref<1x16x16x4xf32, #tpu.memory_space<vmem>>, vector<1x16x16x4xf32>,
    %cst_50 = arith.constant dense<0.000000e+00> : vector<4xf32>
    %70 = vector.multi_reduction <add>, %65, %cst_50 [0] : vector<256x4xf32> to vector<4xf32>
    %71 = vector.shape_cast %70 : vector<4xf32> to vector<1x4xf32>
    %c0_51 = arith.constant 0 : index
    %c0_52 = arith.constant 0 : index
    %c0_53 = arith.constant 0 : index
    %72 = vector.load %arg4[%c0_51, %c0_52, %c0_53] : memref<1x2x4xf32, #tpu.memory_space<vmem>>, vector<1x1x4xf32>
    %73 = vector.shape_cast %72 : vector<1x1x4xf32> to vector<1x4xf32>
    %74 = vector.shape_cast %71 : vector<1x4xf32> to vector<1x1x4xf32>
    tpu.vector_store %arg4[%c0_51, %c0_52, %c0_53], %74 {strides = array<i32>} : memref<1x2x4xf32, #tpu.memory_space<vmem>>, vector<1x1x4xf32>,
    %75 = arith.mulf %65, %65 : vector<256x4xf32>
    %cst_54 = arith.constant dense<0.000000e+00> : vector<4xf32>
    %76 = vector.multi_reduction <add>, %75, %cst_54 [0] : vector<256x4xf32> to vector<4xf32>
    %77 = vector.shape_cast %76 : vector<4xf32> to vector<1x4xf32>
    %c0_55 = arith.constant 0 : index
    %c1_56 = arith.constant 1 : index
    %c0_57 = arith.constant 0 : index
    %78 = vector.load %arg4[%c0_55, %c1_56, %c0_57] : memref<1x2x4xf32, #tpu.memory_space<vmem>>, vector<1x1x4xf32>
    %79 = vector.shape_cast %78 : vector<1x1x4xf32> to vector<1x4xf32>
    %80 = vector.shape_cast %77 : vector<1x4xf32> to vector<1x1x4xf32>
    tpu.vector_store %arg4[%c0_55, %c1_56, %c0_57], %80 {strides = array<i32>} : memref<1x2x4xf32, #tpu.memory_space<vmem>>, vector<1x1x4xf32>,
    return
  }
  func.func @transform_0(%arg0: i32) -> (i32, i32, i32, i32) {
    %c0_i32 = arith.constant 0 : i32
    %c0_i32_0 = arith.constant 0 : i32
    %c0_i32_1 = arith.constant 0 : i32
    %c0_i32_2 = arith.constant 0 : i32
    return %arg0, %c0_i32, %c0_i32_0, %c0_i32_1 : i32, i32, i32, i32
  }
  func.func @transform_1(%arg0: i32) -> (i32, i32, i32, i32) {
    %c0_i32 = arith.constant 0 : i32
    %c0_i32_0 = arith.constant 0 : i32
    %c0_i32_1 = arith.constant 0 : i32
    %c0_i32_2 = arith.constant 0 : i32
    %c0_i32_3 = arith.constant 0 : i32
    return %c0_i32, %c0_i32_0, %c0_i32_1, %c0_i32_2 : i32, i32, i32, i32
  }
  func.func @transform_2(%arg0: i32) -> (i32, i32, i32, i32) {
    %c0_i32 = arith.constant 0 : i32
    %c0_i32_0 = arith.constant 0 : i32
    %c0_i32_1 = arith.constant 0 : i32
    %c0_i32_2 = arith.constant 0 : i32
    return %arg0, %c0_i32, %c0_i32_0, %c0_i32_1 : i32, i32, i32, i32
  }
  func.func @transform_3(%arg0: i32) -> (i32, i32, i32) {
    %c0_i32 = arith.constant 0 : i32
    %c0_i32_0 = arith.constant 0 : i32
    %c0_i32_1 = arith.constant 0 : i32
    return %arg0, %c0_i32, %c0_i32_0 : i32, i32, i32
  }
}

module attributes {stable_mosaic.version = 11 : i64} {
  func.func @_conv3x3_stats_kernel(%arg0: i32, %arg1: memref<1x18x18x4xf32, #tpu.memory_space<vmem>>, %arg2: memref<3x3x4x4xbf16, #tpu.memory_space<vmem>>, %arg3: memref<1x4xf32, #tpu.memory_space<vmem>>, %arg4: memref<1x4xf32, #tpu.memory_space<vmem>>, %arg5: memref<1x16x16x4xf32, #tpu.memory_space<vmem>>, %arg6: memref<1x2x4xf32, #tpu.memory_space<vmem>>) attributes {dimension_semantics = [#tpu.dimension_semantics<parallel>], iteration_bounds = array<i64: 2>, scalar_prefetch = 0 : i64, scratch_operands = 0 : i64, tpu.core_type = #tpu.core_type<tc>, window_params = [{transform_indices = @transform_0, window_bounds = array<i64: 1, 18, 18, 4>}, {pipeline_mode = #tpu.pipeline_mode<synchronous>, transform_indices = @transform_1, window_bounds = array<i64: 3, 3, 4, 4>}, {pipeline_mode = #tpu.pipeline_mode<synchronous>, transform_indices = @transform_2, window_bounds = array<i64: 1, 4>}, {pipeline_mode = #tpu.pipeline_mode<synchronous>, transform_indices = @transform_3, window_bounds = array<i64: 1, 4>}, {transform_indices = @transform_4, window_bounds = array<i64: 1, 16, 16, 4>}, {transform_indices = @transform_5, window_bounds = array<i64: 1, 2, 4>}]} {
    %c0 = arith.constant 0 : index
    %c0_0 = arith.constant 0 : index
    %c0_1 = arith.constant 0 : index
    %c0_2 = arith.constant 0 : index
    %0 = vector.load %arg1[%c0, %c0_0, %c0_1, %c0_2] : memref<1x18x18x4xf32, #tpu.memory_space<vmem>>, vector<1x18x18x4xf32>
    %1 = vector.shape_cast %0 : vector<1x18x18x4xf32> to vector<18x18x4xf32>
    %c0_3 = arith.constant 0 : index
    %c0_4 = arith.constant 0 : index
    %2 = vector.load %arg3[%c0_3, %c0_4] : memref<1x4xf32, #tpu.memory_space<vmem>>, vector<1x4xf32>
    %3 = vector.shape_cast %2 : vector<1x4xf32> to vector<4xf32>
    %4 = vector.shape_cast %3 : vector<4xf32> to vector<1x1x4xf32>
    %5 = vector.broadcast %4 : vector<1x1x4xf32> to vector<18x18x4xf32>
    %6 = arith.mulf %1, %5 : vector<18x18x4xf32>
    %c0_5 = arith.constant 0 : index
    %c0_6 = arith.constant 0 : index
    %7 = vector.load %arg4[%c0_5, %c0_6] : memref<1x4xf32, #tpu.memory_space<vmem>>, vector<1x4xf32>
    %8 = vector.shape_cast %7 : vector<1x4xf32> to vector<4xf32>
    %9 = vector.shape_cast %8 : vector<4xf32> to vector<1x1x4xf32>
    %10 = vector.broadcast %9 : vector<1x1x4xf32> to vector<18x18x4xf32>
    %11 = arith.addf %6, %10 : vector<18x18x4xf32>
    %cst = arith.constant 0.000000e+00 : f32
    %12 = vector.broadcast %cst : f32 to vector<18x18x4xf32>
    %13 = arith.maximumf %11, %12 : vector<18x18x4xf32>
    %14 = tpu.iota {dimensions = array<i32: 0>} : vector<18x18x4xi32>
    %15 = tpu.iota {dimensions = array<i32: 1>} : vector<18x18x4xi32>
    %c1_i32 = arith.constant 1 : i32
    %16 = vector.broadcast %c1_i32 : i32 to vector<18x18x4xi32>
    %17 = arith.cmpi sge, %14, %16 : vector<18x18x4xi32>
    %c16_i32 = arith.constant 16 : i32
    %18 = vector.broadcast %c16_i32 : i32 to vector<18x18x4xi32>
    %19 = arith.cmpi sle, %14, %18 : vector<18x18x4xi32>
    %20 = arith.andi %17, %19 : vector<18x18x4xi1>
    %c1_i32_7 = arith.constant 1 : i32
    %21 = vector.broadcast %c1_i32_7 : i32 to vector<18x18x4xi32>
    %22 = arith.cmpi sge, %15, %21 : vector<18x18x4xi32>
    %23 = arith.andi %20, %22 : vector<18x18x4xi1>
    %c16_i32_8 = arith.constant 16 : i32
    %24 = vector.broadcast %c16_i32_8 : i32 to vector<18x18x4xi32>
    %25 = arith.cmpi sle, %15, %24 : vector<18x18x4xi32>
    %26 = arith.andi %23, %25 : vector<18x18x4xi1>
    %cst_9 = arith.constant 0.000000e+00 : f32
    %27 = vector.broadcast %cst_9 : f32 to vector<18x18x4xf32>
    %28 = arith.select %26, %13, %27 : vector<18x18x4xi1>, vector<18x18x4xf32>
    %cst_10 = arith.constant 0.000000e+00 : f32
    %29 = vector.broadcast %cst_10 : f32 to vector<256x4xf32>
    %30 = vector.extract_strided_slice %28 {offsets = [0, 0, 0], sizes = [16, 16, 4], strides = [1, 1, 1]} : vector<18x18x4xf32> to vector<16x16x4xf32>
    %31 = vector.shape_cast %30 : vector<16x16x4xf32> to vector<256x4xf32>
    %32 = arith.truncf %31 : vector<256x4xf32> to vector<256x4xbf16>
    %c0_11 = arith.constant 0 : index
    %c0_12 = arith.constant 0 : index
    %c0_13 = arith.constant 0 : index
    %c0_14 = arith.constant 0 : index
    %33 = vector.load %arg2[%c0_11, %c0_12, %c0_13, %c0_14] : memref<3x3x4x4xbf16, #tpu.memory_space<vmem>>, vector<1x1x4x4xbf16>
    %34 = vector.shape_cast %33 : vector<1x1x4x4xbf16> to vector<4x4xbf16>
    %cst_15 = arith.constant dense<0.000000e+00> : vector<256x4xf32>
    %35 = tpu.matmul %32, %34, %cst_15 {dimension_numbers = #tpu.dot_dimension_numbers<[1], [0], [0], [1], [0, 0, 1, 1], [], []>} : vector<256x4xbf16>, vector<4x4xbf16>, vector<256x4xf32> -> vector<256x4xf32>
    %36 = arith.addf %29, %35 : vector<256x4xf32>
    %37 = vector.extract_strided_slice %28 {offsets = [0, 1, 0], sizes = [16, 16, 4], strides = [1, 1, 1]} : vector<18x18x4xf32> to vector<16x16x4xf32>
    %38 = vector.shape_cast %37 : vector<16x16x4xf32> to vector<256x4xf32>
    %39 = arith.truncf %38 : vector<256x4xf32> to vector<256x4xbf16>
    %c0_16 = arith.constant 0 : index
    %c1 = arith.constant 1 : index
    %c0_17 = arith.constant 0 : index
    %c0_18 = arith.constant 0 : index
    %40 = vector.load %arg2[%c0_16, %c1, %c0_17, %c0_18] : memref<3x3x4x4xbf16, #tpu.memory_space<vmem>>, vector<1x1x4x4xbf16>
    %41 = vector.shape_cast %40 : vector<1x1x4x4xbf16> to vector<4x4xbf16>
    %cst_19 = arith.constant dense<0.000000e+00> : vector<256x4xf32>
    %42 = tpu.matmul %39, %41, %cst_19 {dimension_numbers = #tpu.dot_dimension_numbers<[1], [0], [0], [1], [0, 0, 1, 1], [], []>} : vector<256x4xbf16>, vector<4x4xbf16>, vector<256x4xf32> -> vector<256x4xf32>
    %43 = arith.addf %36, %42 : vector<256x4xf32>
    %44 = vector.extract_strided_slice %28 {offsets = [0, 2, 0], sizes = [16, 16, 4], strides = [1, 1, 1]} : vector<18x18x4xf32> to vector<16x16x4xf32>
    %45 = vector.shape_cast %44 : vector<16x16x4xf32> to vector<256x4xf32>
    %46 = arith.truncf %45 : vector<256x4xf32> to vector<256x4xbf16>
    %c0_20 = arith.constant 0 : index
    %c2 = arith.constant 2 : index
    %c0_21 = arith.constant 0 : index
    %c0_22 = arith.constant 0 : index
    %47 = vector.load %arg2[%c0_20, %c2, %c0_21, %c0_22] : memref<3x3x4x4xbf16, #tpu.memory_space<vmem>>, vector<1x1x4x4xbf16>
    %48 = vector.shape_cast %47 : vector<1x1x4x4xbf16> to vector<4x4xbf16>
    %cst_23 = arith.constant dense<0.000000e+00> : vector<256x4xf32>
    %49 = tpu.matmul %46, %48, %cst_23 {dimension_numbers = #tpu.dot_dimension_numbers<[1], [0], [0], [1], [0, 0, 1, 1], [], []>} : vector<256x4xbf16>, vector<4x4xbf16>, vector<256x4xf32> -> vector<256x4xf32>
    %50 = arith.addf %43, %49 : vector<256x4xf32>
    %51 = vector.extract_strided_slice %28 {offsets = [1, 0, 0], sizes = [16, 16, 4], strides = [1, 1, 1]} : vector<18x18x4xf32> to vector<16x16x4xf32>
    %52 = vector.shape_cast %51 : vector<16x16x4xf32> to vector<256x4xf32>
    %53 = arith.truncf %52 : vector<256x4xf32> to vector<256x4xbf16>
    %c1_24 = arith.constant 1 : index
    %c0_25 = arith.constant 0 : index
    %c0_26 = arith.constant 0 : index
    %c0_27 = arith.constant 0 : index
    %54 = vector.load %arg2[%c1_24, %c0_25, %c0_26, %c0_27] : memref<3x3x4x4xbf16, #tpu.memory_space<vmem>>, vector<1x1x4x4xbf16>
    %55 = vector.shape_cast %54 : vector<1x1x4x4xbf16> to vector<4x4xbf16>
    %cst_28 = arith.constant dense<0.000000e+00> : vector<256x4xf32>
    %56 = tpu.matmul %53, %55, %cst_28 {dimension_numbers = #tpu.dot_dimension_numbers<[1], [0], [0], [1], [0, 0, 1, 1], [], []>} : vector<256x4xbf16>, vector<4x4xbf16>, vector<256x4xf32> -> vector<256x4xf32>
    %57 = arith.addf %50, %56 : vector<256x4xf32>
    %58 = vector.extract_strided_slice %28 {offsets = [1, 1, 0], sizes = [16, 16, 4], strides = [1, 1, 1]} : vector<18x18x4xf32> to vector<16x16x4xf32>
    %59 = vector.shape_cast %58 : vector<16x16x4xf32> to vector<256x4xf32>
    %60 = arith.truncf %59 : vector<256x4xf32> to vector<256x4xbf16>
    %c1_29 = arith.constant 1 : index
    %c1_30 = arith.constant 1 : index
    %c0_31 = arith.constant 0 : index
    %c0_32 = arith.constant 0 : index
    %61 = vector.load %arg2[%c1_29, %c1_30, %c0_31, %c0_32] : memref<3x3x4x4xbf16, #tpu.memory_space<vmem>>, vector<1x1x4x4xbf16>
    %62 = vector.shape_cast %61 : vector<1x1x4x4xbf16> to vector<4x4xbf16>
    %cst_33 = arith.constant dense<0.000000e+00> : vector<256x4xf32>
    %63 = tpu.matmul %60, %62, %cst_33 {dimension_numbers = #tpu.dot_dimension_numbers<[1], [0], [0], [1], [0, 0, 1, 1], [], []>} : vector<256x4xbf16>, vector<4x4xbf16>, vector<256x4xf32> -> vector<256x4xf32>
    %64 = arith.addf %57, %63 : vector<256x4xf32>
    %65 = vector.extract_strided_slice %28 {offsets = [1, 2, 0], sizes = [16, 16, 4], strides = [1, 1, 1]} : vector<18x18x4xf32> to vector<16x16x4xf32>
    %66 = vector.shape_cast %65 : vector<16x16x4xf32> to vector<256x4xf32>
    %67 = arith.truncf %66 : vector<256x4xf32> to vector<256x4xbf16>
    %c1_34 = arith.constant 1 : index
    %c2_35 = arith.constant 2 : index
    %c0_36 = arith.constant 0 : index
    %c0_37 = arith.constant 0 : index
    %68 = vector.load %arg2[%c1_34, %c2_35, %c0_36, %c0_37] : memref<3x3x4x4xbf16, #tpu.memory_space<vmem>>, vector<1x1x4x4xbf16>
    %69 = vector.shape_cast %68 : vector<1x1x4x4xbf16> to vector<4x4xbf16>
    %cst_38 = arith.constant dense<0.000000e+00> : vector<256x4xf32>
    %70 = tpu.matmul %67, %69, %cst_38 {dimension_numbers = #tpu.dot_dimension_numbers<[1], [0], [0], [1], [0, 0, 1, 1], [], []>} : vector<256x4xbf16>, vector<4x4xbf16>, vector<256x4xf32> -> vector<256x4xf32>
    %71 = arith.addf %64, %70 : vector<256x4xf32>
    %72 = vector.extract_strided_slice %28 {offsets = [2, 0, 0], sizes = [16, 16, 4], strides = [1, 1, 1]} : vector<18x18x4xf32> to vector<16x16x4xf32>
    %73 = vector.shape_cast %72 : vector<16x16x4xf32> to vector<256x4xf32>
    %74 = arith.truncf %73 : vector<256x4xf32> to vector<256x4xbf16>
    %c2_39 = arith.constant 2 : index
    %c0_40 = arith.constant 0 : index
    %c0_41 = arith.constant 0 : index
    %c0_42 = arith.constant 0 : index
    %75 = vector.load %arg2[%c2_39, %c0_40, %c0_41, %c0_42] : memref<3x3x4x4xbf16, #tpu.memory_space<vmem>>, vector<1x1x4x4xbf16>
    %76 = vector.shape_cast %75 : vector<1x1x4x4xbf16> to vector<4x4xbf16>
    %cst_43 = arith.constant dense<0.000000e+00> : vector<256x4xf32>
    %77 = tpu.matmul %74, %76, %cst_43 {dimension_numbers = #tpu.dot_dimension_numbers<[1], [0], [0], [1], [0, 0, 1, 1], [], []>} : vector<256x4xbf16>, vector<4x4xbf16>, vector<256x4xf32> -> vector<256x4xf32>
    %78 = arith.addf %71, %77 : vector<256x4xf32>
    %79 = vector.extract_strided_slice %28 {offsets = [2, 1, 0], sizes = [16, 16, 4], strides = [1, 1, 1]} : vector<18x18x4xf32> to vector<16x16x4xf32>
    %80 = vector.shape_cast %79 : vector<16x16x4xf32> to vector<256x4xf32>
    %81 = arith.truncf %80 : vector<256x4xf32> to vector<256x4xbf16>
    %c2_44 = arith.constant 2 : index
    %c1_45 = arith.constant 1 : index
    %c0_46 = arith.constant 0 : index
    %c0_47 = arith.constant 0 : index
    %82 = vector.load %arg2[%c2_44, %c1_45, %c0_46, %c0_47] : memref<3x3x4x4xbf16, #tpu.memory_space<vmem>>, vector<1x1x4x4xbf16>
    %83 = vector.shape_cast %82 : vector<1x1x4x4xbf16> to vector<4x4xbf16>
    %cst_48 = arith.constant dense<0.000000e+00> : vector<256x4xf32>
    %84 = tpu.matmul %81, %83, %cst_48 {dimension_numbers = #tpu.dot_dimension_numbers<[1], [0], [0], [1], [0, 0, 1, 1], [], []>} : vector<256x4xbf16>, vector<4x4xbf16>, vector<256x4xf32> -> vector<256x4xf32>
    %85 = arith.addf %78, %84 : vector<256x4xf32>
    %86 = vector.extract_strided_slice %28 {offsets = [2, 2, 0], sizes = [16, 16, 4], strides = [1, 1, 1]} : vector<18x18x4xf32> to vector<16x16x4xf32>
    %87 = vector.shape_cast %86 : vector<16x16x4xf32> to vector<256x4xf32>
    %88 = arith.truncf %87 : vector<256x4xf32> to vector<256x4xbf16>
    %c2_49 = arith.constant 2 : index
    %c2_50 = arith.constant 2 : index
    %c0_51 = arith.constant 0 : index
    %c0_52 = arith.constant 0 : index
    %89 = vector.load %arg2[%c2_49, %c2_50, %c0_51, %c0_52] : memref<3x3x4x4xbf16, #tpu.memory_space<vmem>>, vector<1x1x4x4xbf16>
    %90 = vector.shape_cast %89 : vector<1x1x4x4xbf16> to vector<4x4xbf16>
    %cst_53 = arith.constant dense<0.000000e+00> : vector<256x4xf32>
    %91 = tpu.matmul %88, %90, %cst_53 {dimension_numbers = #tpu.dot_dimension_numbers<[1], [0], [0], [1], [0, 0, 1, 1], [], []>} : vector<256x4xbf16>, vector<4x4xbf16>, vector<256x4xf32> -> vector<256x4xf32>
    %92 = arith.addf %85, %91 : vector<256x4xf32>
    %93 = vector.shape_cast %92 : vector<256x4xf32> to vector<16x16x4xf32>
    %c0_54 = arith.constant 0 : index
    %c0_55 = arith.constant 0 : index
    %c0_56 = arith.constant 0 : index
    %c0_57 = arith.constant 0 : index
    %94 = vector.load %arg5[%c0_54, %c0_55, %c0_56, %c0_57] : memref<1x16x16x4xf32, #tpu.memory_space<vmem>>, vector<1x16x16x4xf32>
    %95 = vector.shape_cast %94 : vector<1x16x16x4xf32> to vector<16x16x4xf32>
    %96 = vector.shape_cast %93 : vector<16x16x4xf32> to vector<1x16x16x4xf32>
    tpu.vector_store %arg5[%c0_54, %c0_55, %c0_56, %c0_57], %96 {strides = array<i32>} : memref<1x16x16x4xf32, #tpu.memory_space<vmem>>, vector<1x16x16x4xf32>,
    %cst_58 = arith.constant dense<0.000000e+00> : vector<4xf32>
    %97 = vector.multi_reduction <add>, %92, %cst_58 [0] : vector<256x4xf32> to vector<4xf32>
    %98 = vector.shape_cast %97 : vector<4xf32> to vector<1x4xf32>
    %c0_59 = arith.constant 0 : index
    %c0_60 = arith.constant 0 : index
    %c0_61 = arith.constant 0 : index
    %99 = vector.load %arg6[%c0_59, %c0_60, %c0_61] : memref<1x2x4xf32, #tpu.memory_space<vmem>>, vector<1x1x4xf32>
    %100 = vector.shape_cast %99 : vector<1x1x4xf32> to vector<1x4xf32>
    %101 = vector.shape_cast %98 : vector<1x4xf32> to vector<1x1x4xf32>
    tpu.vector_store %arg6[%c0_59, %c0_60, %c0_61], %101 {strides = array<i32>} : memref<1x2x4xf32, #tpu.memory_space<vmem>>, vector<1x1x4xf32>,
    %102 = arith.mulf %92, %92 : vector<256x4xf32>
    %cst_62 = arith.constant dense<0.000000e+00> : vector<4xf32>
    %103 = vector.multi_reduction <add>, %102, %cst_62 [0] : vector<256x4xf32> to vector<4xf32>
    %104 = vector.shape_cast %103 : vector<4xf32> to vector<1x4xf32>
    %c0_63 = arith.constant 0 : index
    %c1_64 = arith.constant 1 : index
    %c0_65 = arith.constant 0 : index
    %105 = vector.load %arg6[%c0_63, %c1_64, %c0_65] : memref<1x2x4xf32, #tpu.memory_space<vmem>>, vector<1x1x4xf32>
    %106 = vector.shape_cast %105 : vector<1x1x4xf32> to vector<1x4xf32>
    %107 = vector.shape_cast %104 : vector<1x4xf32> to vector<1x1x4xf32>
    tpu.vector_store %arg6[%c0_63, %c1_64, %c0_65], %107 {strides = array<i32>} : memref<1x2x4xf32, #tpu.memory_space<vmem>>, vector<1x1x4xf32>,
    return
  }
  func.func @transform_0(%arg0: i32) -> (i32, i32, i32, i32) {
    %c0_i32 = arith.constant 0 : i32
    %c0_i32_0 = arith.constant 0 : i32
    %c0_i32_1 = arith.constant 0 : i32
    %c0_i32_2 = arith.constant 0 : i32
    return %arg0, %c0_i32, %c0_i32_0, %c0_i32_1 : i32, i32, i32, i32
  }
  func.func @transform_1(%arg0: i32) -> (i32, i32, i32, i32) {
    %c0_i32 = arith.constant 0 : i32
    %c0_i32_0 = arith.constant 0 : i32
    %c0_i32_1 = arith.constant 0 : i32
    %c0_i32_2 = arith.constant 0 : i32
    %c0_i32_3 = arith.constant 0 : i32
    return %c0_i32, %c0_i32_0, %c0_i32_1, %c0_i32_2 : i32, i32, i32, i32
  }
  func.func @transform_2(%arg0: i32) -> (i32, i32) {
    %c0_i32 = arith.constant 0 : i32
    %c0_i32_0 = arith.constant 0 : i32
    %c0_i32_1 = arith.constant 0 : i32
    return %c0_i32, %c0_i32_0 : i32, i32
  }
  func.func @transform_3(%arg0: i32) -> (i32, i32) {
    %c0_i32 = arith.constant 0 : i32
    %c0_i32_0 = arith.constant 0 : i32
    %c0_i32_1 = arith.constant 0 : i32
    return %c0_i32, %c0_i32_0 : i32, i32
  }
  func.func @transform_4(%arg0: i32) -> (i32, i32, i32, i32) {
    %c0_i32 = arith.constant 0 : i32
    %c0_i32_0 = arith.constant 0 : i32
    %c0_i32_1 = arith.constant 0 : i32
    %c0_i32_2 = arith.constant 0 : i32
    return %arg0, %c0_i32, %c0_i32_0, %c0_i32_1 : i32, i32, i32, i32
  }
  func.func @transform_5(%arg0: i32) -> (i32, i32, i32) {
    %c0_i32 = arith.constant 0 : i32
    %c0_i32_0 = arith.constant 0 : i32
    %c0_i32_1 = arith.constant 0 : i32
    return %arg0, %c0_i32, %c0_i32_0 : i32, i32, i32
  }
}

module attributes {stable_mosaic.version = 11 : i64} {
  func.func @_bn_relu_kernel(%arg0: i32, %arg1: memref<512x4xf32, #tpu.memory_space<vmem>>, %arg2: memref<1x4xf32, #tpu.memory_space<vmem>>, %arg3: memref<1x4xf32, #tpu.memory_space<vmem>>, %arg4: memref<512x4xf32, #tpu.memory_space<vmem>>) attributes {dimension_semantics = [#tpu.dimension_semantics<arbitrary>], iteration_bounds = array<i64: 1>, scalar_prefetch = 0 : i64, scratch_operands = 0 : i64, tpu.core_type = #tpu.core_type<tc>, window_params = [{pipeline_mode = #tpu.pipeline_mode<synchronous>, transform_indices = @transform_0, window_bounds = array<i64: 512, 4>}, {pipeline_mode = #tpu.pipeline_mode<synchronous>, transform_indices = @transform_1, window_bounds = array<i64: 1, 4>}, {pipeline_mode = #tpu.pipeline_mode<synchronous>, transform_indices = @transform_2, window_bounds = array<i64: 1, 4>}, {pipeline_mode = #tpu.pipeline_mode<synchronous>, transform_indices = @transform_3, window_bounds = array<i64: 512, 4>}]} {
    %c0 = arith.constant 0 : index
    %c0_0 = arith.constant 0 : index
    %0 = vector.load %arg1[%c0, %c0_0] : memref<512x4xf32, #tpu.memory_space<vmem>>, vector<512x4xf32>
    %c0_1 = arith.constant 0 : index
    %c0_2 = arith.constant 0 : index
    %1 = vector.load %arg2[%c0_1, %c0_2] : memref<1x4xf32, #tpu.memory_space<vmem>>, vector<1x4xf32>
    %2 = vector.shape_cast %1 : vector<1x4xf32> to vector<4xf32>
    %3 = vector.shape_cast %2 : vector<4xf32> to vector<1x4xf32>
    %4 = vector.broadcast %3 : vector<1x4xf32> to vector<512x4xf32>
    %5 = arith.mulf %0, %4 : vector<512x4xf32>
    %c0_3 = arith.constant 0 : index
    %c0_4 = arith.constant 0 : index
    %6 = vector.load %arg3[%c0_3, %c0_4] : memref<1x4xf32, #tpu.memory_space<vmem>>, vector<1x4xf32>
    %7 = vector.shape_cast %6 : vector<1x4xf32> to vector<4xf32>
    %8 = vector.shape_cast %7 : vector<4xf32> to vector<1x4xf32>
    %9 = vector.broadcast %8 : vector<1x4xf32> to vector<512x4xf32>
    %10 = arith.addf %5, %9 : vector<512x4xf32>
    %cst = arith.constant 0.000000e+00 : f32
    %11 = vector.broadcast %cst : f32 to vector<512x4xf32>
    %12 = arith.maximumf %10, %11 : vector<512x4xf32>
    %c0_5 = arith.constant 0 : index
    %c0_6 = arith.constant 0 : index
    %13 = vector.load %arg4[%c0_5, %c0_6] : memref<512x4xf32, #tpu.memory_space<vmem>>, vector<512x4xf32>
    tpu.vector_store %arg4[%c0_5, %c0_6], %12 {strides = array<i32>} : memref<512x4xf32, #tpu.memory_space<vmem>>, vector<512x4xf32>,
    return
  }
  func.func @transform_0(%arg0: i32) -> (i32, i32) {
    %c0_i32 = arith.constant 0 : i32
    %c0_i32_0 = arith.constant 0 : i32
    %c0_i32_1 = arith.constant 0 : i32
    return %c0_i32, %c0_i32_0 : i32, i32
  }
  func.func @transform_1(%arg0: i32) -> (i32, i32) {
    %c0_i32 = arith.constant 0 : i32
    %c0_i32_0 = arith.constant 0 : i32
    %c0_i32_1 = arith.constant 0 : i32
    return %c0_i32, %c0_i32_0 : i32, i32
  }
  func.func @transform_2(%arg0: i32) -> (i32, i32) {
    %c0_i32 = arith.constant 0 : i32
    %c0_i32_0 = arith.constant 0 : i32
    %c0_i32_1 = arith.constant 0 : i32
    return %c0_i32, %c0_i32_0 : i32, i32
  }
  func.func @transform_3(%arg0: i32) -> (i32, i32) {
    %c0_i32 = arith.constant 0 : i32
    %c0_i32_0 = arith.constant 0 : i32
    %c0_i32_1 = arith.constant 0 : i32
    return %c0_i32, %c0_i32_0 : i32, i32
  }
}

</mosaic_0001>

<llo_original>
// kernel: up_forward.5
$region0: #{up_forward.5}
  #allocation0 [shape = 'u32[]', space=smem, size = 0x4, offset = 0x4, fixed_abs, tag = 'smem constant byte address 0x4 - core index']
  #allocation1 [shape = 'u32[144,128]{1,0:T(1,128)}', space=vmem, size = 0x12000, scoped, tag = 'internal scratch']
  %s0 = inlined_call_operand.vmem [shape: f32[512,4], index: 0, kind: input, shape index: {}, may-alias: {0,3}]
  %s1 = inlined_call_operand.vmem [shape: f32[1,4], index: 1, kind: input, shape index: {}]
  %s2 = inlined_call_operand.vmem [shape: f32[1,4], index: 2, kind: input, shape index: {}]
  %s3 = inlined_call_operand.vmem [shape: f32[512,4], index: 3, kind: output, shape index: {}, may-alias: {0,3}]
  %s4 = sld [smem:[#allocation0]]
  $region22: #{up_forward.5} parent=0
    _
  %s6 = ssub.s32 1, %s4
  %s7 = scalar_select 0, %s6, %s4
  // Predicated region
  $region2: #{up_forward.5} parent=0 // pred_check
    _
  $region3: #{up_forward.5} parent=0 // pred_check_branch
    %9 = sbr.rel (0) target = $region5
  $region4: #{up_forward.5} parent=0 // pred_region
    _
  $region5: #{up_forward.5} parent=0 // pred_fallthru
    _
  // Predicated region
  $region6: #{up_forward.5} parent=0 // pred_check
    _
  $region7: #{up_forward.5} parent=0 // pred_check_branch
    %11 = sbr.rel (0) target = $region9
  $region8: #{up_forward.5} parent=0 // pred_region
    _
  $region9: #{up_forward.5} parent=0 // pred_fallthru
    _
  // Predicated region
  $region10: #{up_forward.5} parent=0 // pred_check
    _
  $region11: #{up_forward.5} parent=0 // pred_check_branch
    %13 = sbr.rel (0) target = $region13
  $region12: #{up_forward.5} parent=0 // pred_region
    _
  $region13: #{up_forward.5} parent=0 // pred_fallthru
    _
  %v14 = vld [vmem:[%s0] sm:$0xff]
  %v15 = vld [vmem:[%s0 + $0x8] sm:$0xff]
  %v16 = vld [vmem:[%s0 + $0x10] sm:$0xff]
  %v17 = vld [vmem:[%s0 + $0x18] sm:$0xff]
  %v18 = vld [vmem:[%s0 + $0x20] sm:$0xff]
  %v19 = vld [vmem:[%s0 + $0x28] sm:$0xff]
  %v20 = vld [vmem:[%s0 + $0x30] sm:$0xff]
  %v21 = vld [vmem:[%s0 + $0x38] sm:$0xff]
  %v22 = vld [vmem:[%s0 + $0x40] sm:$0xff]
  %v23 = vld [vmem:[%s0 + $0x48] sm:$0xff]
  %v24 = vld [vmem:[%s0 + $0x50] sm:$0xff]
  %v25 = vld [vmem:[%s0 + $0x58] sm:$0xff]
  %v26 = vld [vmem:[%s0 + $0x60] sm:$0xff]
  %v27 = vld [vmem:[%s0 + $0x68] sm:$0xff]
  %v28 = vld [vmem:[%s0 + $0x70] sm:$0xff]
  %v29 = vld [vmem:[%s0 + $0x78] sm:$0xff]
  %v30 = vld [vmem:[%s0 + $0x80] sm:$0xff]
  %v31 = vld [vmem:[%s0 + $0x88] sm:$0xff]
  %v32 = vld [vmem:[%s0 + $0x90] sm:$0xff]
  %v33 = vld [vmem:[%s0 + $0x98] sm:$0xff]
  %v34 = vld [vmem:[%s0 + $0xa0] sm:$0xff]
  %v35 = vld [vmem:[%s0 + $0xa8] sm:$0xff]
  %v36 = vld [vmem:[%s0 + $0xb0] sm:$0xff]
  %v37 = vld [vmem:[%s0 + $0xb8] sm:$0xff]
  %v38 = vld [vmem:[%s0 + $0xc0] sm:$0xff]
  %v39 = vld [vmem:[%s0 + $0xc8] sm:$0xff]
  %v40 = vld [vmem:[%s0 + $0xd0] sm:$0xff]
  %v41 = vld [vmem:[%s0 + $0xd8] sm:$0xff]
  %v42 = vld [vmem:[%s0 + $0xe0] sm:$0xff]
  %v43 = vld [vmem:[%s0 + $0xe8] sm:$0xff]
  %v44 = vld [vmem:[%s0 + $0xf0] sm:$0xff]
  %v45 = vld [vmem:[%s0 + $0xf8] sm:$0xff]
  %v46 = vld [vmem:[%s0 + $0x100] sm:$0xff]
  %v47 = vld [vmem:[%s0 + $0x108] sm:$0xff]
  %v48 = vld [vmem:[%s0 + $0x110] sm:$0xff]
  %v49 = vld [vmem:[%s0 + $0x118] sm:$0xff]
  %v50 = vld [vmem:[%s0 + $0x120] sm:$0xff]
  %v51 = vld [vmem:[%s0 + $0x128] sm:$0xff]
  %v52 = vld [vmem:[%s0 + $0x130] sm:$0xff]
  %v53 = vld [vmem:[%s0 + $0x138] sm:$0xff]
  %v54 = vld [vmem:[%s0 + $0x140] sm:$0xff]
  %v55 = vld [vmem:[%s0 + $0x148] sm:$0xff]
  %v56 = vld [vmem:[%s0 + $0x150] sm:$0xff]
  %v57 = vld [vmem:[%s0 + $0x158] sm:$0xff]
  %v58 = vld [vmem:[%s0 + $0x160] sm:$0xff]
  %v59 = vld [vmem:[%s0 + $0x168] sm:$0xff]
  %v60 = vld [vmem:[%s0 + $0x170] sm:$0xff]
  %v61 = vld [vmem:[%s0 + $0x178] sm:$0xff]
  %v62 = vld [vmem:[%s0 + $0x180] sm:$0xff]
  %v63 = vld [vmem:[%s0 + $0x188] sm:$0xff]
  %v64 = vld [vmem:[%s0 + $0x190] sm:$0xff]
  %v65 = vld [vmem:[%s0 + $0x198] sm:$0xff]
  %v66 = vld [vmem:[%s0 + $0x1a0] sm:$0xff]
  %v67 = vld [vmem:[%s0 + $0x1a8] sm:$0xff]
  %v68 = vld [vmem:[%s0 + $0x1b0] sm:$0xff]
  %v69 = vld [vmem:[%s0 + $0x1b8] sm:$0xff]
  %v70 = vld [vmem:[%s0 + $0x1c0] sm:$0xff]
  %v71 = vld [vmem:[%s0 + $0x1c8] sm:$0xff]
  %v72 = vld [vmem:[%s0 + $0x1d0] sm:$0xff]
  %v73 = vld [vmem:[%s0 + $0x1d8] sm:$0xff]
  %v74 = vld [vmem:[%s0 + $0x1e0] sm:$0xff]
  %v75 = vld [vmem:[%s0 + $0x1e8] sm:$0xff]
  %v76 = vld [vmem:[%s0 + $0x1f0] sm:$0xff]
  %v77 = vld [vmem:[%s0 + $0x1f8] sm:$0xff]
  %v78 = vld [vmem:[%s1] sm:$0x1]
  %v80 = vlaneseq
  %v81 = vshrl.u32 %v80, 7
  %v82 = vsub.s32 0, %v81
  %v83 = vrot.slane %v78, %v82
  %v85 = vmul.f32 %v14, %v83
  %v86 = vmul.f32 %v15, %v83
  %v87 = vmul.f32 %v16, %v83
  %v88 = vmul.f32 %v17, %v83
  %v89 = vmul.f32 %v18, %v83
  %v90 = vmul.f32 %v19, %v83
  %v91 = vmul.f32 %v20, %v83
  %v92 = vmul.f32 %v21, %v83
  %v93 = vmul.f32 %v22, %v83
  %v94 = vmul.f32 %v23, %v83
  %v95 = vmul.f32 %v24, %v83
  %v96 = vmul.f32 %v25, %v83
  %v97 = vmul.f32 %v26, %v83
  %v98 = vmul.f32 %v27, %v83
  %v99 = vmul.f32 %v28, %v83
  %v100 = vmul.f32 %v29, %v83
  %v101 = vmul.f32 %v30, %v83
  %v102 = vmul.f32 %v31, %v83
  %v103 = vmul.f32 %v32, %v83
  %v104 = vmul.f32 %v33, %v83
  %v105 = vmul.f32 %v34, %v83
  %v106 = vmul.f32 %v35, %v83
  %v107 = vmul.f32 %v36, %v83
  %v108 = vmul.f32 %v37, %v83
  %v109 = vmul.f32 %v38, %v83
  %v110 = vmul.f32 %v39, %v83
  %v111 = vmul.f32 %v40, %v83
  %v112 = vmul.f32 %v41, %v83
  %v113 = vmul.f32 %v42, %v83
  %v114 = vmul.f32 %v43, %v83
  %v115 = vmul.f32 %v44, %v83
  %v116 = vmul.f32 %v45, %v83
  %v117 = vmul.f32 %v46, %v83
  %v118 = vmul.f32 %v47, %v83
  %v119 = vmul.f32 %v48, %v83
  %v120 = vmul.f32 %v49, %v83
  %v121 = vmul.f32 %v50, %v83
  %v122 = vmul.f32 %v51, %v83
  %v123 = vmul.f32 %v52, %v83
  %v124 = vmul.f32 %v53, %v83
  %v125 = vmul.f32 %v54, %v83
  %v126 = vmul.f32 %v55, %v83
  %v127 = vmul.f32 %v56, %v83
  %v128 = vmul.f32 %v57, %v83
  %v129 = vmul.f32 %v58, %v83
  %v130 = vmul.f32 %v59, %v83
  %v131 = vmul.f32 %v60, %v83
  %v132 = vmul.f32 %v61, %v83
  %v133 = vmul.f32 %v62, %v83
  %v134 = vmul.f32 %v63, %v83
  %v135 = vmul.f32 %v64, %v83
  %v136 = vmul.f32 %v65, %v83
  %v137 = vmul.f32 %v66, %v83
  %v138 = vmul.f32 %v67, %v83
  %v139 = vmul.f32 %v68, %v83
  %v140 = vmul.f32 %v69, %v83
  %v141 = vmul.f32 %v70, %v83
  %v142 = vmul.f32 %v71, %v83
  %v143 = vmul.f32 %v72, %v83
  %v144 = vmul.f32 %v73, %v83
  %v145 = vmul.f32 %v74, %v83
  %v146 = vmul.f32 %v75, %v83
  %v147 = vmul.f32 %v76, %v83
  %v148 = vmul.f32 %v77, %v83
  %v149 = vld [vmem:[%s2] sm:$0x1]
  %v151 = vlaneseq
  %v152 = vshrl.u32 %v151, 7
  %v153 = vsub.s32 0, %v152
  %v154 = vrot.slane %v149, %v153
  %v156 = vadd.f32 %v85, %v154
  %v157 = vadd.f32 %v86, %v154
  %v158 = vadd.f32 %v87, %v154
  %v159 = vadd.f32 %v88, %v154
  %v160 = vadd.f32 %v89, %v154
  %v161 = vadd.f32 %v90, %v154
  %v162 = vadd.f32 %v91, %v154
  %v163 = vadd.f32 %v92, %v154
  %v164 = vadd.f32 %v93, %v154
  %v165 = vadd.f32 %v94, %v154
  %v166 = vadd.f32 %v95, %v154
  %v167 = vadd.f32 %v96, %v154
  %v168 = vadd.f32 %v97, %v154
  %v169 = vadd.f32 %v98, %v154
  %v170 = vadd.f32 %v99, %v154
  %v171 = vadd.f32 %v100, %v154
  %v172 = vadd.f32 %v101, %v154
  %v173 = vadd.f32 %v102, %v154
  %v174 = vadd.f32 %v103, %v154
  %v175 = vadd.f32 %v104, %v154
  %v176 = vadd.f32 %v105, %v154
  %v177 = vadd.f32 %v106, %v154
  %v178 = vadd.f32 %v107, %v154
  %v179 = vadd.f32 %v108, %v154
  %v180 = vadd.f32 %v109, %v154
  %v181 = vadd.f32 %v110, %v154
  %v182 = vadd.f32 %v111, %v154
  %v183 = vadd.f32 %v112, %v154
  %v184 = vadd.f32 %v113, %v154
  %v185 = vadd.f32 %v114, %v154
  %v186 = vadd.f32 %v115, %v154
  %v187 = vadd.f32 %v116, %v154
  %v188 = vadd.f32 %v117, %v154
  %v189 = vadd.f32 %v118, %v154
  %v190 = vadd.f32 %v119, %v154
  %v191 = vadd.f32 %v120, %v154
  %v192 = vadd.f32 %v121, %v154
  %v193 = vadd.f32 %v122, %v154
  %v194 = vadd.f32 %v123, %v154
  %v195 = vadd.f32 %v124, %v154
  %v196 = vadd.f32 %v125, %v154
  %v197 = vadd.f32 %v126, %v154
  %v198 = vadd.f32 %v127, %v154
  %v199 = vadd.f32 %v128, %v154
  %v200 = vadd.f32 %v129, %v154
  %v201 = vadd.f32 %v130, %v154
  %v202 = vadd.f32 %v131, %v154
  %v203 = vadd.f32 %v132, %v154
  %v204 = vadd.f32 %v133, %v154
  %v205 = vadd.f32 %v134, %v154
  %v206 = vadd.f32 %v135, %v154
  %v207 = vadd.f32 %v136, %v154
  %v208 = vadd.f32 %v137, %v154
  %v209 = vadd.f32 %v138, %v154
  %v210 = vadd.f32 %v139, %v154
  %v211 = vadd.f32 %v140, %v154
  %v212 = vadd.f32 %v141, %v154
  %v213 = vadd.f32 %v142, %v154
  %v214 = vadd.f32 %v143, %v154
  %v215 = vadd.f32 %v144, %v154
  %v216 = vadd.f32 %v145, %v154
  %v217 = vadd.f32 %v146, %v154
  %v218 = vadd.f32 %v147, %v154
  %v219 = vadd.f32 %v148, %v154
  %v220 = vmax.f32 %v156, 0.0
  %v221 = vmax.f32 %v157, 0.0
  %v222 = vmax.f32 %v158, 0.0
  %v223 = vmax.f32 %v159, 0.0
  %v224 = vmax.f32 %v160, 0.0
  %v225 = vmax.f32 %v161, 0.0
  %v226 = vmax.f32 %v162, 0.0
  %v227 = vmax.f32 %v163, 0.0
  %v228 = vmax.f32 %v164, 0.0
  %v229 = vmax.f32 %v165, 0.0
  %v230 = vmax.f32 %v166, 0.0
  %v231 = vmax.f32 %v167, 0.0
  %v232 = vmax.f32 %v168, 0.0
  %v233 = vmax.f32 %v169, 0.0
  %v234 = vmax.f32 %v170, 0.0
  %v235 = vmax.f32 %v171, 0.0
  %v236 = vmax.f32 %v172, 0.0
  %v237 = vmax.f32 %v173, 0.0
  %v238 = vmax.f32 %v174, 0.0
  %v239 = vmax.f32 %v175, 0.0
  %v240 = vmax.f32 %v176, 0.0
  %v241 = vmax.f32 %v177, 0.0
  %v242 = vmax.f32 %v178, 0.0
  %v243 = vmax.f32 %v179, 0.0
  %v244 = vmax.f32 %v180, 0.0
  %v245 = vmax.f32 %v181, 0.0
  %v246 = vmax.f32 %v182, 0.0
  %v247 = vmax.f32 %v183, 0.0
  %v248 = vmax.f32 %v184, 0.0
  %v249 = vmax.f32 %v185, 0.0
  %v250 = vmax.f32 %v186, 0.0
  %v251 = vmax.f32 %v187, 0.0
  %v252 = vmax.f32 %v188, 0.0
  %v253 = vmax.f32 %v189, 0.0
  %v254 = vmax.f32 %v190, 0.0
  %v255 = vmax.f32 %v191, 0.0
  %v256 = vmax.f32 %v192, 0.0
  %v257 = vmax.f32 %v193, 0.0
  %v258 = vmax.f32 %v194, 0.0
  %v259 = vmax.f32 %v195, 0.0
  %v260 = vmax.f32 %v196, 0.0
  %v261 = vmax.f32 %v197, 0.0
  %v262 = vmax.f32 %v198, 0.0
  %v263 = vmax.f32 %v199, 0.0
  %v264 = vmax.f32 %v200, 0.0
  %v265 = vmax.f32 %v201, 0.0
  %v266 = vmax.f32 %v202, 0.0
  %v267 = vmax.f32 %v203, 0.0
  %v268 = vmax.f32 %v204, 0.0
  %v269 = vmax.f32 %v205, 0.0
  %v270 = vmax.f32 %v206, 0.0
  %v271 = vmax.f32 %v207, 0.0
  %v272 = vmax.f32 %v208, 0.0
  %v273 = vmax.f32 %v209, 0.0
  %v274 = vmax.f32 %v210, 0.0
  %v275 = vmax.f32 %v211, 0.0
  %v276 = vmax.f32 %v212, 0.0
  %v277 = vmax.f32 %v213, 0.0
  %v278 = vmax.f32 %v214, 0.0
  %v279 = vmax.f32 %v215, 0.0
  %v280 = vmax.f32 %v216, 0.0
  %v281 = vmax.f32 %v217, 0.0
  %v282 = vmax.f32 %v218, 0.0
  %v283 = vmax.f32 %v219, 0.0
  %vm284 = vcmask 31744
  %285 = vst.msk [vmem:[%s3] sm:$0xff] %vm284, %v220
  %286 = vst.msk [vmem:[%s3 + $0x8] sm:$0xff] %vm284, %v221
  %287 = vst.msk [vmem:[%s3 + $0x10] sm:$0xff] %vm284, %v222
  %288 = vst.msk [vmem:[%s3 + $0x18] sm:$0xff] %vm284, %v223
  %289 = vst.msk [vmem:[%s3 + $0x20] sm:$0xff] %vm284, %v224
  %290 = vst.msk [vmem:[%s3 + $0x28] sm:$0xff] %vm284, %v225
  %291 = vst.msk [vmem:[%s3 + $0x30] sm:$0xff] %vm284, %v226
  %292 = vst.msk [vmem:[%s3 + $0x38] sm:$0xff] %vm284, %v227
  %293 = vst.msk [vmem:[%s3 + $0x40] sm:$0xff] %vm284, %v228
  %294 = vst.msk [vmem:[%s3 + $0x48] sm:$0xff] %vm284, %v229
  %295 = vst.msk [vmem:[%s3 + $0x50] sm:$0xff] %vm284, %v230
  %296 = vst.msk [vmem:[%s3 + $0x58] sm:$0xff] %vm284, %v231
  %297 = vst.msk [vmem:[%s3 + $0x60] sm:$0xff] %vm284, %v232
  %298 = vst.msk [vmem:[%s3 + $0x68] sm:$0xff] %vm284, %v233
  %299 = vst.msk [vmem:[%s3 + $0x70] sm:$0xff] %vm284, %v234
  %300 = vst.msk [vmem:[%s3 + $0x78] sm:$0xff] %vm284, %v235
  %301 = vst.msk [vmem:[%s3 + $0x80] sm:$0xff] %vm284, %v236
  %302 = vst.msk [vmem:[%s3 + $0x88] sm:$0xff] %vm284, %v237
  %303 = vst.msk [vmem:[%s3 + $0x90] sm:$0xff] %vm284, %v238
  %304 = vst.msk [vmem:[%s3 + $0x98] sm:$0xff] %vm284, %v239
  %305 = vst.msk [vmem:[%s3 + $0xa0] sm:$0xff] %vm284, %v240
  %306 = vst.msk [vmem:[%s3 + $0xa8] sm:$0xff] %vm284, %v241
  %307 = vst.msk [vmem:[%s3 + $0xb0] sm:$0xff] %vm284, %v242
  %308 = vst.msk [vmem:[%s3 + $0xb8] sm:$0xff] %vm284, %v243
  %309 = vst.msk [vmem:[%s3 + $0xc0] sm:$0xff] %vm284, %v244
  %310 = vst.msk [vmem:[%s3 + $0xc8] sm:$0xff] %vm284, %v245
  %311 = vst.msk [vmem:[%s3 + $0xd0] sm:$0xff] %vm284, %v246
  %312 = vst.msk [vmem:[%s3 + $0xd8] sm:$0xff] %vm284, %v247
  %313 = vst.msk [vmem:[%s3 + $0xe0] sm:$0xff] %vm284, %v248
  %314 = vst.msk [vmem:[%s3 + $0xe8] sm:$0xff] %vm284, %v249
  %315 = vst.msk [vmem:[%s3 + $0xf0] sm:$0xff] %vm284, %v250
  %316 = vst.msk [vmem:[%s3 + $0xf8] sm:$0xff] %vm284, %v251
  %317 = vst.msk [vmem:[%s3 + $0x100] sm:$0xff] %vm284, %v252
  %318 = vst.msk [vmem:[%s3 + $0x108] sm:$0xff] %vm284, %v253
  %319 = vst.msk [vmem:[%s3 + $0x110] sm:$0xff] %vm284, %v254
  %320 = vst.msk [vmem:[%s3 + $0x118] sm:$0xff] %vm284, %v255
  %321 = vst.msk [vmem:[%s3 + $0x120] sm:$0xff] %vm284, %v256
  %322 = vst.msk [vmem:[%s3 + $0x128] sm:$0xff] %vm284, %v257
  %323 = vst.msk [vmem:[%s3 + $0x130] sm:$0xff] %vm284, %v258
  %324 = vst.msk [vmem:[%s3 + $0x138] sm:$0xff] %vm284, %v259
  %325 = vst.msk [vmem:[%s3 + $0x140] sm:$0xff] %vm284, %v260
  %326 = vst.msk [vmem:[%s3 + $0x148] sm:$0xff] %vm284, %v261
  %327 = vst.msk [vmem:[%s3 + $0x150] sm:$0xff] %vm284, %v262
  %328 = vst.msk [vmem:[%s3 + $0x158] sm:$0xff] %vm284, %v263
  %329 = vst.msk [vmem:[%s3 + $0x160] sm:$0xff] %vm284, %v264
  %330 = vst.msk [vmem:[%s3 + $0x168] sm:$0xff] %vm284, %v265
  %331 = vst.msk [vmem:[%s3 + $0x170] sm:$0xff] %vm284, %v266
  %332 = vst.msk [vmem:[%s3 + $0x178] sm:$0xff] %vm284, %v267
  %333 = vst.msk [vmem:[%s3 + $0x180] sm:$0xff] %vm284, %v268
  %334 = vst.msk [vmem:[%s3 + $0x188] sm:$0xff] %vm284, %v269
  %335 = vst.msk [vmem:[%s3 + $0x190] sm:$0xff] %vm284, %v270
  %336 = vst.msk [vmem:[%s3 + $0x198] sm:$0xff] %vm284, %v271
  %337 = vst.msk [vmem:[%s3 + $0x1a0] sm:$0xff] %vm284, %v272
  %338 = vst.msk [vmem:[%s3 + $0x1a8] sm:$0xff] %vm284, %v273
  %339 = vst.msk [vmem:[%s3 + $0x1b0] sm:$0xff] %vm284, %v274
  %340 = vst.msk [vmem:[%s3 + $0x1b8] sm:$0xff] %vm284, %v275
  %341 = vst.msk [vmem:[%s3 + $0x1c0] sm:$0xff] %vm284, %v276
  %342 = vst.msk [vmem:[%s3 + $0x1c8] sm:$0xff] %vm284, %v277
  %343 = vst.msk [vmem:[%s3 + $0x1d0] sm:$0xff] %vm284, %v278
  %344 = vst.msk [vmem:[%s3 + $0x1d8] sm:$0xff] %vm284, %v279
  %345 = vst.msk [vmem:[%s3 + $0x1e0] sm:$0xff] %vm284, %v280
  %346 = vst.msk [vmem:[%s3 + $0x1e8] sm:$0xff] %vm284, %v281
  %347 = vst.msk [vmem:[%s3 + $0x1f0] sm:$0xff] %vm284, %v282
  %348 = vst.msk [vmem:[%s3 + $0x1f8] sm:$0xff] %vm284, %v283
  // Predicated region
  $region14: #{up_forward.5} parent=0 // pred_check
    _
  $region15: #{up_forward.5} parent=0 // pred_check_branch
    %350 = sbr.rel (0) target = $region17
  $region16: #{up_forward.5} parent=0 // pred_region
    _
  $region17: #{up_forward.5} parent=0 // pred_fallthru
    _
  // Predicated region
  $region18: #{up_forward.5} parent=0 // pred_check
    _
  $region19: #{up_forward.5} parent=0 // pred_check_branch
    %352 = sbr.rel (0) target = $region21
  $region20: #{up_forward.5} parent=0 // pred_region
    _
  $region21: #{up_forward.5} parent=0 // pred_fallthru
    _

// kernel: up_forward.3
$region0: #{up_forward.3}
  #allocation0 [shape = 'u32[]', space=smem, size = 0x4, offset = 0x4, fixed_abs, tag = 'smem constant byte address 0x4 - core index']
  #allocation1 [shape = 'u32[144,128]{1,0:T(1,128)}', space=vmem, size = 0x12000, scoped, tag = 'internal scratch']
  %s0 = inlined_call_operand.vmem [shape: f32[2,18,18,8], index: 0, kind: input, shape index: {}]
  %s1 = inlined_call_operand.vmem [shape: bf16[3,3,8,4], index: 1, kind: input, shape index: {}]
  %s2 = inlined_call_operand.vmem [shape: f32[2,16,16,4], index: 2, kind: output, shape index: {0}]
  %s3 = inlined_call_operand.vmem [shape: f32[2,2,4], index: 3, kind: output, shape index: {1}]
  %4 = xla_tuple %s2, %s3
  %s5 = sld [smem:[#allocation0]]
  $region49: #{up_forward.3} parent=0
    _
  %s7 = ssub.s32 1, %s5
  %s8 = scalar_select 0, %s7, %s5
  loop: start=0, step=1, limit=4
  $region2: #{up_forward.3} parent=0 // loop_pre_header
    _
  $region3: #{up_forward.3} parent=0 // loop_header
    %s10 = sphi 0, %s14
    %p11 = scmp.ge.s32.totalorder %s10, 4
    %s20 = sphi 0, %s22
    %s23 = sphi 0, %s20
    %s24 = sphi 0, %s23
    %s40 = sphi 0, %s24
    %s44 = sphi 0, %s44
    %s46 = sphi 0, %s44
    %s47 = sphi 0, %s46
    %s61 = sphi 0, %s47
    %s67 = sphi 0, %s69
    %s70 = sphi 0, %s67
    %s71 = sphi 0, %s70
    %s87 = sphi 0, %s71
    %s93 = sphi 0, %s95
    %s96 = sphi 0, %s93
    %s97 = sphi 0, %s96
    %s113 = sphi 0, %s97
  $region4: #{up_forward.3} parent=0 // loop_header_branch
    %13 = sbr.rel (%p11) target = $region8
  $region5: #{up_forward.3} parent=0 // loop_body
    %s15 = ssub.s32 %s10, 1
    %s16 = ssub.s32 %s10, 2
    %s17 = sadd.s32 %s10, 1
    %s18 = ssub.s32 %s10, %s17
    %p19 = scmp.eq.s32.totalorder %s18, 0
    %s21 = sadd.s32 %s20, 1
    %s22 = scalar_select %p19, %s20, %s21
    %p25 = pneg %p19
    %p26 = scmp.eq.s32.totalorder %s10, 1
    %p27 = por %p25, %p26
    %p28 = scmp.ne.s32.totalorder %s20, %s23
    %p29 = scmp.eq.s32.totalorder %s10, 0
    %p30 = por %p28, %p29
    %p31 = scmp.ne.s32.totalorder %s20, %s23
    %p32 = scmp.eq.s32.totalorder %s15, 1
    %p33 = por %p31, %p32
    %p34 = scmp.ne.s32.totalorder %s23, %s24
    %p35 = scmp.eq.s32.totalorder %s15, 0
    %p36 = por %p34, %p35
    %p37 = scmp.ne.s32.totalorder %s23, %s24
    %p38 = scmp.eq.s32.totalorder %s16, 1
    %p39 = por %p37, %p38
    %p41 = scmp.ne.s32.totalorder %s24, %s40
    %p42 = scmp.eq.s32.totalorder %s16, 0
    %p43 = por %p41, %p42
    %s45 = sadd.s32 %s44, 1
    %p48 = scmp.eq.s32.totalorder %s10, 1
    %p49 = scmp.ne.s32.totalorder %s44, %s46
    %p50 = scmp.eq.s32.totalorder %s10, 0
    %p51 = por %p49, %p50
    %p52 = scmp.ne.s32.totalorder %s44, %s46
    %p53 = scmp.eq.s32.totalorder %s15, 1
    %p54 = por %p52, %p53
    %p55 = scmp.ne.s32.totalorder %s46, %s47
    %p56 = scmp.eq.s32.totalorder %s15, 0
    %p57 = por %p55, %p56
    %p58 = scmp.ne.s32.totalorder %s46, %s47
    %p59 = scmp.eq.s32.totalorder %s16, 1
    %p60 = por %p58, %p59
    %p62 = scmp.ne.s32.totalorder %s47, %s61
    %p63 = scmp.eq.s32.totalorder %s16, 0
    %p64 = por %p62, %p63
    %s65 = ssub.s32 %s10, %s17
    %p66 = scmp.eq.s32.totalorder %s65, 0
    %s68 = sadd.s32 %s67, 1
    %s69 = scalar_select %p66, %s67, %s68
    %p72 = pneg %p66
    %p73 = scmp.eq.s32.totalorder %s10, 1
    %p74 = por %p72, %p73
    %p75 = scmp.ne.s32.totalorder %s67, %s70
    %p76 = scmp.eq.s32.totalorder %s10, 0
    %p77 = por %p75, %p76
    %p78 = scmp.ne.s32.totalorder %s67, %s70
    %p79 = scmp.eq.s32.totalorder %s15, 1
    %p80 = por %p78, %p79
    %p81 = scmp.ne.s32.totalorder %s70, %s71
    %p82 = scmp.eq.s32.totalorder %s15, 0
    %p83 = por %p81, %p82
    %p84 = scmp.ne.s32.totalorder %s70, %s71
    %p85 = scmp.eq.s32.totalorder %s16, 1
    %p86 = por %p84, %p85
    %p88 = scmp.ne.s32.totalorder %s71, %s87
    %p89 = scmp.eq.s32.totalorder %s16, 0
    %p90 = por %p88, %p89
    %s91 = ssub.s32 %s10, %s17
    %p92 = scmp.eq.s32.totalorder %s91, 0
    %s94 = sadd.s32 %s93, 1
    %s95 = scalar_select %p92, %s93, %s94
    %p98 = pneg %p92
    %p99 = scmp.eq.s32.totalorder %s10, 1
    %p100 = por %p98, %p99
    %p101 = scmp.ne.s32.totalorder %s93, %s96
    %p102 = scmp.eq.s32.totalorder %s10, 0
    %p103 = por %p101, %p102
    %p104 = scmp.ne.s32.totalorder %s93, %s96
    %p105 = scmp.eq.s32.totalorder %s15, 1
    %p106 = por %p104, %p105
    %p107 = scmp.ne.s32.totalorder %s96, %s97
    %p108 = scmp.eq.s32.totalorder %s15, 0
    %p109 = por %p107, %p108
    %p110 = scmp.ne.s32.totalorder %s96, %s97
    %p111 = scmp.eq.s32.totalorder %s16, 1
    %p112 = por %p110, %p111
    %p114 = scmp.ne.s32.totalorder %s97, %s113
    %p115 = scmp.eq.s32.totalorder %s16, 0
    %p116 = por %p114, %p115
    %p117 = scmp.le.s32.totalorder 1, %s10
    %p118 = scmp.lt.s32.totalorder %s10, 3
    %p119 = pnand %p117, %p118
    %p120 = pneg %p119
    // Predicated region
    $region9: #{up_forward.3} parent=5 // pred_check
      _
    $region10: #{up_forward.3} parent=5 // pred_check_branch
      %122 = sbr.rel (%p119) target = $region12
    $region11: #{up_forward.3} parent=5 // pred_region
      %s123 = ssub.s32 %s10, 1
      // Predicated region
      $region13: #{up_forward.3} parent=11 // pred_check
        %p124 = pneg %p57
      $region14: #{up_forward.3} parent=11 // pred_check_branch
        %126 = sbr.rel (%p124) target = $region16
      $region15: #{up_forward.3} parent=11 // pred_region
        _
      $region16: #{up_forward.3} parent=11 // pred_fallthru
        _
    $region12: #{up_forward.3} parent=5 // pred_fallthru
      _
    %p127 = scmp.lt.s32.totalorder %s10, 2
    // Predicated region
    $region17: #{up_forward.3} parent=5 // pred_check
      %p128 = pneg %p127
    $region18: #{up_forward.3} parent=5 // pred_check_branch
      %130 = sbr.rel (%p128) target = $region20
    $region19: #{up_forward.3} parent=5 // pred_region
      // Predicated region
      $region21: #{up_forward.3} parent=19 // pred_check
        %p131 = pneg %p30
      $region22: #{up_forward.3} parent=19 // pred_check_branch
        %133 = sbr.rel (%p131) target = $region24
      $region23: #{up_forward.3} parent=19 // pred_region
        %p134 = scmp.lt.s32.totalorder %s10, 1
        %s135 = scalar_select %p134, %s10, 1
        %s136 = smul.addr %s135, 54
        %s137 = smul.addr %s136, 8
        %s138 = scalar_lea.vmem %s0, %s137
      $region24: #{up_forward.3} parent=19 // pred_fallthru
        _
    $region20: #{up_forward.3} parent=5 // pred_fallthru
      _
    %p139 = scmp.le.s32.totalorder 1, %s10
    %p140 = scmp.lt.s32.totalorder %s10, 3
    %p141 = pnand %p139, %p140
    %p142 = pneg %p141
    // Predicated region
    $region25: #{up_forward.3} parent=5 // pred_check
      _
    $region26: #{up_forward.3} parent=5 // pred_check_branch
      %144 = sbr.rel (%p141) target = $region28
    $region27: #{up_forward.3} parent=5 // pred_region
      %s145 = ssub.s32 %s10, 1
      %p146 = scmp.lt.s32.totalorder %s15, 1
      %s147 = scalar_select %p146, %s15, 1
      %s148 = smul.addr %s147, 54
      %s149 = smul.addr %s148, 8
      %s150 = scalar_lea.vmem %s0, %s149
      %p151 = pneg %p36
      %p152 = pneg %p33
      %p153 = pneg %p57
      %p154 = pneg %p54
      %p155 = pneg %p83
      %p156 = pneg %p80
      %p157 = scmp.lt.s32.totalorder %s15, 1
      %s158 = scalar_select %p157, %s15, 1
      %s159 = smul.addr %s158, 32
      %s160 = smul.addr %s159, 8
      %s161 = scalar_lea.vmem %s2, %s160
      %p162 = pneg %p109
      %p163 = pneg %p106
      %p164 = scmp.lt.s32.totalorder %s15, 1
      %s165 = scalar_select %p164, %s15, 1
      %s166 = smul.addr %s165, 2
      %s167 = scalar_lea.vmem %s3, %s166
      %p168 = scmp.lt.s32.totalorder %s15, 1
      %s169 = scalar_select %p168, %s15, 1
      %s170 = smul.addr %s169, 54
      %s171 = smul.addr %s170, 8
      %s172 = scalar_lea.vmem %s0, %s171
      %p173 = scmp.lt.s32.totalorder %s15, 1
      %s174 = scalar_select %p173, %s15, 1
      %s175 = smul.addr %s174, 32
      %s176 = smul.addr %s175, 8
      %s177 = scalar_lea.vmem %s2, %s176
      %p178 = scmp.lt.s32.totalorder %s15, 1
      %s179 = scalar_select %p178, %s15, 1
      %s180 = smul.addr %s179, 2
      %s181 = scalar_lea.vmem %s3, %s180
      %v183 = vld [vmem:[%s172] sm:$0xff]
      %v184 = vld [vmem:[%s172 + $0x8] sm:$0xff]
      %v185 = vld [vmem:[%s172 + $0x10] sm:$0x3]
      %v186 = vld [vmem:[%s172 + $0x18] sm:$0xff]
      %v187 = vld [vmem:[%s172 + $0x20] sm:$0xff]
      %v188 = vld [vmem:[%s172 + $0x28] sm:$0x3]
      %v189 = vld [vmem:[%s172 + $0x30] sm:$0xff]
      %v190 = vld [vmem:[%s172 + $0x38] sm:$0xff]
      %v191 = vld [vmem:[%s172 + $0x40] sm:$0x3]
      %v192 = vld [vmem:[%s172 + $0x48] sm:$0xff]
      %v193 = vld [vmem:[%s172 + $0x50] sm:$0xff]
      %v194 = vld [vmem:[%s172 + $0x58] sm:$0x3]
      %v195 = vld [vmem:[%s172 + $0x60] sm:$0xff]
      %v196 = vld [vmem:[%s172 + $0x68] sm:$0xff]
      %v197 = vld [vmem:[%s172 + $0x70] sm:$0x3]
      %v198 = vld [vmem:[%s172 + $0x78] sm:$0xff]
      %v199 = vld [vmem:[%s172 + $0x80] sm:$0xff]
      %v200 = vld [vmem:[%s172 + $0x88] sm:$0x3]
      %v201 = vld [vmem:[%s172 + $0x90] sm:$0xff]
      %v202 = vld [vmem:[%s172 + $0x98] sm:$0xff]
      %v203 = vld [vmem:[%s172 + $0xa0] sm:$0x3]
      %v204 = vld [vmem:[%s172 + $0xa8] sm:$0xff]
      %v205 = vld [vmem:[%s172 + $0xb0] sm:$0xff]
      %v206 = vld [vmem:[%s172 + $0xb8] sm:$0x3]
      %v207 = vld [vmem:[%s172 + $0xc0] sm:$0xff]
      %v208 = vld [vmem:[%s172 + $0xc8] sm:$0xff]
      %v209 = vld [vmem:[%s172 + $0xd0] sm:$0x3]
      %v210 = vld [vmem:[%s172 + $0xd8] sm:$0xff]
      %v211 = vld [vmem:[%s172 + $0xe0] sm:$0xff]
      %v212 = vld [vmem:[%s172 + $0xe8] sm:$0x3]
      %v213 = vld [vmem:[%s172 + $0xf0] sm:$0xff]
      %v214 = vld [vmem:[%s172 + $0xf8] sm:$0xff]
      %v215 = vld [vmem:[%s172 + $0x100] sm:$0x3]
      %v216 = vld [vmem:[%s172 + $0x108] sm:$0xff]
      %v217 = vld [vmem:[%s172 + $0x110] sm:$0xff]
      %v218 = vld [vmem:[%s172 + $0x118] sm:$0x3]
      %v219 = vld [vmem:[%s172 + $0x120] sm:$0xff]
      %v220 = vld [vmem:[%s172 + $0x128] sm:$0xff]
      %v221 = vld [vmem:[%s172 + $0x130] sm:$0x3]
      %v222 = vld [vmem:[%s172 + $0x138] sm:$0xff]
      %v223 = vld [vmem:[%s172 + $0x140] sm:$0xff]
      %v224 = vld [vmem:[%s172 + $0x148] sm:$0x3]
      %v225 = vld [vmem:[%s172 + $0x150] sm:$0xff]
      %v226 = vld [vmem:[%s172 + $0x158] sm:$0xff]
      %v227 = vld [vmem:[%s172 + $0x160] sm:$0x3]
      %v228 = vld [vmem:[%s172 + $0x168] sm:$0xff]
      %v229 = vld [vmem:[%s172 + $0x170] sm:$0xff]
      %v230 = vld [vmem:[%s172 + $0x178] sm:$0x3]
      %v231 = vld [vmem:[%s172 + $0x180] sm:$0xff]
      %v232 = vld [vmem:[%s172 + $0x188] sm:$0xff]
      %v233 = vld [vmem:[%s172 + $0x190] sm:$0x3]
      %v234 = vld [vmem:[%s172 + $0x198] sm:$0xff]
      %v235 = vld [vmem:[%s172 + $0x1a0] sm:$0xff]
      %v236 = vld [vmem:[%s172 + $0x1a8] sm:$0x3]
      %v237 = vpack.c.bf16 %v184, %v183
      %v238 = vpack.c.bf16 %v187, %v186
      %v239 = vpack.c.bf16 %v190, %v189
      %v240 = vpack.c.bf16 %v193, %v192
      %v241 = vpack.c.bf16 %v196, %v195
      %v242 = vpack.c.bf16 %v199, %v198
      %v243 = vpack.c.bf16 %v202, %v201
      %v244 = vpack.c.bf16 %v205, %v204
      %v245 = vpack.c.bf16 %v208, %v207
      %v246 = vpack.c.bf16 %v211, %v210
      %v247 = vpack.c.bf16 %v214, %v213
      %v248 = vpack.c.bf16 %v217, %v216
      %v249 = vpack.c.bf16 %v220, %v219
      %v250 = vpack.c.bf16 %v223, %v222
      %v251 = vpack.c.bf16 %v226, %v225
      %v252 = vpack.c.bf16 %v229, %v228
      %v253 = vld [vmem:[%s1] sm:$0xf]
      %vm302 = vcmask 1046528
      %v303 = vrot.slane %v183, 1
      %v304 = vrot.slane %v184, 1
      %v305 = vsel %vm302, %v303, %v304
      %v306 = vrot.slane %v185, 1
      %v307 = vsel %vm302, %v304, %v306
      %v308 = vrot.slane %v186, 1
      %v309 = vrot.slane %v187, 1
      %v310 = vsel %vm302, %v308, %v309
      %v311 = vrot.slane %v188, 1
      %v312 = vsel %vm302, %v309, %v311
      %v313 = vrot.slane %v189, 1
      %v314 = vrot.slane %v190, 1
      %v315 = vsel %vm302, %v313, %v314
      %v316 = vrot.slane %v191, 1
      %v317 = vsel %vm302, %v314, %v316
      %v318 = vrot.slane %v192, 1
      %v319 = vrot.slane %v193, 1
      %v320 = vsel %vm302, %v318, %v319
      %v321 = vrot.slane %v194, 1
      %v322 = vsel %vm302, %v319, %v321
      %v323 = vrot.slane %v195, 1
      %v324 = vrot.slane %v196, 1
      %v325 = vsel %vm302, %v323, %v324
      %v326 = vrot.slane %v197, 1
      %v327 = vsel %vm302, %v324, %v326
      %v328 = vrot.slane %v198, 1
      %v329 = vrot.slane %v199, 1
      %v330 = vsel %vm302, %v328, %v329
      %v331 = vrot.slane %v200, 1
      %v332 = vsel %vm302, %v329, %v331
      %v333 = vrot.slane %v201, 1
      %v334 = vrot.slane %v202, 1
      %v335 = vsel %vm302, %v333, %v334
      %v336 = vrot.slane %v203, 1
      %v337 = vsel %vm302, %v334, %v336
      %v338 = vrot.slane %v204, 1
      %v339 = vrot.slane %v205, 1
      %v340 = vsel %vm302, %v338, %v339
      %v341 = vrot.slane %v206, 1
      %v342 = vsel %vm302, %v339, %v341
      %v343 = vrot.slane %v207, 1
      %v344 = vrot.slane %v208, 1
      %v345 = vsel %vm302, %v343, %v344
      %v346 = vrot.slane %v209, 1
      %v347 = vsel %vm302, %v344, %v346
      %v348 = vrot.slane %v210, 1
      %v349 = vrot.slane %v211, 1
      %v350 = vsel %vm302, %v348, %v349
      %v351 = vrot.slane %v212, 1
      %v352 = vsel %vm302, %v349, %v351
      %v353 = vrot.slane %v213, 1
      %v354 = vrot.slane %v214, 1
      %v355 = vsel %vm302, %v353, %v354
      %v356 = vrot.slane %v215, 1
      %v357 = vsel %vm302, %v354, %v356
      %v358 = vrot.slane %v216, 1
      %v359 = vrot.slane %v217, 1
      %v360 = vsel %vm302, %v358, %v359
      %v361 = vrot.slane %v218, 1
      %v362 = vsel %vm302, %v359, %v361
      %v363 = vrot.slane %v219, 1
      %v364 = vrot.slane %v220, 1
      %v365 = vsel %vm302, %v363, %v364
      %v366 = vrot.slane %v221, 1
      %v367 = vsel %vm302, %v364, %v366
      %v368 = vrot.slane %v222, 1
      %v369 = vrot.slane %v223, 1
      %v370 = vsel %vm302, %v368, %v369
      %v371 = vrot.slane %v224, 1
      %v372 = vsel %vm302, %v369, %v371
      %v373 = vrot.slane %v225, 1
      %v374 = vrot.slane %v226, 1
      %v375 = vsel %vm302, %v373, %v374
      %v376 = vrot.slane %v227, 1
      %v377 = vsel %vm302, %v374, %v376
      %v378 = vrot.slane %v228, 1
      %v379 = vrot.slane %v229, 1
      %v380 = vsel %vm302, %v378, %v379
      %v381 = vrot.slane %v230, 1
      %v382 = vsel %vm302, %v379, %v381
      %v415 = vpack.c.bf16 %v307, %v305
      %v416 = vpack.c.bf16 %v312, %v310
      %v417 = vpack.c.bf16 %v317, %v315
      %v418 = vpack.c.bf16 %v322, %v320
      %v419 = vpack.c.bf16 %v327, %v325
      %v420 = vpack.c.bf16 %v332, %v330
      %v421 = vpack.c.bf16 %v337, %v335
      %v422 = vpack.c.bf16 %v342, %v340
      %v423 = vpack.c.bf16 %v347, %v345
      %v424 = vpack.c.bf16 %v352, %v350
      %v425 = vpack.c.bf16 %v357, %v355
      %v426 = vpack.c.bf16 %v362, %v360
      %v427 = vpack.c.bf16 %v367, %v365
      %v428 = vpack.c.bf16 %v372, %v370
      %v429 = vpack.c.bf16 %v377, %v375
      %v430 = vpack.c.bf16 %v382, %v380
      %s431 = scalar_lea.vmem %s1, 4
      %v432 = vld [vmem:[%s431] sm:$0xf]
      %vm433 = vcmask 64512
      %v435 = vsel %vm433, %v415, 0
      %v438 = vsel %vm433, %v416, 0
      %v441 = vsel %vm433, %v417, 0
      %v444 = vsel %vm433, %v418, 0
      %v447 = vsel %vm433, %v419, 0
      %v450 = vsel %vm433, %v420, 0
      %v453 = vsel %vm433, %v421, 0
      %v456 = vsel %vm433, %v422, 0
      %v459 = vsel %vm433, %v423, 0
      %v462 = vsel %vm433, %v424, 0
      %v465 = vsel %vm433, %v425, 0
      %v468 = vsel %vm433, %v426, 0
      %v471 = vsel %vm433, %v427, 0
      %v474 = vsel %vm433, %v428, 0
      %v477 = vsel %vm433, %v429, 0
      %v480 = vsel %vm433, %v430, 0
      %vm482 = vcmask 1043456
      %v484 = vsel %vm482, %v432, 0
      %486 = vmatprep.subr.bf16.mxu0 0
      %487 = vmatpush1.bf16.msra.mxu0 %v484
      %488 = vmatprep.subr.bf16.mxu0 0
      %489 = vmatpush1.bf16.msra.mxu0 0
      %490 = vmatprep.subr.bf16.mxu0 0
      %491 = vmatpush1.bf16.msra.mxu0 0
      %492 = vmatprep.subr.bf16.mxu0 0
      %493 = vmatpush1.bf16.msra.mxu0 0
      %494 = vmatprep.subr.bf16.mxu0 0
      %495 = vmatpush1.bf16.msra.mxu0 0
      %496 = vmatprep.subr.bf16.mxu0 0
      %497 = vmatpush1.bf16.msra.mxu0 0
      %498 = vmatprep.subr.bf16.mxu0 0
      %499 = vmatpush1.bf16.msra.mxu0 0
      %500 = vmatprep.subr.bf16.mxu0 0
      %501 = vmatpush1.bf16.msra.mxu0 0
      %502 = vmatprep.subr.bf16.mxu0 0
      %503 = vmatpush1.bf16.msra.mxu0 0
      %504 = vmatprep.subr.bf16.mxu0 0
      %505 = vmatpush1.bf16.msra.mxu0 0
      %506 = vmatprep.subr.bf16.mxu0 0
      %507 = vmatpush1.bf16.msra.mxu0 0
      %508 = vmatprep.subr.bf16.mxu0 0
      %509 = vmatpush1.bf16.msra.mxu0 0
      %510 = vmatprep.subr.bf16.mxu0 0
      %511 = vmatpush1.bf16.msra.mxu0 0
      %512 = vmatprep.subr.bf16.mxu0 0
      %513 = vmatpush1.bf16.msra.mxu0 0
      %514 = vmatprep.subr.bf16.mxu0 0
      %515 = vmatpush1.bf16.msra.mxu0 0
      %516 = vmatprep.subr.bf16.mxu0 0
      %517 = vmatpush1.bf16.msra.mxu0 0
      %518 = vmatprep.mubr.bf16.mxu0 0
      %519 = vmatmul.mubr.bf16.gmra.mrb[0].mxu0 %v435
      %v520 = vpop.f32.mrb[0].mxu0
      %v521 = vadd.f32 0.0, %v520
      %v522 = vpop.f32.mrb[0].mxu0
      %v523 = vpop.f32.mrb[0].mxu0
      %v524 = vadd.f32 0.0, %v523
      %v525 = vpop.f32.mrb[0].mxu0
      %526 = vmatprep.mubr.bf16.mxu0 0
      %527 = vmatmul.mubr.bf16.gmra.mrb[0].mxu0 %v438
      %v528 = vpop.f32.mrb[0].mxu0
      %v529 = vadd.f32 0.0, %v528
      %v530 = vpop.f32.mrb[0].mxu0
      %v531 = vpop.f32.mrb[0].mxu0
      %v532 = vadd.f32 0.0, %v531
      %v533 = vpop.f32.mrb[0].mxu0
      %534 = vmatprep.mubr.bf16.mxu0 0
      %535 = vmatmul.mubr.bf16.gmra.mrb[0].mxu0 %v441
      %v536 = vpop.f32.mrb[0].mxu0
      %v537 = vadd.f32 0.0, %v536
      %v538 = vpop.f32.mrb[0].mxu0
      %v539 = vpop.f32.mrb[0].mxu0
      %v540 = vadd.f32 0.0, %v539
      %v541 = vpop.f32.mrb[0].mxu0
      %542 = vmatprep.mubr.bf16.mxu0 0
      %543 = vmatmul.mubr.bf16.gmra.mrb[0].mxu0 %v444
      %v544 = vpop.f32.mrb[0].mxu0
      %v545 = vadd.f32 0.0, %v544
      %v546 = vpop.f32.mrb[0].mxu0
      %v547 = vpop.f32.mrb[0].mxu0
      %v548 = vadd.f32 0.0, %v547
      %v549 = vpop.f32.mrb[0].mxu0
      %550 = vmatprep.mubr.bf16.mxu0 0
      %551 = vmatmul.mubr.bf16.gmra.mrb[0].mxu0 %v447
      %v552 = vpop.f32.mrb[0].mxu0
      %v553 = vadd.f32 0.0, %v552
      %v554 = vpop.f32.mrb[0].mxu0
      %v555 = vpop.f32.mrb[0].mxu0
      %v556 = vadd.f32 0.0, %v555
      %v557 = vpop.f32.mrb[0].mxu0
      %558 = vmatprep.mubr.bf16.mxu0 0
      %559 = vmatmul.mubr.bf16.gmra.mrb[0].mxu0 %v450
      %v560 = vpop.f32.mrb[0].mxu0
      %v561 = vadd.f32 0.0, %v560
      %v562 = vpop.f32.mrb[0].mxu0
      %v563 = vpop.f32.mrb[0].mxu0
      %v564 = vadd.f32 0.0, %v563
      %v565 = vpop.f32.mrb[0].mxu0
      %566 = vmatprep.mubr.bf16.mxu0 0
      %567 = vmatmul.mubr.bf16.gmra.mrb[0].mxu0 %v453
      %v568 = vpop.f32.mrb[0].mxu0
      %v569 = vadd.f32 0.0, %v568
      %v570 = vpop.f32.mrb[0].mxu0
      %v571 = vpop.f32.mrb[0].mxu0
      %v572 = vadd.f32 0.0, %v571
      %v573 = vpop.f32.mrb[0].mxu0
      %574 = vmatprep.mubr.bf16.mxu0 0
      %575 = vmatmul.mubr.bf16.gmra.mrb[0].mxu0 %v456
      %v576 = vpop.f32.mrb[0].mxu0
      %v577 = vadd.f32 0.0, %v576
      %v578 = vpop.f32.mrb[0].mxu0
      %v579 = vpop.f32.mrb[0].mxu0
      %v580 = vadd.f32 0.0, %v579
      %v581 = vpop.f32.mrb[0].mxu0
      %582 = vmatprep.mubr.bf16.mxu0 0
      %583 = vmatmul.mubr.bf16.gmra.mrb[0].mxu0 %v459
      %v584 = vpop.f32.mrb[0].mxu0
      %v585 = vadd.f32 0.0, %v584
      %v586 = vpop.f32.mrb[0].mxu0
      %v587 = vpop.f32.mrb[0].mxu0
      %v588 = vadd.f32 0.0, %v587
      %v589 = vpop.f32.mrb[0].mxu0
      %590 = vmatprep.mubr.bf16.mxu0 0
      %591 = vmatmul.mubr.bf16.gmra.mrb[0].mxu0 %v462
      %v592 = vpop.f32.mrb[0].mxu0
      %v593 = vadd.f32 0.0, %v592
      %v594 = vpop.f32.mrb[0].mxu0
      %v595 = vpop.f32.mrb[0].mxu0
      %v596 = vadd.f32 0.0, %v595
      %v597 = vpop.f32.mrb[0].mxu0
      %598 = vmatprep.mubr.bf16.mxu0 0
      %599 = vmatmul.mubr.bf16.gmra.mrb[0].mxu0 %v465
      %v600 = vpop.f32.mrb[0].mxu0
      %v601 = vadd.f32 0.0, %v600
      %v602 = vpop.f32.mrb[0].mxu0
      %v603 = vpop.f32.mrb[0].mxu0
      %v604 = vadd.f32 0.0, %v603
      %v605 = vpop.f32.mrb[0].mxu0
      %606 = vmatprep.mubr.bf16.mxu0 0
      %607 = vmatmul.mubr.bf16.gmra.mrb[0].mxu0 %v468
      %v608 = vpop.f32.mrb[0].mxu0
      %v609 = vadd.f32 0.0, %v608
      %v610 = vpop.f32.mrb[0].mxu0
      %v611 = vpop.f32.mrb[0].mxu0
      %v612 = vadd.f32 0.0, %v611
      %v613 = vpop.f32.mrb[0].mxu0
      %614 = vmatprep.mubr.bf16.mxu0 0
      %615 = vmatmul.mubr.bf16.gmra.mrb[0].mxu0 %v471
      %v616 = vpop.f32.mrb[0].mxu0
      %v617 = vadd.f32 0.0, %v616
      %v618 = vpop.f32.mrb[0].mxu0
      %v619 = vpop.f32.mrb[0].mxu0
      %v620 = vadd.f32 0.0, %v619
      %v621 = vpop.f32.mrb[0].mxu0
      %622 = vmatprep.mubr.bf16.mxu0 0
      %623 = vmatmul.mubr.bf16.gmra.mrb[0].mxu0 %v474
      %v624 = vpop.f32.mrb[0].mxu0
      %v625 = vadd.f32 0.0, %v624
      %v626 = vpop.f32.mrb[0].mxu0
      %v627 = vpop.f32.mrb[0].mxu0
      %v628 = vadd.f32 0.0, %v627
      %v629 = vpop.f32.mrb[0].mxu0
      %630 = vmatprep.mubr.bf16.mxu0 0
      %631 = vmatmul.mubr.bf16.gmra.mrb[0].mxu0 %v477
      %v632 = vpop.f32.mrb[0].mxu0
      %v633 = vadd.f32 0.0, %v632
      %v634 = vpop.f32.mrb[0].mxu0
      %v635 = vpop.f32.mrb[0].mxu0
      %v636 = vadd.f32 0.0, %v635
      %v637 = vpop.f32.mrb[0].mxu0
      %638 = vmatprep.mubr.bf16.mxu0 0
      %639 = vmatmul.mubr.bf16.gmra.mrb[0].mxu0 %v480
      %v640 = vpop.f32.mrb[0].mxu0
      %v641 = vadd.f32 0.0, %v640
      %v642 = vpop.f32.mrb[0].mxu0
      %v643 = vpop.f32.mrb[0].mxu0
      %v644 = vadd.f32 0.0, %v643
      %v645 = vpop.f32.mrb[0].mxu0
      %646 = vdwg.mxu0
      %v648 = vsel %vm433, %v237, 0
      %v651 = vsel %vm433, %v238, 0
      %v654 = vsel %vm433, %v239, 0
      %v657 = vsel %vm433, %v240, 0
      %v660 = vsel %vm433, %v241, 0
      %v663 = vsel %vm433, %v242, 0
      %v666 = vsel %vm433, %v243, 0
      %v669 = vsel %vm433, %v244, 0
      %v672 = vsel %vm433, %v245, 0
      %v675 = vsel %vm433, %v246, 0
      %v678 = vsel %vm433, %v247, 0
      %v681 = vsel %vm433, %v248, 0
      %v684 = vsel %vm433, %v249, 0
      %v687 = vsel %vm433, %v250, 0
      %v690 = vsel %vm433, %v251, 0
      %v693 = vsel %vm433, %v252, 0
      %v696 = vsel %vm482, %v253, 0
      %698 = vmatprep.subr.bf16.mxu0 0
      %699 = vmatpush1.bf16.msra.mxu0 %v696
      %700 = vmatprep.subr.bf16.mxu0 0
      %701 = vmatpush1.bf16.msra.mxu0 0
      %702 = vmatprep.subr.bf16.mxu0 0
      %703 = vmatpush1.bf16.msra.mxu0 0
      %704 = vmatprep.subr.bf16.mxu0 0
      %705 = vmatpush1.bf16.msra.mxu0 0
      %706 = vmatprep.subr.bf16.mxu0 0
      %707 = vmatpush1.bf16.msra.mxu0 0
      %708 = vmatprep.subr.bf16.mxu0 0
      %709 = vmatpush1.bf16.msra.mxu0 0
      %710 = vmatprep.subr.bf16.mxu0 0
      %711 = vmatpush1.bf16.msra.mxu0 0
      %712 = vmatprep.subr.bf16.mxu0 0
      %713 = vmatpush1.bf16.msra.mxu0 0
      %714 = vmatprep.subr.bf16.mxu0 0
      %715 = vmatpush1.bf16.msra.mxu0 0
      %716 = vmatprep.subr.bf16.mxu0 0
      %717 = vmatpush1.bf16.msra.mxu0 0
      %718 = vmatprep.subr.bf16.mxu0 0
      %719 = vmatpush1.bf16.msra.mxu0 0
      %720 = vmatprep.subr.bf16.mxu0 0
      %721 = vmatpush1.bf16.msra.mxu0 0
      %722 = vmatprep.subr.bf16.mxu0 0
      %723 = vmatpush1.bf16.msra.mxu0 0
      %724 = vmatprep.subr.bf16.mxu0 0
      %725 = vmatpush1.bf16.msra.mxu0 0
      %726 = vmatprep.subr.bf16.mxu0 0
      %727 = vmatpush1.bf16.msra.mxu0 0
      %728 = vmatprep.subr.bf16.mxu0 0
      %729 = vmatpush1.bf16.msra.mxu0 0
      %730 = vmatprep.mubr.bf16.mxu0 0
      %731 = vmatmul.mubr.bf16.gmra.mrb[0].mxu0 %v648
      %v732 = vpop.f32.mrb[0].mxu0
      %v733 = vadd.f32 %v521, %v732
      %v734 = vpop.f32.mrb[0].mxu0
      %v735 = vpop.f32.mrb[0].mxu0
      %v736 = vadd.f32 %v524, %v735
      %v737 = vpop.f32.mrb[0].mxu0
      %738 = vmatprep.mubr.bf16.mxu0 0
      %739 = vmatmul.mubr.bf16.gmra.mrb[0].mxu0 %v651
      %v740 = vpop.f32.mrb[0].mxu0
      %v741 = vadd.f32 %v529, %v740
      %v742 = vpop.f32.mrb[0].mxu0
      %v743 = vpop.f32.mrb[0].mxu0
      %v744 = vadd.f32 %v532, %v743
      %v745 = vpop.f32.mrb[0].mxu0
      %746 = vmatprep.mubr.bf16.mxu0 0
      %747 = vmatmul.mubr.bf16.gmra.mrb[0].mxu0 %v654
      %v748 = vpop.f32.mrb[0].mxu0
      %v749 = vadd.f32 %v537, %v748
      %v750 = vpop.f32.mrb[0].mxu0
      %v751 = vpop.f32.mrb[0].mxu0
      %v752 = vadd.f32 %v540, %v751
      %v753 = vpop.f32.mrb[0].mxu0
      %754 = vmatprep.mubr.bf16.mxu0 0
      %755 = vmatmul.mubr.bf16.gmra.mrb[0].mxu0 %v657
      %v756 = vpop.f32.mrb[0].mxu0
      %v757 = vadd.f32 %v545, %v756
      %v758 = vpop.f32.mrb[0].mxu0
      %v759 = vpop.f32.mrb[0].mxu0
      %v760 = vadd.f32 %v548, %v759
      %v761 = vpop.f32.mrb[0].mxu0
      %762 = vmatprep.mubr.bf16.mxu0 0
      %763 = vmatmul.mubr.bf16.gmra.mrb[0].mxu0 %v660
      %v764 = vpop.f32.mrb[0].mxu0
      %v765 = vadd.f32 %v553, %v764
      %v766 = vpop.f32.mrb[0].mxu0
      %v767 = vpop.f32.mrb[0].mxu0
      %v768 = vadd.f32 %v556, %v767
      %v769 = vpop.f32.mrb[0].mxu0
      %770 = vmatprep.mubr.bf16.mxu0 0
      %771 = vmatmul.mubr.bf16.gmra.mrb[0].mxu0 %v663
      %v772 = vpop.f32.mrb[0].mxu0
      %v773 = vadd.f32 %v561, %v772
      %v774 = vpop.f32.mrb[0].mxu0
      %v775 = vpop.f32.mrb[0].mxu0
      %v776 = vadd.f32 %v564, %v775
      %v777 = vpop.f32.mrb[0].mxu0
      %778 = vmatprep.mubr.bf16.mxu0 0
      %779 = vmatmul.mubr.bf16.gmra.mrb[0].mxu0 %v666
      %v780 = vpop.f32.mrb[0].mxu0
      %v781 = vadd.f32 %v569, %v780
      %v782 = vpop.f32.mrb[0].mxu0
      %v783 = vpop.f32.mrb[0].mxu0
      %v784 = vadd.f32 %v572, %v783
      %v785 = vpop.f32.mrb[0].mxu0
      %786 = vmatprep.mubr.bf16.mxu0 0
      %787 = vmatmul.mubr.bf16.gmra.mrb[0].mxu0 %v669
      %v788 = vpop.f32.mrb[0].mxu0
      %v789 = vadd.f32 %v577, %v788
      %v790 = vpop.f32.mrb[0].mxu0
      %v791 = vpop.f32.mrb[0].mxu0
      %v792 = vadd.f32 %v580, %v791
      %v793 = vpop.f32.mrb[0].mxu0
      %794 = vmatprep.mubr.bf16.mxu0 0
      %795 = vmatmul.mubr.bf16.gmra.mrb[0].mxu0 %v672
      %v796 = vpop.f32.mrb[0].mxu0
      %v797 = vadd.f32 %v585, %v796
      %v798 = vpop.f32.mrb[0].mxu0
      %v799 = vpop.f32.mrb[0].mxu0
      %v800 = vadd.f32 %v588, %v799
      %v801 = vpop.f32.mrb[0].mxu0
      %802 = vmatprep.mubr.bf16.mxu0 0
      %803 = vmatmul.mubr.bf16.gmra.mrb[0].mxu0 %v675
      %v804 = vpop.f32.mrb[0].mxu0
      %v805 = vadd.f32 %v593, %v804
      %v806 = vpop.f32.mrb[0].mxu0
      %v807 = vpop.f32.mrb[0].mxu0
      %v808 = vadd.f32 %v596, %v807
      %v809 = vpop.f32.mrb[0].mxu0
      %810 = vmatprep.mubr.bf16.mxu0 0
      %811 = vmatmul.mubr.bf16.gmra.mrb[0].mxu0 %v678
      %v812 = vpop.f32.mrb[0].mxu0
      %v813 = vadd.f32 %v601, %v812
      %v814 = vpop.f32.mrb[0].mxu0
      %v815 = vpop.f32.mrb[0].mxu0
      %v816 = vadd.f32 %v604, %v815
      %v817 = vpop.f32.mrb[0].mxu0
      %818 = vmatprep.mubr.bf16.mxu0 0
      %819 = vmatmul.mubr.bf16.gmra.mrb[0].mxu0 %v681
      %v820 = vpop.f32.mrb[0].mxu0
      %v821 = vadd.f32 %v609, %v820
      %v822 = vpop.f32.mrb[0].mxu0
      %v823 = vpop.f32.mrb[0].mxu0
      %v824 = vadd.f32 %v612, %v823
      %v825 = vpop.f32.mrb[0].mxu0
      %826 = vmatprep.mubr.bf16.mxu0 0
      %827 = vmatmul.mubr.bf16.gmra.mrb[0].mxu0 %v684
      %v828 = vpop.f32.mrb[0].mxu0
      %v829 = vadd.f32 %v617, %v828
      %v830 = vpop.f32.mrb[0].mxu0
      %v831 = vpop.f32.mrb[0].mxu0
      %v832 = vadd.f32 %v620, %v831
      %v833 = vpop.f32.mrb[0].mxu0
      %834 = vmatprep.mubr.bf16.mxu0 0
      %835 = vmatmul.mubr.bf16.gmra.mrb[0].mxu0 %v687
      %v836 = vpop.f32.mrb[0].mxu0
      %v837 = vadd.f32 %v625, %v836
      %v838 = vpop.f32.mrb[0].mxu0
      %v839 = vpop.f32.mrb[0].mxu0
      %v840 = vadd.f32 %v628, %v839
      %v841 = vpop.f32.mrb[0].mxu0
      %842 = vmatprep.mubr.bf16.mxu0 0
      %843 = vmatmul.mubr.bf16.gmra.mrb[0].mxu0 %v690
      %v844 = vpop.f32.mrb[0].mxu0
      %v845 = vadd.f32 %v633, %v844
      %v846 = vpop.f32.mrb[0].mxu0
      %v847 = vpop.f32.mrb[0].mxu0
      %v848 = vadd.f32 %v636, %v847
      %v849 = vpop.f32.mrb[0].mxu0
      %850 = vmatprep.mubr.bf16.mxu0 0
      %851 = vmatmul.mubr.bf16.gmra.mrb[0].mxu0 %v693
      %v852 = vpop.f32.mrb[0].mxu0
      %v853 = vadd.f32 %v641, %v852
      %v854 = vpop.f32.mrb[0].mxu0
      %v855 = vpop.f32.mrb[0].mxu0
      %v856 = vadd.f32 %v644, %v855
      %v857 = vpop.f32.mrb[0].mxu0
      %858 = vdwg.mxu0
      %vm859 = vcmask 1045504
      %v860 = vrot.slane %v183, 2
      %v861 = vrot.slane %v184, 2
      %v862 = vsel %vm859, %v860, %v861
      %v863 = vrot.slane %v185, 2
      %v864 = vsel %vm859, %v861, %v863
      %v865 = vrot.slane %v186, 2
      %v866 = vrot.slane %v187, 2
      %v867 = vsel %vm859, %v865, %v866
      %v868 = vrot.slane %v188, 2
      %v869 = vsel %vm859, %v866, %v868
      %v870 = vrot.slane %v189, 2
      %v871 = vrot.slane %v190, 2
      %v872 = vsel %vm859, %v870, %v871
      %v873 = vrot.slane %v191, 2
      %v874 = vsel %vm859, %v871, %v873
      %v875 = vrot.slane %v192, 2
      %v876 = vrot.slane %v193, 2
      %v877 = vsel %vm859, %v875, %v876
      %v878 = vrot.slane %v194, 2
      %v879 = vsel %vm859, %v876, %v878
      %v880 = vrot.slane %v195, 2
      %v881 = vrot.slane %v196, 2
      %v882 = vsel %vm859, %v880, %v881
      %v883 = vrot.slane %v197, 2
      %v884 = vsel %vm859, %v881, %v883
      %v885 = vrot.slane %v198, 2
      %v886 = vrot.slane %v199, 2
      %v887 = vsel %vm859, %v885, %v886
      %v888 = vrot.slane %v200, 2
      %v889 = vsel %vm859, %v886, %v888
      %v890 = vrot.slane %v201, 2
      %v891 = vrot.slane %v202, 2
      %v892 = vsel %vm859, %v890, %v891
      %v893 = vrot.slane %v203, 2
      %v894 = vsel %vm859, %v891, %v893
      %v895 = vrot.slane %v204, 2
      %v896 = vrot.slane %v205, 2
      %v897 = vsel %vm859, %v895, %v896
      %v898 = vrot.slane %v206, 2
      %v899 = vsel %vm859, %v896, %v898
      %v900 = vrot.slane %v207, 2
      %v901 = vrot.slane %v208, 2
      %v902 = vsel %vm859, %v900, %v901
      %v903 = vrot.slane %v209, 2
      %v904 = vsel %vm859, %v901, %v903
      %v905 = vrot.slane %v210, 2
      %v906 = vrot.slane %v211, 2
      %v907 = vsel %vm859, %v905, %v906
      %v908 = vrot.slane %v212, 2
      %v909 = vsel %vm859, %v906, %v908
      %v910 = vrot.slane %v213, 2
      %v911 = vrot.slane %v214, 2
      %v912 = vsel %vm859, %v910, %v911
      %v913 = vrot.slane %v215, 2
      %v914 = vsel %vm859, %v911, %v913
      %v915 = vrot.slane %v216, 2
      %v916 = vrot.slane %v217, 2
      %v917 = vsel %vm859, %v915, %v916
      %v918 = vrot.slane %v218, 2
      %v919 = vsel %vm859, %v916, %v918
      %v920 = vrot.slane %v219, 2
      %v921 = vrot.slane %v220, 2
      %v922 = vsel %vm859, %v920, %v921
      %v923 = vrot.slane %v221, 2
      %v924 = vsel %vm859, %v921, %v923
      %v925 = vrot.slane %v222, 2
      %v926 = vrot.slane %v223, 2
      %v927 = vsel %vm859, %v925, %v926
      %v928 = vrot.slane %v224, 2
      %v929 = vsel %vm859, %v926, %v928
      %v930 = vrot.slane %v225, 2
      %v931 = vrot.slane %v226, 2
      %v932 = vsel %vm859, %v930, %v931
      %v933 = vrot.slane %v227, 2
      %v934 = vsel %vm859, %v931, %v933
      %v935 = vrot.slane %v228, 2
      %v936 = vrot.slane %v229, 2
      %v937 = vsel %vm859, %v935, %v936
      %v938 = vrot.slane %v230, 2
      %v939 = vsel %vm859, %v936, %v938
      %v972 = vpack.c.bf16 %v864, %v862
      %v973 = vpack.c.bf16 %v869, %v867
      %v974 = vpack.c.bf16 %v874, %v872
      %v975 = vpack.c.bf16 %v879, %v877
      %v976 = vpack.c.bf16 %v884, %v882
      %v977 = vpack.c.bf16 %v889, %v887
      %v978 = vpack.c.bf16 %v894, %v892
      %v979 = vpack.c.bf16 %v899, %v897
      %v980 = vpack.c.bf16 %v904, %v902
      %v981 = vpack.c.bf16 %v909, %v907
      %v982 = vpack.c.bf16 %v914, %v912
      %v983 = vpack.c.bf16 %v919, %v917
      %v984 = vpack.c.bf16 %v924, %v922
      %v985 = vpack.c.bf16 %v929, %v927
      %v986 = vpack.c.bf16 %v934, %v932
      %v987 = vpack.c.bf16 %v939, %v937
      %s988 = scalar_lea.vmem %s1, 8
      %v989 = vld [vmem:[%s988] sm:$0xf]
      %v991 = vsel %vm433, %v972, 0
      %v994 = vsel %vm433, %v973, 0
      %v997 = vsel %vm433, %v974, 0
      %v1000 = vsel %vm433, %v975, 0
      %v1003 = vsel %vm433, %v976, 0
      %v1006 = vsel %vm433, %v977, 0
      %v1009 = vsel %vm433, %v978, 0
      %v1012 = vsel %vm433, %v979, 0
      %v1015 = vsel %vm433, %v980, 0
      %v1018 = vsel %vm433, %v981, 0
      %v1021 = vsel %vm433, %v982, 0
      %v1024 = vsel %vm433, %v983, 0
      %v1027 = vsel %vm433, %v984, 0
      %v1030 = vsel %vm433, %v985, 0
      %v1033 = vsel %vm433, %v986, 0
      %v1036 = vsel %vm433, %v987, 0
      %v1039 = vsel %vm482, %v989, 0
      %1041 = vmatprep.subr.bf16.mxu0 0
      %1042 = vmatpush1.bf16.msra.mxu0 %v1039
      %1043 = vmatprep.subr.bf16.mxu0 0
      %1044 = vmatpush1.bf16.msra.mxu0 0
      %1045 = vmatprep.subr.bf16.mxu0 0
      %1046 = vmatpush1.bf16.msra.mxu0 0
      %1047 = vmatprep.subr.bf16.mxu0 0
      %1048 = vmatpush1.bf16.msra.mxu0 0
      %1049 = vmatprep.subr.bf16.mxu0 0
      %1050 = vmatpush1.bf16.msra.mxu0 0
      %1051 = vmatprep.subr.bf16.mxu0 0
      %1052 = vmatpush1.bf16.msra.mxu0 0
      %1053 = vmatprep.subr.bf16.mxu0 0
      %1054 = vmatpush1.bf16.msra.mxu0 0
      %1055 = vmatprep.subr.bf16.mxu0 0
      %1056 = vmatpush1.bf16.msra.mxu0 0
      %1057 = vmatprep.subr.bf16.mxu0 0
      %1058 = vmatpush1.bf16.msra.mxu0 0
      %1059 = vmatprep.subr.bf16.mxu0 0
      %1060 = vmatpush1.bf16.msra.mxu0 0
      %1061 = vmatprep.subr.bf16.mxu0 0
      %1062 = vmatpush1.bf16.msra.mxu0 0
      %1063 = vmatprep.subr.bf16.mxu0 0
      %1064 = vmatpush1.bf16.msra.mxu0 0
      %1065 = vmatprep.subr.bf16.mxu0 0
      %1066 = vmatpush1.bf16.msra.mxu0 0
      %1067 = vmatprep.subr.bf16.mxu0 0
      %1068 = vmatpush1.bf16.msra.mxu0 0
      %1069 = vmatprep.subr.bf16.mxu0 0
      %1070 = vmatpush1.bf16.msra.mxu0 0
      %1071 = vmatprep.subr.bf16.mxu0 0
      %1072 = vmatpush1.bf16.msra.mxu0 0
      %1073 = vmatprep.mubr.bf16.mxu0 0
      %1074 = vmatmul.mubr.bf16.gmra.mrb[0].mxu0 %v991
      %v1075 = vpop.f32.mrb[0].mxu0
      %v1076 = vadd.f32 0.0, %v1075
      %v1077 = vpop.f32.mrb[0].mxu0
      %v1078 = vpop.f32.mrb[0].mxu0
      %v1079 = vadd.f32 0.0, %v1078
      %v1080 = vpop.f32.mrb[0].mxu0
      %1081 = vmatprep.mubr.bf16.mxu0 0
      %1082 = vmatmul.mubr.bf16.gmra.mrb[0].mxu0 %v994
      %v1083 = vpop.f32.mrb[0].mxu0
      %v1084 = vadd.f32 0.0, %v1083
      %v1085 = vpop.f32.mrb[0].mxu0
      %v1086 = vpop.f32.mrb[0].mxu0
      %v1087 = vadd.f32 0.0, %v1086
      %v1088 = vpop.f32.mrb[0].mxu0
      %1089 = vmatprep.mubr.bf16.mxu0 0
      %1090 = vmatmul.mubr.bf16.gmra.mrb[0].mxu0 %v997
      %v1091 = vpop.f32.mrb[0].mxu0
      %v1092 = vadd.f32 0.0, %v1091
      %v1093 = vpop.f32.mrb[0].mxu0
      %v1094 = vpop.f32.mrb[0].mxu0
      %v1095 = vadd.f32 0.0, %v1094
      %v1096 = vpop.f32.mrb[0].mxu0
      %1097 = vmatprep.mubr.bf16.mxu0 0
      %1098 = vmatmul.mubr.bf16.gmra.mrb[0].mxu0 %v1000
      %v1099 = vpop.f32.mrb[0].mxu0
      %v1100 = vadd.f32 0.0, %v1099
      %v1101 = vpop.f32.mrb[0].mxu0
      %v1102 = vpop.f32.mrb[0].mxu0
      %v1103 = vadd.f32 0.0, %v1102
      %v1104 = vpop.f32.mrb[0].mxu0
      %1105 = vmatprep.mubr.bf16.mxu0 0
      %1106 = vmatmul.mubr.bf16.gmra.mrb[0].mxu0 %v1003
      %v1107 = vpop.f32.mrb[0].mxu0
      %v1108 = vadd.f32 0.0, %v1107
      %v1109 = vpop.f32.mrb[0].mxu0
      %v1110 = vpop.f32.mrb[0].mxu0
      %v1111 = vadd.f32 0.0, %v1110
      %v1112 = vpop.f32.mrb[0].mxu0
      %1113 = vmatprep.mubr.bf16.mxu0 0
      %1114 = vmatmul.mubr.bf16.gmra.mrb[0].mxu0 %v1006
      %v1115 = vpop.f32.mrb[0].mxu0
      %v1116 = vadd.f32 0.0, %v1115
      %v1117 = vpop.f32.mrb[0].mxu0
      %v1118 = vpop.f32.mrb[0].mxu0
      %v1119 = vadd.f32 0.0, %v1118
      %v1120 = vpop.f32.mrb[0].mxu0
      %1121 = vmatprep.mubr.bf16.mxu0 0
      %1122 = vmatmul.mubr.bf16.gmra.mrb[0].mxu0 %v1009
      %v1123 = vpop.f32.mrb[0].mxu0
      %v1124 = vadd.f32 0.0, %v1123
      %v1125 = vpop.f32.mrb[0].mxu0
      %v1126 = vpop.f32.mrb[0].mxu0
      %v1127 = vadd.f32 0.0, %v1126
      %v1128 = vpop.f32.mrb[0].mxu0
      %1129 = vmatprep.mubr.bf16.mxu0 0
      %1130 = vmatmul.mubr.bf16.gmra.mrb[0].mxu0 %v1012
      %v1131 = vpop.f32.mrb[0].mxu0
      %v1132 = vadd.f32 0.0, %v1131
      %v1133 = vpop.f32.mrb[0].mxu0
      %v1134 = vpop.f32.mrb[0].mxu0
      %v1135 = vadd.f32 0.0, %v1134
      %v1136 = vpop.f32.mrb[0].mxu0
      %1137 = vmatprep.mubr.bf16.mxu0 0
      %1138 = vmatmul.mubr.bf16.gmra.mrb[0].mxu0 %v1015
      %v1139 = vpop.f32.mrb[0].mxu0
      %v1140 = vadd.f32 0.0, %v1139
      %v1141 = vpop.f32.mrb[0].mxu0
      %v1142 = vpop.f32.mrb[0].mxu0
      %v1143 = vadd.f32 0.0, %v1142
      %v1144 = vpop.f32.mrb[0].mxu0
      %1145 = vmatprep.mubr.bf16.mxu0 0
      %1146 = vmatmul.mubr.bf16.gmra.mrb[0].mxu0 %v1018
      %v1147 = vpop.f32.mrb[0].mxu0
      %v1148 = vadd.f32 0.0, %v1147
      %v1149 = vpop.f32.mrb[0].mxu0
      %v1150 = vpop.f32.mrb[0].mxu0
      %v1151 = vadd.f32 0.0, %v1150
      %v1152 = vpop.f32.mrb[0].mxu0
      %1153 = vmatprep.mubr.bf16.mxu0 0
      %1154 = vmatmul.mubr.bf16.gmra.mrb[0].mxu0 %v1021
      %v1155 = vpop.f32.mrb[0].mxu0
      %v1156 = vadd.f32 0.0, %v1155
      %v1157 = vpop.f32.mrb[0].mxu0
      %v1158 = vpop.f32.mrb[0].mxu0
      %v1159 = vadd.f32 0.0, %v1158
      %v1160 = vpop.f32.mrb[0].mxu0
      %1161 = vmatprep.mubr.bf16.mxu0 0
      %1162 = vmatmul.mubr.bf16.gmra.mrb[0].mxu0 %v1024
      %v1163 = vpop.f32.mrb[0].mxu0
      %v1164 = vadd.f32 0.0, %v1163
      %v1165 = vpop.f32.mrb[0].mxu0
      %v1166 = vpop.f32.mrb[0].mxu0
      %v1167 = vadd.f32 0.0, %v1166
      %v1168 = vpop.f32.mrb[0].mxu0
      %1169 = vmatprep.mubr.bf16.mxu0 0
      %1170 = vmatmul.mubr.bf16.gmra.mrb[0].mxu0 %v1027
      %v1171 = vpop.f32.mrb[0].mxu0
      %v1172 = vadd.f32 0.0, %v1171
      %v1173 = vpop.f32.mrb[0].mxu0
      %v1174 = vpop.f32.mrb[0].mxu0
      %v1175 = vadd.f32 0.0, %v1174
      %v1176 = vpop.f32.mrb[0].mxu0
      %1177 = vmatprep.mubr.bf16.mxu0 0
      %1178 = vmatmul.mubr.bf16.gmra.mrb[0].mxu0 %v1030
      %v1179 = vpop.f32.mrb[0].mxu0
      %v1180 = vadd.f32 0.0, %v1179
      %v1181 = vpop.f32.mrb[0].mxu0
      %v1182 = vpop.f32.mrb[0].mxu0
      %v1183 = vadd.f32 0.0, %v1182
      %v1184 = vpop.f32.mrb[0].mxu0
      %1185 = vmatprep.mubr.bf16.mxu0 0
      %1186 = vmatmul.mubr.bf16.gmra.mrb[0].mxu0 %v1033
      %v1187 = vpop.f32.mrb[0].mxu0
      %v1188 = vadd.f32 0.0, %v1187
      %v1189 = vpop.f32.mrb[0].mxu0
      %v1190 = vpop.f32.mrb[0].mxu0
      %v1191 = vadd.f32 0.0, %v1190
      %v1192 = vpop.f32.mrb[0].mxu0
      %1193 = vmatprep.mubr.bf16.mxu0 0
      %1194 = vmatmul.mubr.bf16.gmra.mrb[0].mxu0 %v1036
      %v1195 = vpop.f32.mrb[0].mxu0
      %v1196 = vadd.f32 0.0, %v1195
      %v1197 = vpop.f32.mrb[0].mxu0
      %v1198 = vpop.f32.mrb[0].mxu0
      %v1199 = vadd.f32 0.0, %v1198
      %v1200 = vpop.f32.mrb[0].mxu0
      %1201 = vdwg.mxu0
      %v1202 = vadd.f32 %v733, %v1076
      %v1203 = vadd.f32 %v736, %v1079
      %v1204 = vadd.f32 %v741, %v1084
      %v1205 = vadd.f32 %v744, %v1087
      %v1206 = vadd.f32 %v749, %v1092
      %v1207 = vadd.f32 %v752, %v1095
      %v1208 = vadd.f32 %v757, %v1100
      %v1209 = vadd.f32 %v760, %v1103
      %v1210 = vadd.f32 %v765, %v1108
      %v1211 = vadd.f32 %v768, %v1111
      %v1212 = vadd.f32 %v773, %v1116
      %v1213 = vadd.f32 %v776, %v1119
      %v1214 = vadd.f32 %v781, %v1124
      %v1215 = vadd.f32 %v784, %v1127
      %v1216 = vadd.f32 %v789, %v1132
      %v1217 = vadd.f32 %v792, %v1135
      %v1218 = vadd.f32 %v797, %v1140
      %v1219 = vadd.f32 %v800, %v1143
      %v1220 = vadd.f32 %v805, %v1148
      %v1221 = vadd.f32 %v808, %v1151
      %v1222 = vadd.f32 %v813, %v1156
      %v1223 = vadd.f32 %v816, %v1159
      %v1224 = vadd.f32 %v821, %v1164
      %v1225 = vadd.f32 %v824, %v1167
      %v1226 = vadd.f32 %v829, %v1172
      %v1227 = vadd.f32 %v832, %v1175
      %v1228 = vadd.f32 %v837, %v1180
      %v1229 = vadd.f32 %v840, %v1183
      %v1230 = vadd.f32 %v845, %v1188
      %v1231 = vadd.f32 %v848, %v1191
      %v1232 = vadd.f32 %v853, %v1196
      %v1233 = vadd.f32 %v856, %v1199
      %v1234 = vpack.c.bf16 %v232, %v231
      %s1235 = scalar_lea.vmem %s1, 12
      %v1236 = vld [vmem:[%s1235] sm:$0xf]
      %v1238 = vsel %vm433, %v1234, 0
      %v1241 = vsel %vm482, %v1236, 0
      %1243 = vmatprep.subr.bf16.mxu0 0
      %1244 = vmatpush1.bf16.msra.mxu0 %v1241
      %1245 = vmatprep.subr.bf16.mxu0 0
      %1246 = vmatpush1.bf16.msra.mxu0 0
      %1247 = vmatprep.subr.bf16.mxu0 0
      %1248 = vmatpush1.bf16.msra.mxu0 0
      %1249 = vmatprep.subr.bf16.mxu0 0
      %1250 = vmatpush1.bf16.msra.mxu0 0
      %1251 = vmatprep.subr.bf16.mxu0 0
      %1252 = vmatpush1.bf16.msra.mxu0 0
      %1253 = vmatprep.subr.bf16.mxu0 0
      %1254 = vmatpush1.bf16.msra.mxu0 0
      %1255 = vmatprep.subr.bf16.mxu0 0
      %1256 = vmatpush1.bf16.msra.mxu0 0
      %1257 = vmatprep.subr.bf16.mxu0 0
      %1258 = vmatpush1.bf16.msra.mxu0 0
      %1259 = vmatprep.subr.bf16.mxu0 0
      %1260 = vmatpush1.bf16.msra.mxu0 0
      %1261 = vmatprep.subr.bf16.mxu0 0
      %1262 = vmatpush1.bf16.msra.mxu0 0
      %1263 = vmatprep.subr.bf16.mxu0 0
      %1264 = vmatpush1.bf16.msra.mxu0 0
      %1265 = vmatprep.subr.bf16.mxu0 0
      %1266 = vmatpush1.bf16.msra.mxu0 0
      %1267 = vmatprep.subr.bf16.mxu0 0
      %1268 = vmatpush1.bf16.msra.mxu0 0
      %1269 = vmatprep.subr.bf16.mxu0 0
      %1270 = vmatpush1.bf16.msra.mxu0 0
      %1271 = vmatprep.subr.bf16.mxu0 0
      %1272 = vmatpush1.bf16.msra.mxu0 0
      %1273 = vmatprep.subr.bf16.mxu0 0
      %1274 = vmatpush1.bf16.msra.mxu0 0
      %1275 = vmatprep.mubr.bf16.mxu0 0
      %1276 = vmatmul.mubr.bf16.gmra.mrb[0].mxu0 %v651
      %v1277 = vpop.f32.mrb[0].mxu0
      %v1278 = vadd.f32 0.0, %v1277
      %v1279 = vpop.f32.mrb[0].mxu0
      %v1280 = vpop.f32.mrb[0].mxu0
      %v1281 = vadd.f32 0.0, %v1280
      %v1282 = vpop.f32.mrb[0].mxu0
      %1283 = vmatprep.mubr.bf16.mxu0 0
      %1284 = vmatmul.mubr.bf16.gmra.mrb[0].mxu0 %v654
      %v1285 = vpop.f32.mrb[0].mxu0
      %v1286 = vadd.f32 0.0, %v1285
      %v1287 = vpop.f32.mrb[0].mxu0
      %v1288 = vpop.f32.mrb[0].mxu0
      %v1289 = vadd.f32 0.0, %v1288
      %v1290 = vpop.f32.mrb[0].mxu0
      %1291 = vmatprep.mubr.bf16.mxu0 0
      %1292 = vmatmul.mubr.bf16.gmra.mrb[0].mxu0 %v657
      %v1293 = vpop.f32.mrb[0].mxu0
      %v1294 = vadd.f32 0.0, %v1293
      %v1295 = vpop.f32.mrb[0].mxu0
      %v1296 = vpop.f32.mrb[0].mxu0
      %v1297 = vadd.f32 0.0, %v1296
      %v1298 = vpop.f32.mrb[0].mxu0
      %1299 = vmatprep.mubr.bf16.mxu0 0
      %1300 = vmatmul.mubr.bf16.gmra.mrb[0].mxu0 %v660
      %v1301 = vpop.f32.mrb[0].mxu0
      %v1302 = vadd.f32 0.0, %v1301
      %v1303 = vpop.f32.mrb[0].mxu0
      %v1304 = vpop.f32.mrb[0].mxu0
      %v1305 = vadd.f32 0.0, %v1304
      %v1306 = vpop.f32.mrb[0].mxu0
      %1307 = vmatprep.mubr.bf16.mxu0 0
      %1308 = vmatmul.mubr.bf16.gmra.mrb[0].mxu0 %v663
      %v1309 = vpop.f32.mrb[0].mxu0
      %v1310 = vadd.f32 0.0, %v1309
      %v1311 = vpop.f32.mrb[0].mxu0
      %v1312 = vpop.f32.mrb[0].mxu0
      %v1313 = vadd.f32 0.0, %v1312
      %v1314 = vpop.f32.mrb[0].mxu0
      %1315 = vmatprep.mubr.bf16.mxu0 0
      %1316 = vmatmul.mubr.bf16.gmra.mrb[0].mxu0 %v666
      %v1317 = vpop.f32.mrb[0].mxu0
      %v1318 = vadd.f32 0.0, %v1317
      %v1319 = vpop.f32.mrb[0].mxu0
      %v1320 = vpop.f32.mrb[0].mxu0
      %v1321 = vadd.f32 0.0, %v1320
      %v1322 = vpop.f32.mrb[0].mxu0
      %1323 = vmatprep.mubr.bf16.mxu0 0
      %1324 = vmatmul.mubr.bf16.gmra.mrb[0].mxu0 %v669
      %v1325 = vpop.f32.mrb[0].mxu0
      %v1326 = vadd.f32 0.0, %v1325
      %v1327 = vpop.f32.mrb[0].mxu0
      %v1328 = vpop.f32.mrb[0].mxu0
      %v1329 = vadd.f32 0.0, %v1328
      %v1330 = vpop.f32.mrb[0].mxu0
      %1331 = vmatprep.mubr.bf16.mxu0 0
      %1332 = vmatmul.mubr.bf16.gmra.mrb[0].mxu0 %v672
      %v1333 = vpop.f32.mrb[0].mxu0
      %v1334 = vadd.f32 0.0, %v1333
      %v1335 = vpop.f32.mrb[0].mxu0
      %v1336 = vpop.f32.mrb[0].mxu0
      %v1337 = vadd.f32 0.0, %v1336
      %v1338 = vpop.f32.mrb[0].mxu0
      %1339 = vmatprep.mubr.bf16.mxu0 0
      %1340 = vmatmul.mubr.bf16.gmra.mrb[0].mxu0 %v675
      %v1341 = vpop.f32.mrb[0].mxu0
      %v1342 = vadd.f32 0.0, %v1341
      %v1343 = vpop.f32.mrb[0].mxu0
      %v1344 = vpop.f32.mrb[0].mxu0
      %v1345 = vadd.f32 0.0, %v1344
      %v1346 = vpop.f32.mrb[0].mxu0
      %1347 = vmatprep.mubr.bf16.mxu0 0
      %1348 = vmatmul.mubr.bf16.gmra.mrb[0].mxu0 %v678
      %v1349 = vpop.f32.mrb[0].mxu0
      %v1350 = vadd.f32 0.0, %v1349
      %v1351 = vpop.f32.mrb[0].mxu0
      %v1352 = vpop.f32.mrb[0].mxu0
      %v1353 = vadd.f32 0.0, %v1352
      %v1354 = vpop.f32.mrb[0].mxu0
      %1355 = vmatprep.mubr.bf16.mxu0 0
      %1356 = vmatmul.mubr.bf16.gmra.mrb[0].mxu0 %v681
      %v1357 = vpop.f32.mrb[0].mxu0
      %v1358 = vadd.f32 0.0, %v1357
      %v1359 = vpop.f32.mrb[0].mxu0
      %v1360 = vpop.f32.mrb[0].mxu0
      %v1361 = vadd.f32 0.0, %v1360
      %v1362 = vpop.f32.mrb[0].mxu0
      %1363 = vmatprep.mubr.bf16.mxu0 0
      %1364 = vmatmul.mubr.bf16.gmra.mrb[0].mxu0 %v684
      %v1365 = vpop.f32.mrb[0].mxu0
      %v1366 = vadd.f32 0.0, %v1365
      %v1367 = vpop.f32.mrb[0].mxu0
      %v1368 = vpop.f32.mrb[0].mxu0
      %v1369 = vadd.f32 0.0, %v1368
      %v1370 = vpop.f32.mrb[0].mxu0
      %1371 = vmatprep.mubr.bf16.mxu0 0
      %1372 = vmatmul.mubr.bf16.gmra.mrb[0].mxu0 %v687
      %v1373 = vpop.f32.mrb[0].mxu0
      %v1374 = vadd.f32 0.0, %v1373
      %v1375 = vpop.f32.mrb[0].mxu0
      %v1376 = vpop.f32.mrb[0].mxu0
      %v1377 = vadd.f32 0.0, %v1376
      %v1378 = vpop.f32.mrb[0].mxu0
      %1379 = vmatprep.mubr.bf16.mxu0 0
      %1380 = vmatmul.mubr.bf16.gmra.mrb[0].mxu0 %v690
      %v1381 = vpop.f32.mrb[0].mxu0
      %v1382 = vadd.f32 0.0, %v1381
      %v1383 = vpop.f32.mrb[0].mxu0
      %v1384 = vpop.f32.mrb[0].mxu0
      %v1385 = vadd.f32 0.0, %v1384
      %v1386 = vpop.f32.mrb[0].mxu0
      %1387 = vmatprep.mubr.bf16.mxu0 0
      %1388 = vmatmul.mubr.bf16.gmra.mrb[0].mxu0 %v693
      %v1389 = vpop.f32.mrb[0].mxu0
      %v1390 = vadd.f32 0.0, %v1389
      %v1391 = vpop.f32.mrb[0].mxu0
      %v1392 = vpop.f32.mrb[0].mxu0
      %v1393 = vadd.f32 0.0, %v1392
      %v1394 = vpop.f32.mrb[0].mxu0
      %1395 = vmatprep.mubr.bf16.mxu0 0
      %1396 = vmatmul.mubr.bf16.gmra.mrb[0].mxu0 %v1238
      %v1397 = vpop.f32.mrb[0].mxu0
      %v1398 = vadd.f32 0.0, %v1397
      %v1399 = vpop.f32.mrb[0].mxu0
      %v1400 = vpop.f32.mrb[0].mxu0
      %v1401 = vadd.f32 0.0, %v1400
      %v1402 = vpop.f32.mrb[0].mxu0
      %1403 = vdwg.mxu0
      %v1404 = vadd.f32 %v1202, %v1278
      %v1405 = vadd.f32 %v1203, %v1281
      %v1406 = vadd.f32 %v1204, %v1286
      %v1407 = vadd.f32 %v1205, %v1289
      %v1408 = vadd.f32 %v1206, %v1294
      %v1409 = vadd.f32 %v1207, %v1297
      %v1410 = vadd.f32 %v1208, %v1302
      %v1411 = vadd.f32 %v1209, %v1305
      %v1412 = vadd.f32 %v1210, %v1310
      %v1413 = vadd.f32 %v1211, %v1313
      %v1414 = vadd.f32 %v1212, %v1318
      %v1415 = vadd.f32 %v1213, %v1321
      %v1416 = vadd.f32 %v1214, %v1326
      %v1417 = vadd.f32 %v1215, %v1329
      %v1418 = vadd.f32 %v1216, %v1334
      %v1419 = vadd.f32 %v1217, %v1337
      %v1420 = vadd.f32 %v1218, %v1342
      %v1421 = vadd.f32 %v1219, %v1345
      %v1422 = vadd.f32 %v1220, %v1350
      %v1423 = vadd.f32 %v1221, %v1353
      %v1424 = vadd.f32 %v1222, %v1358
      %v1425 = vadd.f32 %v1223, %v1361
      %v1426 = vadd.f32 %v1224, %v1366
      %v1427 = vadd.f32 %v1225, %v1369
      %v1428 = vadd.f32 %v1226, %v1374
      %v1429 = vadd.f32 %v1227, %v1377
      %v1430 = vadd.f32 %v1228, %v1382
      %v1431 = vadd.f32 %v1229, %v1385
      %v1432 = vadd.f32 %v1230, %v1390
      %v1433 = vadd.f32 %v1231, %v1393
      %v1434 = vadd.f32 %v1232, %v1398
      %v1435 = vadd.f32 %v1233, %v1401
      %v1439 = vrot.slane %v231, 1
      %v1440 = vrot.slane %v232, 1
      %v1441 = vsel %vm302, %v1439, %v1440
      %v1442 = vrot.slane %v233, 1
      %v1443 = vsel %vm302, %v1440, %v1442
      %v1446 = vpack.c.bf16 %v1443, %v1441
      %s1447 = scalar_lea.vmem %s1, 16
      %v1448 = vld [vmem:[%s1447] sm:$0xf]
      %v1450 = vsel %vm433, %v1446, 0
      %v1453 = vsel %vm482, %v1448, 0
      %1455 = vmatprep.subr.bf16.mxu0 0
      %1456 = vmatpush1.bf16.msra.mxu0 %v1453
      %1457 = vmatprep.subr.bf16.mxu0 0
      %1458 = vmatpush1.bf16.msra.mxu0 0
      %1459 = vmatprep.subr.bf16.mxu0 0
      %1460 = vmatpush1.bf16.msra.mxu0 0
      %1461 = vmatprep.subr.bf16.mxu0 0
      %1462 = vmatpush1.bf16.msra.mxu0 0
      %1463 = vmatprep.subr.bf16.mxu0 0
      %1464 = vmatpush1.bf16.msra.mxu0 0
      %1465 = vmatprep.subr.bf16.mxu0 0
      %1466 = vmatpush1.bf16.msra.mxu0 0
      %1467 = vmatprep.subr.bf16.mxu0 0
      %1468 = vmatpush1.bf16.msra.mxu0 0
      %1469 = vmatprep.subr.bf16.mxu0 0
      %1470 = vmatpush1.bf16.msra.mxu0 0
      %1471 = vmatprep.subr.bf16.mxu0 0
      %1472 = vmatpush1.bf16.msra.mxu0 0
      %1473 = vmatprep.subr.bf16.mxu0 0
      %1474 = vmatpush1.bf16.msra.mxu0 0
      %1475 = vmatprep.subr.bf16.mxu0 0
      %1476 = vmatpush1.bf16.msra.mxu0 0
      %1477 = vmatprep.subr.bf16.mxu0 0
      %1478 = vmatpush1.bf16.msra.mxu0 0
      %1479 = vmatprep.subr.bf16.mxu0 0
      %1480 = vmatpush1.bf16.msra.mxu0 0
      %1481 = vmatprep.subr.bf16.mxu0 0
      %1482 = vmatpush1.bf16.msra.mxu0 0
      %1483 = vmatprep.subr.bf16.mxu0 0
      %1484 = vmatpush1.bf16.msra.mxu0 0
      %1485 = vmatprep.subr.bf16.mxu0 0
      %1486 = vmatpush1.bf16.msra.mxu0 0
      %1487 = vmatprep.mubr.bf16.mxu0 0
      %1488 = vmatmul.mubr.bf16.gmra.mrb[0].mxu0 %v438
      %v1489 = vpop.f32.mrb[0].mxu0
      %v1490 = vadd.f32 0.0, %v1489
      %v1491 = vpop.f32.mrb[0].mxu0
      %v1492 = vpop.f32.mrb[0].mxu0
      %v1493 = vadd.f32 0.0, %v1492
      %v1494 = vpop.f32.mrb[0].mxu0
      %1495 = vmatprep.mubr.bf16.mxu0 0
      %1496 = vmatmul.mubr.bf16.gmra.mrb[0].mxu0 %v441
      %v1497 = vpop.f32.mrb[0].mxu0
      %v1498 = vadd.f32 0.0, %v1497
      %v1499 = vpop.f32.mrb[0].mxu0
      %v1500 = vpop.f32.mrb[0].mxu0
      %v1501 = vadd.f32 0.0, %v1500
      %v1502 = vpop.f32.mrb[0].mxu0
      %1503 = vmatprep.mubr.bf16.mxu0 0
      %1504 = vmatmul.mubr.bf16.gmra.mrb[0].mxu0 %v444
      %v1505 = vpop.f32.mrb[0].mxu0
      %v1506 = vadd.f32 0.0, %v1505
      %v1507 = vpop.f32.mrb[0].mxu0
      %v1508 = vpop.f32.mrb[0].mxu0
      %v1509 = vadd.f32 0.0, %v1508
      %v1510 = vpop.f32.mrb[0].mxu0
      %1511 = vmatprep.mubr.bf16.mxu0 0
      %1512 = vmatmul.mubr.bf16.gmra.mrb[0].mxu0 %v447
      %v1513 = vpop.f32.mrb[0].mxu0
      %v1514 = vadd.f32 0.0, %v1513
      %v1515 = vpop.f32.mrb[0].mxu0
      %v1516 = vpop.f32.mrb[0].mxu0
      %v1517 = vadd.f32 0.0, %v1516
      %v1518 = vpop.f32.mrb[0].mxu0
      %1519 = vmatprep.mubr.bf16.mxu0 0
      %1520 = vmatmul.mubr.bf16.gmra.mrb[0].mxu0 %v450
      %v1521 = vpop.f32.mrb[0].mxu0
      %v1522 = vadd.f32 0.0, %v1521
      %v1523 = vpop.f32.mrb[0].mxu0
      %v1524 = vpop.f32.mrb[0].mxu0
      %v1525 = vadd.f32 0.0, %v1524
      %v1526 = vpop.f32.mrb[0].mxu0
      %1527 = vmatprep.mubr.bf16.mxu0 0
      %1528 = vmatmul.mubr.bf16.gmra.mrb[0].mxu0 %v453
      %v1529 = vpop.f32.mrb[0].mxu0
      %v1530 = vadd.f32 0.0, %v1529
      %v1531 = vpop.f32.mrb[0].mxu0
      %v1532 = vpop.f32.mrb[0].mxu0
      %v1533 = vadd.f32 0.0, %v1532
      %v1534 = vpop.f32.mrb[0].mxu0
      %1535 = vmatprep.mubr.bf16.mxu0 0
      %1536 = vmatmul.mubr.bf16.gmra.mrb[0].mxu0 %v456
      %v1537 = vpop.f32.mrb[0].mxu0
      %v1538 = vadd.f32 0.0, %v1537
      %v1539 = vpop.f32.mrb[0].mxu0
      %v1540 = vpop.f32.mrb[0].mxu0
      %v1541 = vadd.f32 0.0, %v1540
      %v1542 = vpop.f32.mrb[0].mxu0
      %1543 = vmatprep.mubr.bf16.mxu0 0
      %1544 = vmatmul.mubr.bf16.gmra.mrb[0].mxu0 %v459
      %v1545 = vpop.f32.mrb[0].mxu0
      %v1546 = vadd.f32 0.0, %v1545
      %v1547 = vpop.f32.mrb[0].mxu0
      %v1548 = vpop.f32.mrb[0].mxu0
      %v1549 = vadd.f32 0.0, %v1548
      %v1550 = vpop.f32.mrb[0].mxu0
      %1551 = vmatprep.mubr.bf16.mxu0 0
      %1552 = vmatmul.mubr.bf16.gmra.mrb[0].mxu0 %v462
      %v1553 = vpop.f32.mrb[0].mxu0
      %v1554 = vadd.f32 0.0, %v1553
      %v1555 = vpop.f32.mrb[0].mxu0
      %v1556 = vpop.f32.mrb[0].mxu0
      %v1557 = vadd.f32 0.0, %v1556
      %v1558 = vpop.f32.mrb[0].mxu0
      %1559 = vmatprep.mubr.bf16.mxu0 0
      %1560 = vmatmul.mubr.bf16.gmra.mrb[0].mxu0 %v465
      %v1561 = vpop.f32.mrb[0].mxu0
      %v1562 = vadd.f32 0.0, %v1561
      %v1563 = vpop.f32.mrb[0].mxu0
      %v1564 = vpop.f32.mrb[0].mxu0
      %v1565 = vadd.f32 0.0, %v1564
      %v1566 = vpop.f32.mrb[0].mxu0
      %1567 = vmatprep.mubr.bf16.mxu0 0
      %1568 = vmatmul.mubr.bf16.gmra.mrb[0].mxu0 %v468
      %v1569 = vpop.f32.mrb[0].mxu0
      %v1570 = vadd.f32 0.0, %v1569
      %v1571 = vpop.f32.mrb[0].mxu0
      %v1572 = vpop.f32.mrb[0].mxu0
      %v1573 = vadd.f32 0.0, %v1572
      %v1574 = vpop.f32.mrb[0].mxu0
      %1575 = vmatprep.mubr.bf16.mxu0 0
      %1576 = vmatmul.mubr.bf16.gmra.mrb[0].mxu0 %v471
      %v1577 = vpop.f32.mrb[0].mxu0
      %v1578 = vadd.f32 0.0, %v1577
      %v1579 = vpop.f32.mrb[0].mxu0
      %v1580 = vpop.f32.mrb[0].mxu0
      %v1581 = vadd.f32 0.0, %v1580
      %v1582 = vpop.f32.mrb[0].mxu0
      %1583 = vmatprep.mubr.bf16.mxu0 0
      %1584 = vmatmul.mubr.bf16.gmra.mrb[0].mxu0 %v474
      %v1585 = vpop.f32.mrb[0].mxu0
      %v1586 = vadd.f32 0.0, %v1585
      %v1587 = vpop.f32.mrb[0].mxu0
      %v1588 = vpop.f32.mrb[0].mxu0
      %v1589 = vadd.f32 0.0, %v1588
      %v1590 = vpop.f32.mrb[0].mxu0
      %1591 = vmatprep.mubr.bf16.mxu0 0
      %1592 = vmatmul.mubr.bf16.gmra.mrb[0].mxu0 %v477
      %v1593 = vpop.f32.mrb[0].mxu0
      %v1594 = vadd.f32 0.0, %v1593
      %v1595 = vpop.f32.mrb[0].mxu0
      %v1596 = vpop.f32.mrb[0].mxu0
      %v1597 = vadd.f32 0.0, %v1596
      %v1598 = vpop.f32.mrb[0].mxu0
      %1599 = vmatprep.mubr.bf16.mxu0 0
      %1600 = vmatmul.mubr.bf16.gmra.mrb[0].mxu0 %v480
      %v1601 = vpop.f32.mrb[0].mxu0
      %v1602 = vadd.f32 0.0, %v1601
      %v1603 = vpop.f32.mrb[0].mxu0
      %v1604 = vpop.f32.mrb[0].mxu0
      %v1605 = vadd.f32 0.0, %v1604
      %v1606 = vpop.f32.mrb[0].mxu0
      %1607 = vmatprep.mubr.bf16.mxu0 0
      %1608 = vmatmul.mubr.bf16.gmra.mrb[0].mxu0 %v1450
      %v1609 = vpop.f32.mrb[0].mxu0
      %v1610 = vadd.f32 0.0, %v1609
      %v1611 = vpop.f32.mrb[0].mxu0
      %v1612 = vpop.f32.mrb[0].mxu0
      %v1613 = vadd.f32 0.0, %v1612
      %v1614 = vpop.f32.mrb[0].mxu0
      %1615 = vdwg.mxu0
      %v1616 = vadd.f32 %v1404, %v1490
      %v1617 = vadd.f32 %v1405, %v1493
      %v1618 = vadd.f32 %v1406, %v1498
      %v1619 = vadd.f32 %v1407, %v1501
      %v1620 = vadd.f32 %v1408, %v1506
      %v1621 = vadd.f32 %v1409, %v1509
      %v1622 = vadd.f32 %v1410, %v1514
      %v1623 = vadd.f32 %v1411, %v1517
      %v1624 = vadd.f32 %v1412, %v1522
      %v1625 = vadd.f32 %v1413, %v1525
      %v1626 = vadd.f32 %v1414, %v1530
      %v1627 = vadd.f32 %v1415, %v1533
      %v1628 = vadd.f32 %v1416, %v1538
      %v1629 = vadd.f32 %v1417, %v1541
      %v1630 = vadd.f32 %v1418, %v1546
      %v1631 = vadd.f32 %v1419, %v1549
      %v1632 = vadd.f32 %v1420, %v1554
      %v1633 = vadd.f32 %v1421, %v1557
      %v1634 = vadd.f32 %v1422, %v1562
      %v1635 = vadd.f32 %v1423, %v1565
      %v1636 = vadd.f32 %v1424, %v1570
      %v1637 = vadd.f32 %v1425, %v1573
      %v1638 = vadd.f32 %v1426, %v1578
      %v1639 = vadd.f32 %v1427, %v1581
      %v1640 = vadd.f32 %v1428, %v1586
      %v1641 = vadd.f32 %v1429, %v1589
      %v1642 = vadd.f32 %v1430, %v1594
      %v1643 = vadd.f32 %v1431, %v1597
      %v1644 = vadd.f32 %v1432, %v1602
      %v1645 = vadd.f32 %v1433, %v1605
      %v1646 = vadd.f32 %v1434, %v1610
      %v1647 = vadd.f32 %v1435, %v1613
      %v1648 = vrot.slane %v231, 2
      %v1649 = vrot.slane %v232, 2
      %v1650 = vsel %vm859, %v1648, %v1649
      %v1651 = vrot.slane %v233, 2
      %v1652 = vsel %vm859, %v1649, %v1651
      %v1655 = vpack.c.bf16 %v1652, %v1650
      %s1656 = scalar_lea.vmem %s1, 20
      %v1657 = vld [vmem:[%s1656] sm:$0xf]
      %v1659 = vsel %vm433, %v1655, 0
      %v1662 = vsel %vm482, %v1657, 0
      %1664 = vmatprep.subr.bf16.mxu0 0
      %1665 = vmatpush1.bf16.msra.mxu0 %v1662
      %1666 = vmatprep.subr.bf16.mxu0 0
      %1667 = vmatpush1.bf16.msra.mxu0 0
      %1668 = vmatprep.subr.bf16.mxu0 0
      %1669 = vmatpush1.bf16.msra.mxu0 0
      %1670 = vmatprep.subr.bf16.mxu0 0
      %1671 = vmatpush1.bf16.msra.mxu0 0
      %1672 = vmatprep.subr.bf16.mxu0 0
      %1673 = vmatpush1.bf16.msra.mxu0 0
      %1674 = vmatprep.subr.bf16.mxu0 0
      %1675 = vmatpush1.bf16.msra.mxu0 0
      %1676 = vmatprep.subr.bf16.mxu0 0
      %1677 = vmatpush1.bf16.msra.mxu0 0
      %1678 = vmatprep.subr.bf16.mxu0 0
      %1679 = vmatpush1.bf16.msra.mxu0 0
      %1680 = vmatprep.subr.bf16.mxu0 0
      %1681 = vmatpush1.bf16.msra.mxu0 0
      %1682 = vmatprep.subr.bf16.mxu0 0
      %1683 = vmatpush1.bf16.msra.mxu0 0
      %1684 = vmatprep.subr.bf16.mxu0 0
      %1685 = vmatpush1.bf16.msra.mxu0 0
      %1686 = vmatprep.subr.bf16.mxu0 0
      %1687 = vmatpush1.bf16.msra.mxu0 0
      %1688 = vmatprep.subr.bf16.mxu0 0
      %1689 = vmatpush1.bf16.msra.mxu0 0
      %1690 = vmatprep.subr.bf16.mxu0 0
      %1691 = vmatpush1.bf16.msra.mxu0 0
      %1692 = vmatprep.subr.bf16.mxu0 0
      %1693 = vmatpush1.bf16.msra.mxu0 0
      %1694 = vmatprep.subr.bf16.mxu0 0
      %1695 = vmatpush1.bf16.msra.mxu0 0
      %1696 = vmatprep.mubr.bf16.mxu0 0
      %1697 = vmatmul.mubr.bf16.gmra.mrb[0].mxu0 %v994
      %v1698 = vpop.f32.mrb[0].mxu0
      %v1699 = vadd.f32 0.0, %v1698
      %v1700 = vpop.f32.mrb[0].mxu0
      %v1701 = vpop.f32.mrb[0].mxu0
      %v1702 = vadd.f32 0.0, %v1701
      %v1703 = vpop.f32.mrb[0].mxu0
      %1704 = vmatprep.mubr.bf16.mxu0 0
      %1705 = vmatmul.mubr.bf16.gmra.mrb[0].mxu0 %v997
      %v1706 = vpop.f32.mrb[0].mxu0
      %v1707 = vadd.f32 0.0, %v1706
      %v1708 = vpop.f32.mrb[0].mxu0
      %v1709 = vpop.f32.mrb[0].mxu0
      %v1710 = vadd.f32 0.0, %v1709
      %v1711 = vpop.f32.mrb[0].mxu0
      %1712 = vmatprep.mubr.bf16.mxu0 0
      %1713 = vmatmul.mubr.bf16.gmra.mrb[0].mxu0 %v1000
      %v1714 = vpop.f32.mrb[0].mxu0
      %v1715 = vadd.f32 0.0, %v1714
      %v1716 = vpop.f32.mrb[0].mxu0
      %v1717 = vpop.f32.mrb[0].mxu0
      %v1718 = vadd.f32 0.0, %v1717
      %v1719 = vpop.f32.mrb[0].mxu0
      %1720 = vmatprep.mubr.bf16.mxu0 0
      %1721 = vmatmul.mubr.bf16.gmra.mrb[0].mxu0 %v1003
      %v1722 = vpop.f32.mrb[0].mxu0
      %v1723 = vadd.f32 0.0, %v1722
      %v1724 = vpop.f32.mrb[0].mxu0
      %v1725 = vpop.f32.mrb[0].mxu0
      %v1726 = vadd.f32 0.0, %v1725
      %v1727 = vpop.f32.mrb[0].mxu0
      %1728 = vmatprep.mubr.bf16.mxu0 0
      %1729 = vmatmul.mubr.bf16.gmra.mrb[0].mxu0 %v1006
      %v1730 = vpop.f32.mrb[0].mxu0
      %v1731 = vadd.f32 0.0, %v1730
      %v1732 = vpop.f32.mrb[0].mxu0
      %v1733 = vpop.f32.mrb[0].mxu0
      %v1734 = vadd.f32 0.0, %v1733
      %v1735 = vpop.f32.mrb[0].mxu0
      %1736 = vmatprep.mubr.bf16.mxu0 0
      %1737 = vmatmul.mubr.bf16.gmra.mrb[0].mxu0 %v1009
      %v1738 = vpop.f32.mrb[0].mxu0
      %v1739 = vadd.f32 0.0, %v1738
      %v1740 = vpop.f32.mrb[0].mxu0
      %v1741 = vpop.f32.mrb[0].mxu0
      %v1742 = vadd.f32 0.0, %v1741
      %v1743 = vpop.f32.mrb[0].mxu0
      %1744 = vmatprep.mubr.bf16.mxu0 0
      %1745 = vmatmul.mubr.bf16.gmra.mrb[0].mxu0 %v1012
      %v1746 = vpop.f32.mrb[0].mxu0
      %v1747 = vadd.f32 0.0, %v1746
      %v1748 = vpop.f32.mrb[0].mxu0
      %v1749 = vpop.f32.mrb[0].mxu0
      %v1750 = vadd.f32 0.0, %v1749
      %v1751 = vpop.f32.mrb[0].mxu0
      %1752 = vmatprep.mubr.bf16.mxu0 0
      %1753 = vmatmul.mubr.bf16.gmra.mrb[0].mxu0 %v1015
      %v1754 = vpop.f32.mrb[0].mxu0
      %v1755 = vadd.f32 0.0, %v1754
      %v1756 = vpop.f32.mrb[0].mxu0
      %v1757 = vpop.f32.mrb[0].mxu0
      %v1758 = vadd.f32 0.0, %v1757
      %v1759 = vpop.f32.mrb[0].mxu0
      %1760 = vmatprep.mubr.bf16.mxu0 0
      %1761 = vmatmul.mubr.bf16.gmra.mrb[0].mxu0 %v1018
      %v1762 = vpop.f32.mrb[0].mxu0
      %v1763 = vadd.f32 0.0, %v1762
      %v1764 = vpop.f32.mrb[0].mxu0
      %v1765 = vpop.f32.mrb[0].mxu0
      %v1766 = vadd.f32 0.0, %v1765
      %v1767 = vpop.f32.mrb[0].mxu0
      %1768 = vmatprep.mubr.bf16.mxu0 0
      %1769 = vmatmul.mubr.bf16.gmra.mrb[0].mxu0 %v1021
      %v1770 = vpop.f32.mrb[0].mxu0
      %v1771 = vadd.f32 0.0, %v1770
      %v1772 = vpop.f32.mrb[0].mxu0
      %v1773 = vpop.f32.mrb[0].mxu0
      %v1774 = vadd.f32 0.0, %v1773
      %v1775 = vpop.f32.mrb[0].mxu0
      %1776 = vmatprep.mubr.bf16.mxu0 0
      %1777 = vmatmul.mubr.bf16.gmra.mrb[0].mxu0 %v1024
      %v1778 = vpop.f32.mrb[0].mxu0
      %v1779 = vadd.f32 0.0, %v1778
      %v1780 = vpop.f32.mrb[0].mxu0
      %v1781 = vpop.f32.mrb[0].mxu0
      %v1782 = vadd.f32 0.0, %v1781
      %v1783 = vpop.f32.mrb[0].mxu0
      %1784 = vmatprep.mubr.bf16.mxu0 0
      %1785 = vmatmul.mubr.bf16.gmra.mrb[0].mxu0 %v1027
      %v1786 = vpop.f32.mrb[0].mxu0
      %v1787 = vadd.f32 0.0, %v1786
      %v1788 = vpop.f32.mrb[0].mxu0
      %v1789 = vpop.f32.mrb[0].mxu0
      %v1790 = vadd.f32 0.0, %v1789
      %v1791 = vpop.f32.mrb[0].mxu0
      %1792 = vmatprep.mubr.bf16.mxu0 0
      %1793 = vmatmul.mubr.bf16.gmra.mrb[0].mxu0 %v1030
      %v1794 = vpop.f32.mrb[0].mxu0
      %v1795 = vadd.f32 0.0, %v1794
      %v1796 = vpop.f32.mrb[0].mxu0
      %v1797 = vpop.f32.mrb[0].mxu0
      %v1798 = vadd.f32 0.0, %v1797
      %v1799 = vpop.f32.mrb[0].mxu0
      %1800 = vmatprep.mubr.bf16.mxu0 0
      %1801 = vmatmul.mubr.bf16.gmra.mrb[0].mxu0 %v1033
      %v1802 = vpop.f32.mrb[0].mxu0
      %v1803 = vadd.f32 0.0, %v1802
      %v1804 = vpop.f32.mrb[0].mxu0
      %v1805 = vpop.f32.mrb[0].mxu0
      %v1806 = vadd.f32 0.0, %v1805
      %v1807 = vpop.f32.mrb[0].mxu0
      %1808 = vmatprep.mubr.bf16.mxu0 0
      %1809 = vmatmul.mubr.bf16.gmra.mrb[0].mxu0 %v1036
      %v1810 = vpop.f32.mrb[0].mxu0
      %v1811 = vadd.f32 0.0, %v1810
      %v1812 = vpop.f32.mrb[0].mxu0
      %v1813 = vpop.f32.mrb[0].mxu0
      %v1814 = vadd.f32 0.0, %v1813
      %v1815 = vpop.f32.mrb[0].mxu0
      %1816 = vmatprep.mubr.bf16.mxu0 0
      %1817 = vmatmul.mubr.bf16.gmra.mrb[0].mxu0 %v1659
      %v1818 = vpop.f32.mrb[0].mxu0
      %v1819 = vadd.f32 0.0, %v1818
      %v1820 = vpop.f32.mrb[0].mxu0
      %v1821 = vpop.f32.mrb[0].mxu0
      %v1822 = vadd.f32 0.0, %v1821
      %v1823 = vpop.f32.mrb[0].mxu0
      %1824 = vdwg.mxu0
      %v1825 = vadd.f32 %v1616, %v1699
      %v1826 = vadd.f32 %v1617, %v1702
      %v1827 = vadd.f32 %v1618, %v1707
      %v1828 = vadd.f32 %v1619, %v1710
      %v1829 = vadd.f32 %v1620, %v1715
      %v1830 = vadd.f32 %v1621, %v1718
      %v1831 = vadd.f32 %v1622, %v1723
      %v1832 = vadd.f32 %v1623, %v1726
      %v1833 = vadd.f32 %v1624, %v1731
      %v1834 = vadd.f32 %v1625, %v1734
      %v1835 = vadd.f32 %v1626, %v1739
      %v1836 = vadd.f32 %v1627, %v1742
      %v1837 = vadd.f32 %v1628, %v1747
      %v1838 = vadd.f32 %v1629, %v1750
      %v1839 = vadd.f32 %v1630, %v1755
      %v1840 = vadd.f32 %v1631, %v1758
      %v1841 = vadd.f32 %v1632, %v1763
      %v1842 = vadd.f32 %v1633, %v1766
      %v1843 = vadd.f32 %v1634, %v1771
      %v1844 = vadd.f32 %v1635, %v1774
      %v1845 = vadd.f32 %v1636, %v1779
      %v1846 = vadd.f32 %v1637, %v1782
      %v1847 = vadd.f32 %v1638, %v1787
      %v1848 = vadd.f32 %v1639, %v1790
      %v1849 = vadd.f32 %v1640, %v1795
      %v1850 = vadd.f32 %v1641, %v1798
      %v1851 = vadd.f32 %v1642, %v1803
      %v1852 = vadd.f32 %v1643, %v1806
      %v1853 = vadd.f32 %v1644, %v1811
      %v1854 = vadd.f32 %v1645, %v1814
      %v1855 = vadd.f32 %v1646, %v1819
      %v1856 = vadd.f32 %v1647, %v1822
      %v1857 = vpack.c.bf16 %v235, %v234
      %s1858 = scalar_lea.vmem %s1, 24
      %v1859 = vld [vmem:[%s1858] sm:$0xf]
      %v1861 = vsel %vm433, %v1857, 0
      %v1864 = vsel %vm482, %v1859, 0
      %1866 = vmatprep.subr.bf16.mxu0 0
      %1867 = vmatpush1.bf16.msra.mxu0 %v1864
      %1868 = vmatprep.subr.bf16.mxu0 0
      %1869 = vmatpush1.bf16.msra.mxu0 0
      %1870 = vmatprep.subr.bf16.mxu0 0
      %1871 = vmatpush1.bf16.msra.mxu0 0
      %1872 = vmatprep.subr.bf16.mxu0 0
      %1873 = vmatpush1.bf16.msra.mxu0 0
      %1874 = vmatprep.subr.bf16.mxu0 0
      %1875 = vmatpush1.bf16.msra.mxu0 0
      %1876 = vmatprep.subr.bf16.mxu0 0
      %1877 = vmatpush1.bf16.msra.mxu0 0
      %1878 = vmatprep.subr.bf16.mxu0 0
      %1879 = vmatpush1.bf16.msra.mxu0 0
      %1880 = vmatprep.subr.bf16.mxu0 0
      %1881 = vmatpush1.bf16.msra.mxu0 0
      %1882 = vmatprep.subr.bf16.mxu0 0
      %1883 = vmatpush1.bf16.msra.mxu0 0
      %1884 = vmatprep.subr.bf16.mxu0 0
      %1885 = vmatpush1.bf16.msra.mxu0 0
      %1886 = vmatprep.subr.bf16.mxu0 0
      %1887 = vmatpush1.bf16.msra.mxu0 0
      %1888 = vmatprep.subr.bf16.mxu0 0
      %1889 = vmatpush1.bf16.msra.mxu0 0
      %1890 = vmatprep.subr.bf16.mxu0 0
      %1891 = vmatpush1.bf16.msra.mxu0 0
      %1892 = vmatprep.subr.bf16.mxu0 0
      %1893 = vmatpush1.bf16.msra.mxu0 0
      %1894 = vmatprep.subr.bf16.mxu0 0
      %1895 = vmatpush1.bf16.msra.mxu0 0
      %1896 = vmatprep.subr.bf16.mxu0 0
      %1897 = vmatpush1.bf16.msra.mxu0 0
      %1898 = vmatprep.mubr.bf16.mxu0 0
      %1899 = vmatmul.mubr.bf16.gmra.mrb[0].mxu0 %v654
      %v1900 = vpop.f32.mrb[0].mxu0
      %v1901 = vadd.f32 0.0, %v1900
      %v1902 = vpop.f32.mrb[0].mxu0
      %v1903 = vpop.f32.mrb[0].mxu0
      %v1904 = vadd.f32 0.0, %v1903
      %v1905 = vpop.f32.mrb[0].mxu0
      %1906 = vmatprep.mubr.bf16.mxu0 0
      %1907 = vmatmul.mubr.bf16.gmra.mrb[0].mxu0 %v657
      %v1908 = vpop.f32.mrb[0].mxu0
      %v1909 = vadd.f32 0.0, %v1908
      %v1910 = vpop.f32.mrb[0].mxu0
      %v1911 = vpop.f32.mrb[0].mxu0
      %v1912 = vadd.f32 0.0, %v1911
      %v1913 = vpop.f32.mrb[0].mxu0
      %1914 = vmatprep.mubr.bf16.mxu0 0
      %1915 = vmatmul.mubr.bf16.gmra.mrb[0].mxu0 %v660
      %v1916 = vpop.f32.mrb[0].mxu0
      %v1917 = vadd.f32 0.0, %v1916
      %v1918 = vpop.f32.mrb[0].mxu0
      %v1919 = vpop.f32.mrb[0].mxu0
      %v1920 = vadd.f32 0.0, %v1919
      %v1921 = vpop.f32.mrb[0].mxu0
      %1922 = vmatprep.mubr.bf16.mxu0 0
      %1923 = vmatmul.mubr.bf16.gmra.mrb[0].mxu0 %v663
      %v1924 = vpop.f32.mrb[0].mxu0
      %v1925 = vadd.f32 0.0, %v1924
      %v1926 = vpop.f32.mrb[0].mxu0
      %v1927 = vpop.f32.mrb[0].mxu0
      %v1928 = vadd.f32 0.0, %v1927
      %v1929 = vpop.f32.mrb[0].mxu0
      %1930 = vmatprep.mubr.bf16.mxu0 0
      %1931 = vmatmul.mubr.bf16.gmra.mrb[0].mxu0 %v666
      %v1932 = vpop.f32.mrb[0].mxu0
      %v1933 = vadd.f32 0.0, %v1932
      %v1934 = vpop.f32.mrb[0].mxu0
      %v1935 = vpop.f32.mrb[0].mxu0
      %v1936 = vadd.f32 0.0, %v1935
      %v1937 = vpop.f32.mrb[0].mxu0
      %1938 = vmatprep.mubr.bf16.mxu0 0
      %1939 = vmatmul.mubr.bf16.gmra.mrb[0].mxu0 %v669
      %v1940 = vpop.f32.mrb[0].mxu0
      %v1941 = vadd.f32 0.0, %v1940
      %v1942 = vpop.f32.mrb[0].mxu0
      %v1943 = vpop.f32.mrb[0].mxu0
      %v1944 = vadd.f32 0.0, %v1943
      %v1945 = vpop.f32.mrb[0].mxu0
      %1946 = vmatprep.mubr.bf16.mxu0 0
      %1947 = vmatmul.mubr.bf16.gmra.mrb[0].mxu0 %v672
      %v1948 = vpop.f32.mrb[0].mxu0
      %v1949 = vadd.f32 0.0, %v1948
      %v1950 = vpop.f32.mrb[0].mxu0
      %v1951 = vpop.f32.mrb[0].mxu0
      %v1952 = vadd.f32 0.0, %v1951
      %v1953 = vpop.f32.mrb[0].mxu0
      %1954 = vmatprep.mubr.bf16.mxu0 0
      %1955 = vmatmul.mubr.bf16.gmra.mrb[0].mxu0 %v675
      %v1956 = vpop.f32.mrb[0].mxu0
      %v1957 = vadd.f32 0.0, %v1956
      %v1958 = vpop.f32.mrb[0].mxu0
      %v1959 = vpop.f32.mrb[0].mxu0
      %v1960 = vadd.f32 0.0, %v1959
      %v1961 = vpop.f32.mrb[0].mxu0
      %1962 = vmatprep.mubr.bf16.mxu0 0
      %1963 = vmatmul.mubr.bf16.gmra.mrb[0].mxu0 %v678
      %v1964 = vpop.f32.mrb[0].mxu0
      %v1965 = vadd.f32 0.0, %v1964
      %v1966 = vpop.f32.mrb[0].mxu0
      %v1967 = vpop.f32.mrb[0].mxu0
      %v1968 = vadd.f32 0.0, %v1967
      %v1969 = vpop.f32.mrb[0].mxu0
      %1970 = vmatprep.mubr.bf16.mxu0 0
      %1971 = vmatmul.mubr.bf16.gmra.mrb[0].mxu0 %v681
      %v1972 = vpop.f32.mrb[0].mxu0
      %v1973 = vadd.f32 0.0, %v1972
      %v1974 = vpop.f32.mrb[0].mxu0
      %v1975 = vpop.f32.mrb[0].mxu0
      %v1976 = vadd.f32 0.0, %v1975
      %v1977 = vpop.f32.mrb[0].mxu0
      %1978 = vmatprep.mubr.bf16.mxu0 0
      %1979 = vmatmul.mubr.bf16.gmra.mrb[0].mxu0 %v684
      %v1980 = vpop.f32.mrb[0].mxu0
      %v1981 = vadd.f32 0.0, %v1980
      %v1982 = vpop.f32.mrb[0].mxu0
      %v1983 = vpop.f32.mrb[0].mxu0
      %v1984 = vadd.f32 0.0, %v1983
      %v1985 = vpop.f32.mrb[0].mxu0
      %1986 = vmatprep.mubr.bf16.mxu0 0
      %1987 = vmatmul.mubr.bf16.gmra.mrb[0].mxu0 %v687
      %v1988 = vpop.f32.mrb[0].mxu0
      %v1989 = vadd.f32 0.0, %v1988
      %v1990 = vpop.f32.mrb[0].mxu0
      %v1991 = vpop.f32.mrb[0].mxu0
      %v1992 = vadd.f32 0.0, %v1991
      %v1993 = vpop.f32.mrb[0].mxu0
      %1994 = vmatprep.mubr.bf16.mxu0 0
      %1995 = vmatmul.mubr.bf16.gmra.mrb[0].mxu0 %v690
      %v1996 = vpop.f32.mrb[0].mxu0
      %v1997 = vadd.f32 0.0, %v1996
      %v1998 = vpop.f32.mrb[0].mxu0
      %v1999 = vpop.f32.mrb[0].mxu0
      %v2000 = vadd.f32 0.0, %v1999
      %v2001 = vpop.f32.mrb[0].mxu0
      %2002 = vmatprep.mubr.bf16.mxu0 0
      %2003 = vmatmul.mubr.bf16.gmra.mrb[0].mxu0 %v693
      %v2004 = vpop.f32.mrb[0].mxu0
      %v2005 = vadd.f32 0.0, %v2004
      %v2006 = vpop.f32.mrb[0].mxu0
      %v2007 = vpop.f32.mrb[0].mxu0
      %v2008 = vadd.f32 0.0, %v2007
      %v2009 = vpop.f32.mrb[0].mxu0
      %2010 = vmatprep.mubr.bf16.mxu0 0
      %2011 = vmatmul.mubr.bf16.gmra.mrb[0].mxu0 %v1238
      %v2012 = vpop.f32.mrb[0].mxu0
      %v2013 = vadd.f32 0.0, %v2012
      %v2014 = vpop.f32.mrb[0].mxu0
      %v2015 = vpop.f32.mrb[0].mxu0
      %v2016 = vadd.f32 0.0, %v2015
      %v2017 = vpop.f32.mrb[0].mxu0
      %2018 = vmatprep.mubr.bf16.mxu0 0
      %2019 = vmatmul.mubr.bf16.gmra.mrb[0].mxu0 %v1861
      %v2020 = vpop.f32.mrb[0].mxu0
      %v2021 = vadd.f32 0.0, %v2020
      %v2022 = vpop.f32.mrb[0].mxu0
      %v2023 = vpop.f32.mrb[0].mxu0
      %v2024 = vadd.f32 0.0, %v2023
      %v2025 = vpop.f32.mrb[0].mxu0
      %2026 = vdwg.mxu0
      %v2027 = vadd.f32 %v1825, %v1901
      %v2028 = vadd.f32 %v1826, %v1904
      %v2029 = vadd.f32 %v1827, %v1909
      %v2030 = vadd.f32 %v1828, %v1912
      %v2031 = vadd.f32 %v1829, %v1917
      %v2032 = vadd.f32 %v1830, %v1920
      %v2033 = vadd.f32 %v1831, %v1925
      %v2034 = vadd.f32 %v1832, %v1928
      %v2035 = vadd.f32 %v1833, %v1933
      %v2036 = vadd.f32 %v1834, %v1936
      %v2037 = vadd.f32 %v1835, %v1941
      %v2038 = vadd.f32 %v1836, %v1944
      %v2039 = vadd.f32 %v1837, %v1949
      %v2040 = vadd.f32 %v1838, %v1952
      %v2041 = vadd.f32 %v1839, %v1957
      %v2042 = vadd.f32 %v1840, %v1960
      %v2043 = vadd.f32 %v1841, %v1965
      %v2044 = vadd.f32 %v1842, %v1968
      %v2045 = vadd.f32 %v1843, %v1973
      %v2046 = vadd.f32 %v1844, %v1976
      %v2047 = vadd.f32 %v1845, %v1981
      %v2048 = vadd.f32 %v1846, %v1984
      %v2049 = vadd.f32 %v1847, %v1989
      %v2050 = vadd.f32 %v1848, %v1992
      %v2051 = vadd.f32 %v1849, %v1997
      %v2052 = vadd.f32 %v1850, %v2000
      %v2053 = vadd.f32 %v1851, %v2005
      %v2054 = vadd.f32 %v1852, %v2008
      %v2055 = vadd.f32 %v1853, %v2013
      %v2056 = vadd.f32 %v1854, %v2016
      %v2057 = vadd.f32 %v1855, %v2021
      %v2058 = vadd.f32 %v1856, %v2024
      %v2062 = vrot.slane %v234, 1
      %v2063 = vrot.slane %v235, 1
      %v2064 = vsel %vm302, %v2062, %v2063
      %v2065 = vrot.slane %v236, 1
      %v2066 = vsel %vm302, %v2063, %v2065
      %v2069 = vpack.c.bf16 %v2066, %v2064
      %s2070 = scalar_lea.vmem %s1, 28
      %v2071 = vld [vmem:[%s2070] sm:$0xf]
      %v2073 = vsel %vm433, %v2069, 0
      %v2076 = vsel %vm482, %v2071, 0
      %2078 = vmatprep.subr.bf16.mxu0 0
      %2079 = vmatpush1.bf16.msra.mxu0 %v2076
      %2080 = vmatprep.subr.bf16.mxu0 0
      %2081 = vmatpush1.bf16.msra.mxu0 0
      %2082 = vmatprep.subr.bf16.mxu0 0
      %2083 = vmatpush1.bf16.msra.mxu0 0
      %2084 = vmatprep.subr.bf16.mxu0 0
      %2085 = vmatpush1.bf16.msra.mxu0 0
      %2086 = vmatprep.subr.bf16.mxu0 0
      %2087 = vmatpush1.bf16.msra.mxu0 0
      %2088 = vmatprep.subr.bf16.mxu0 0
      %2089 = vmatpush1.bf16.msra.mxu0 0
      %2090 = vmatprep.subr.bf16.mxu0 0
      %2091 = vmatpush1.bf16.msra.mxu0 0
      %2092 = vmatprep.subr.bf16.mxu0 0
      %2093 = vmatpush1.bf16.msra.mxu0 0
      %2094 = vmatprep.subr.bf16.mxu0 0
      %2095 = vmatpush1.bf16.msra.mxu0 0
      %2096 = vmatprep.subr.bf16.mxu0 0
      %2097 = vmatpush1.bf16.msra.mxu0 0
      %2098 = vmatprep.subr.bf16.mxu0 0
      %2099 = vmatpush1.bf16.msra.mxu0 0
      %2100 = vmatprep.subr.bf16.mxu0 0
      %2101 = vmatpush1.bf16.msra.mxu0 0
      %2102 = vmatprep.subr.bf16.mxu0 0
      %2103 = vmatpush1.bf16.msra.mxu0 0
      %2104 = vmatprep.subr.bf16.mxu0 0
      %2105 = vmatpush1.bf16.msra.mxu0 0
      %2106 = vmatprep.subr.bf16.mxu0 0
      %2107 = vmatpush1.bf16.msra.mxu0 0
      %2108 = vmatprep.subr.bf16.mxu0 0
      %2109 = vmatpush1.bf16.msra.mxu0 0
      %2110 = vmatprep.mubr.bf16.mxu0 0
      %2111 = vmatmul.mubr.bf16.gmra.mrb[0].mxu0 %v441
      %v2112 = vpop.f32.mrb[0].mxu0
      %v2113 = vadd.f32 0.0, %v2112
      %v2114 = vpop.f32.mrb[0].mxu0
      %v2115 = vpop.f32.mrb[0].mxu0
      %v2116 = vadd.f32 0.0, %v2115
      %v2117 = vpop.f32.mrb[0].mxu0
      %2118 = vmatprep.mubr.bf16.mxu0 0
      %2119 = vmatmul.mubr.bf16.gmra.mrb[0].mxu0 %v444
      %v2120 = vpop.f32.mrb[0].mxu0
      %v2121 = vadd.f32 0.0, %v2120
      %v2122 = vpop.f32.mrb[0].mxu0
      %v2123 = vpop.f32.mrb[0].mxu0
      %v2124 = vadd.f32 0.0, %v2123
      %v2125 = vpop.f32.mrb[0].mxu0
      %2126 = vmatprep.mubr.bf16.mxu0 0
      %2127 = vmatmul.mubr.bf16.gmra.mrb[0].mxu0 %v447
      %v2128 = vpop.f32.mrb[0].mxu0
      %v2129 = vadd.f32 0.0, %v2128
      %v2130 = vpop.f32.mrb[0].mxu0
      %v2131 = vpop.f32.mrb[0].mxu0
      %v2132 = vadd.f32 0.0, %v2131
      %v2133 = vpop.f32.mrb[0].mxu0
      %2134 = vmatprep.mubr.bf16.mxu0 0
      %2135 = vmatmul.mubr.bf16.gmra.mrb[0].mxu0 %v450
      %v2136 = vpop.f32.mrb[0].mxu0
      %v2137 = vadd.f32 0.0, %v2136
      %v2138 = vpop.f32.mrb[0].mxu0
      %v2139 = vpop.f32.mrb[0].mxu0
      %v2140 = vadd.f32 0.0, %v2139
      %v2141 = vpop.f32.mrb[0].mxu0
      %2142 = vmatprep.mubr.bf16.mxu0 0
      %2143 = vmatmul.mubr.bf16.gmra.mrb[0].mxu0 %v453
      %v2144 = vpop.f32.mrb[0].mxu0
      %v2145 = vadd.f32 0.0, %v2144
      %v2146 = vpop.f32.mrb[0].mxu0
      %v2147 = vpop.f32.mrb[0].mxu0
      %v2148 = vadd.f32 0.0, %v2147
      %v2149 = vpop.f32.mrb[0].mxu0
      %2150 = vmatprep.mubr.bf16.mxu0 0
      %2151 = vmatmul.mubr.bf16.gmra.mrb[0].mxu0 %v456
      %v2152 = vpop.f32.mrb[0].mxu0
      %v2153 = vadd.f32 0.0, %v2152
      %v2154 = vpop.f32.mrb[0].mxu0
      %v2155 = vpop.f32.mrb[0].mxu0
      %v2156 = vadd.f32 0.0, %v2155
      %v2157 = vpop.f32.mrb[0].mxu0
      %2158 = vmatprep.mubr.bf16.mxu0 0
      %2159 = vmatmul.mubr.bf16.gmra.mrb[0].mxu0 %v459
      %v2160 = vpop.f32.mrb[0].mxu0
      %v2161 = vadd.f32 0.0, %v2160
      %v2162 = vpop.f32.mrb[0].mxu0
      %v2163 = vpop.f32.mrb[0].mxu0
      %v2164 = vadd.f32 0.0, %v2163
      %v2165 = vpop.f32.mrb[0].mxu0
      %2166 = vmatprep.mubr.bf16.mxu0 0
      %2167 = vmatmul.mubr.bf16.gmra.mrb[0].mxu0 %v462
      %v2168 = vpop.f32.mrb[0].mxu0
      %v2169 = vadd.f32 0.0, %v2168
      %v2170 = vpop.f32.mrb[0].mxu0
      %v2171 = vpop.f32.mrb[0].mxu0
      %v2172 = vadd.f32 0.0, %v2171
      %v2173 = vpop.f32.mrb[0].mxu0
      %2174 = vmatprep.mubr.bf16.mxu0 0
      %2175 = vmatmul.mubr.bf16.gmra.mrb[0].mxu0 %v465
      %v2176 = vpop.f32.mrb[0].mxu0
      %v2177 = vadd.f32 0.0, %v2176
      %v2178 = vpop.f32.mrb[0].mxu0
      %v2179 = vpop.f32.mrb[0].mxu0
      %v2180 = vadd.f32 0.0, %v2179
      %v2181 = vpop.f32.mrb[0].mxu0
      %2182 = vmatprep.mubr.bf16.mxu0 0
      %2183 = vmatmul.mubr.bf16.gmra.mrb[0].mxu0 %v468
      %v2184 = vpop.f32.mrb[0].mxu0
      %v2185 = vadd.f32 0.0, %v2184
      %v2186 = vpop.f32.mrb[0].mxu0
      %v2187 = vpop.f32.mrb[0].mxu0
      %v2188 = vadd.f32 0.0, %v2187
      %v2189 = vpop.f32.mrb[0].mxu0
      %2190 = vmatprep.mubr.bf16.mxu0 0
      %2191 = vmatmul.mubr.bf16.gmra.mrb[0].mxu0 %v471
      %v2192 = vpop.f32.mrb[0].mxu0
      %v2193 = vadd.f32 0.0, %v2192
      %v2194 = vpop.f32.mrb[0].mxu0
      %v2195 = vpop.f32.mrb[0].mxu0
      %v2196 = vadd.f32 0.0, %v2195
      %v2197 = vpop.f32.mrb[0].mxu0
      %2198 = vmatprep.mubr.bf16.mxu0 0
      %2199 = vmatmul.mubr.bf16.gmra.mrb[0].mxu0 %v474
      %v2200 = vpop.f32.mrb[0].mxu0
      %v2201 = vadd.f32 0.0, %v2200
      %v2202 = vpop.f32.mrb[0].mxu0
      %v2203 = vpop.f32.mrb[0].mxu0
      %v2204 = vadd.f32 0.0, %v2203
      %v2205 = vpop.f32.mrb[0].mxu0
      %2206 = vmatprep.mubr.bf16.mxu0 0
      %2207 = vmatmul.mubr.bf16.gmra.mrb[0].mxu0 %v477
      %v2208 = vpop.f32.mrb[0].mxu0
      %v2209 = vadd.f32 0.0, %v2208
      %v2210 = vpop.f32.mrb[0].mxu0
      %v2211 = vpop.f32.mrb[0].mxu0
      %v2212 = vadd.f32 0.0, %v2211
      %v2213 = vpop.f32.mrb[0].mxu0
      %2214 = vmatprep.mubr.bf16.mxu0 0
      %2215 = vmatmul.mubr.bf16.gmra.mrb[0].mxu0 %v480
      %v2216 = vpop.f32.mrb[0].mxu0
      %v2217 = vadd.f32 0.0, %v2216
      %v2218 = vpop.f32.mrb[0].mxu0
      %v2219 = vpop.f32.mrb[0].mxu0
      %v2220 = vadd.f32 0.0, %v2219
      %v2221 = vpop.f32.mrb[0].mxu0
      %2222 = vmatprep.mubr.bf16.mxu0 0
      %2223 = vmatmul.mubr.bf16.gmra.mrb[0].mxu0 %v1450
      %v2224 = vpop.f32.mrb[0].mxu0
      %v2225 = vadd.f32 0.0, %v2224
      %v2226 = vpop.f32.mrb[0].mxu0
      %v2227 = vpop.f32.mrb[0].mxu0
      %v2228 = vadd.f32 0.0, %v2227
      %v2229 = vpop.f32.mrb[0].mxu0
      %2230 = vmatprep.mubr.bf16.mxu0 0
      %2231 = vmatmul.mubr.bf16.gmra.mrb[0].mxu0 %v2073
      %v2232 = vpop.f32.mrb[0].mxu0
      %v2233 = vadd.f32 0.0, %v2232
      %v2234 = vpop.f32.mrb[0].mxu0
      %v2235 = vpop.f32.mrb[0].mxu0
      %v2236 = vadd.f32 0.0, %v2235
      %v2237 = vpop.f32.mrb[0].mxu0
      %2238 = vdwg.mxu0
      %v2239 = vadd.f32 %v2027, %v2113
      %v2240 = vadd.f32 %v2028, %v2116
      %v2241 = vadd.f32 %v2029, %v2121
      %v2242 = vadd.f32 %v2030, %v2124
      %v2243 = vadd.f32 %v2031, %v2129
      %v2244 = vadd.f32 %v2032, %v2132
      %v2245 = vadd.f32 %v2033, %v2137
      %v2246 = vadd.f32 %v2034, %v2140
      %v2247 = vadd.f32 %v2035, %v2145
      %v2248 = vadd.f32 %v2036, %v2148
      %v2249 = vadd.f32 %v2037, %v2153
      %v2250 = vadd.f32 %v2038, %v2156
      %v2251 = vadd.f32 %v2039, %v2161
      %v2252 = vadd.f32 %v2040, %v2164
      %v2253 = vadd.f32 %v2041, %v2169
      %v2254 = vadd.f32 %v2042, %v2172
      %v2255 = vadd.f32 %v2043, %v2177
      %v2256 = vadd.f32 %v2044, %v2180
      %v2257 = vadd.f32 %v2045, %v2185
      %v2258 = vadd.f32 %v2046, %v2188
      %v2259 = vadd.f32 %v2047, %v2193
      %v2260 = vadd.f32 %v2048, %v2196
      %v2261 = vadd.f32 %v2049, %v2201
      %v2262 = vadd.f32 %v2050, %v2204
      %v2263 = vadd.f32 %v2051, %v2209
      %v2264 = vadd.f32 %v2052, %v2212
      %v2265 = vadd.f32 %v2053, %v2217
      %v2266 = vadd.f32 %v2054, %v2220
      %v2267 = vadd.f32 %v2055, %v2225
      %v2268 = vadd.f32 %v2056, %v2228
      %v2269 = vadd.f32 %v2057, %v2233
      %v2270 = vadd.f32 %v2058, %v2236
      %v2271 = vrot.slane %v234, 2
      %v2272 = vrot.slane %v235, 2
      %v2273 = vsel %vm859, %v2271, %v2272
      %v2274 = vrot.slane %v236, 2
      %v2275 = vsel %vm859, %v2272, %v2274
      %v2278 = vpack.c.bf16 %v2275, %v2273
      %s2279 = scalar_lea.vmem %s1, 32
      %v2280 = vld [vmem:[%s2279] sm:$0xf]
      %v2282 = vsel %vm433, %v2278, 0
      %v2285 = vsel %vm482, %v2280, 0
      %2287 = vmatprep.subr.bf16.mxu0 0
      %2288 = vmatpush1.bf16.msra.mxu0 %v2285
      %2289 = vmatprep.subr.bf16.mxu0 0
      %2290 = vmatpush1.bf16.msra.mxu0 0
      %2291 = vmatprep.subr.bf16.mxu0 0
      %2292 = vmatpush1.bf16.msra.mxu0 0
      %2293 = vmatprep.subr.bf16.mxu0 0
      %2294 = vmatpush1.bf16.msra.mxu0 0
      %2295 = vmatprep.subr.bf16.mxu0 0
      %2296 = vmatpush1.bf16.msra.mxu0 0
      %2297 = vmatprep.subr.bf16.mxu0 0
      %2298 = vmatpush1.bf16.msra.mxu0 0
      %2299 = vmatprep.subr.bf16.mxu0 0
      %2300 = vmatpush1.bf16.msra.mxu0 0
      %2301 = vmatprep.subr.bf16.mxu0 0
      %2302 = vmatpush1.bf16.msra.mxu0 0
      %2303 = vmatprep.subr.bf16.mxu0 0
      %2304 = vmatpush1.bf16.msra.mxu0 0
      %2305 = vmatprep.subr.bf16.mxu0 0
      %2306 = vmatpush1.bf16.msra.mxu0 0
      %2307 = vmatprep.subr.bf16.mxu0 0
      %2308 = vmatpush1.bf16.msra.mxu0 0
      %2309 = vmatprep.subr.bf16.mxu0 0
      %2310 = vmatpush1.bf16.msra.mxu0 0
      %2311 = vmatprep.subr.bf16.mxu0 0
      %2312 = vmatpush1.bf16.msra.mxu0 0
      %2313 = vmatprep.subr.bf16.mxu0 0
      %2314 = vmatpush1.bf16.msra.mxu0 0
      %2315 = vmatprep.subr.bf16.mxu0 0
      %2316 = vmatpush1.bf16.msra.mxu0 0
      %2317 = vmatprep.subr.bf16.mxu0 0
      %2318 = vmatpush1.bf16.msra.mxu0 0
      %2319 = vmatprep.mubr.bf16.mxu0 0
      %2320 = vmatmul.mubr.bf16.gmra.mrb[0].mxu0 %v997
      %v2321 = vpop.f32.mrb[0].mxu0
      %v2322 = vadd.f32 0.0, %v2321
      %v2323 = vpop.f32.mrb[0].mxu0
      %v2324 = vpop.f32.mrb[0].mxu0
      %v2325 = vadd.f32 0.0, %v2324
      %v2326 = vpop.f32.mrb[0].mxu0
      %2327 = vmatprep.mubr.bf16.mxu0 0
      %2328 = vmatmul.mubr.bf16.gmra.mrb[0].mxu0 %v1000
      %v2329 = vpop.f32.mrb[0].mxu0
      %v2330 = vadd.f32 0.0, %v2329
      %v2331 = vpop.f32.mrb[0].mxu0
      %v2332 = vpop.f32.mrb[0].mxu0
      %v2333 = vadd.f32 0.0, %v2332
      %v2334 = vpop.f32.mrb[0].mxu0
      %2335 = vmatprep.mubr.bf16.mxu0 0
      %2336 = vmatmul.mubr.bf16.gmra.mrb[0].mxu0 %v1003
      %v2337 = vpop.f32.mrb[0].mxu0
      %v2338 = vadd.f32 0.0, %v2337
      %v2339 = vpop.f32.mrb[0].mxu0
      %v2340 = vpop.f32.mrb[0].mxu0
      %v2341 = vadd.f32 0.0, %v2340
      %v2342 = vpop.f32.mrb[0].mxu0
      %2343 = vmatprep.mubr.bf16.mxu0 0
      %2344 = vmatmul.mubr.bf16.gmra.mrb[0].mxu0 %v1006
      %v2345 = vpop.f32.mrb[0].mxu0
      %v2346 = vadd.f32 0.0, %v2345
      %v2347 = vpop.f32.mrb[0].mxu0
      %v2348 = vpop.f32.mrb[0].mxu0
      %v2349 = vadd.f32 0.0, %v2348
      %v2350 = vpop.f32.mrb[0].mxu0
      %2351 = vmatprep.mubr.bf16.mxu0 0
      %2352 = vmatmul.mubr.bf16.gmra.mrb[0].mxu0 %v1009
      %v2353 = vpop.f32.mrb[0].mxu0
      %v2354 = vadd.f32 0.0, %v2353
      %v2355 = vpop.f32.mrb[0].mxu0
      %v2356 = vpop.f32.mrb[0].mxu0
      %v2357 = vadd.f32 0.0, %v2356
      %v2358 = vpop.f32.mrb[0].mxu0
      %2359 = vmatprep.mubr.bf16.mxu0 0
      %2360 = vmatmul.mubr.bf16.gmra.mrb[0].mxu0 %v1012
      %v2361 = vpop.f32.mrb[0].mxu0
      %v2362 = vadd.f32 0.0, %v2361
      %v2363 = vpop.f32.mrb[0].mxu0
      %v2364 = vpop.f32.mrb[0].mxu0
      %v2365 = vadd.f32 0.0, %v2364
      %v2366 = vpop.f32.mrb[0].mxu0
      %2367 = vmatprep.mubr.bf16.mxu0 0
      %2368 = vmatmul.mubr.bf16.gmra.mrb[0].mxu0 %v1015
      %v2369 = vpop.f32.mrb[0].mxu0
      %v2370 = vadd.f32 0.0, %v2369
      %v2371 = vpop.f32.mrb[0].mxu0
      %v2372 = vpop.f32.mrb[0].mxu0
      %v2373 = vadd.f32 0.0, %v2372
      %v2374 = vpop.f32.mrb[0].mxu0
      %2375 = vmatprep.mubr.bf16.mxu0 0
      %2376 = vmatmul.mubr.bf16.gmra.mrb[0].mxu0 %v1018
      %v2377 = vpop.f32.mrb[0].mxu0
      %v2378 = vadd.f32 0.0, %v2377
      %v2379 = vpop.f32.mrb[0].mxu0
      %v2380 = vpop.f32.mrb[0].mxu0
      %v2381 = vadd.f32 0.0, %v2380
      %v2382 = vpop.f32.mrb[0].mxu0
      %2383 = vmatprep.mubr.bf16.mxu0 0
      %2384 = vmatmul.mubr.bf16.gmra.mrb[0].mxu0 %v1021
      %v2385 = vpop.f32.mrb[0].mxu0
      %v2386 = vadd.f32 0.0, %v2385
      %v2387 = vpop.f32.mrb[0].mxu0
      %v2388 = vpop.f32.mrb[0].mxu0
      %v2389 = vadd.f32 0.0, %v2388
      %v2390 = vpop.f32.mrb[0].mxu0
      %2391 = vmatprep.mubr.bf16.mxu0 0
      %2392 = vmatmul.mubr.bf16.gmra.mrb[0].mxu0 %v1024
      %v2393 = vpop.f32.mrb[0].mxu0
      %v2394 = vadd.f32 0.0, %v2393
      %v2395 = vpop.f32.mrb[0].mxu0
      %v2396 = vpop.f32.mrb[0].mxu0
      %v2397 = vadd.f32 0.0, %v2396
      %v2398 = vpop.f32.mrb[0].mxu0
      %2399 = vmatprep.mubr.bf16.mxu0 0
      %2400 = vmatmul.mubr.bf16.gmra.mrb[0].mxu0 %v1027
      %v2401 = vpop.f32.mrb[0].mxu0
      %v2402 = vadd.f32 0.0, %v2401
      %v2403 = vpop.f32.mrb[0].mxu0
      %v2404 = vpop.f32.mrb[0].mxu0
      %v2405 = vadd.f32 0.0, %v2404
      %v2406 = vpop.f32.mrb[0].mxu0
      %2407 = vmatprep.mubr.bf16.mxu0 0
      %2408 = vmatmul.mubr.bf16.gmra.mrb[0].mxu0 %v1030
      %v2409 = vpop.f32.mrb[0].mxu0
      %v2410 = vadd.f32 0.0, %v2409
      %v2411 = vpop.f32.mrb[0].mxu0
      %v2412 = vpop.f32.mrb[0].mxu0
      %v2413 = vadd.f32 0.0, %v2412
      %v2414 = vpop.f32.mrb[0].mxu0
      %2415 = vmatprep.mubr.bf16.mxu0 0
      %2416 = vmatmul.mubr.bf16.gmra.mrb[0].mxu0 %v1033
      %v2417 = vpop.f32.mrb[0].mxu0
      %v2418 = vadd.f32 0.0, %v2417
      %v2419 = vpop.f32.mrb[0].mxu0
      %v2420 = vpop.f32.mrb[0].mxu0
      %v2421 = vadd.f32 0.0, %v2420
      %v2422 = vpop.f32.mrb[0].mxu0
      %2423 = vmatprep.mubr.bf16.mxu0 0
      %2424 = vmatmul.mubr.bf16.gmra.mrb[0].mxu0 %v1036
      %v2425 = vpop.f32.mrb[0].mxu0
      %v2426 = vadd.f32 0.0, %v2425
      %v2427 = vpop.f32.mrb[0].mxu0
      %v2428 = vpop.f32.mrb[0].mxu0
      %v2429 = vadd.f32 0.0, %v2428
      %v2430 = vpop.f32.mrb[0].mxu0
      %2431 = vmatprep.mubr.bf16.mxu0 0
      %2432 = vmatmul.mubr.bf16.gmra.mrb[0].mxu0 %v1659
      %v2433 = vpop.f32.mrb[0].mxu0
      %v2434 = vadd.f32 0.0, %v2433
      %v2435 = vpop.f32.mrb[0].mxu0
      %v2436 = vpop.f32.mrb[0].mxu0
      %v2437 = vadd.f32 0.0, %v2436
      %v2438 = vpop.f32.mrb[0].mxu0
      %2439 = vmatprep.mubr.bf16.mxu0 0
      %2440 = vmatmul.mubr.bf16.gmra.mrb[0].mxu0 %v2282
      %v2441 = vpop.f32.mrb[0].mxu0
      %v2442 = vadd.f32 0.0, %v2441
      %v2443 = vpop.f32.mrb[0].mxu0
      %v2444 = vpop.f32.mrb[0].mxu0
      %v2445 = vadd.f32 0.0, %v2444
      %v2446 = vpop.f32.mrb[0].mxu0
      %2447 = vdwg.mxu0
      %v2448 = vadd.f32 %v2239, %v2322
      %v2449 = vadd.f32 %v2240, %v2325
      %v2450 = vadd.f32 %v2241, %v2330
      %v2451 = vadd.f32 %v2242, %v2333
      %v2452 = vadd.f32 %v2243, %v2338
      %v2453 = vadd.f32 %v2244, %v2341
      %v2454 = vadd.f32 %v2245, %v2346
      %v2455 = vadd.f32 %v2246, %v2349
      %v2456 = vadd.f32 %v2247, %v2354
      %v2457 = vadd.f32 %v2248, %v2357
      %v2458 = vadd.f32 %v2249, %v2362
      %v2459 = vadd.f32 %v2250, %v2365
      %v2460 = vadd.f32 %v2251, %v2370
      %v2461 = vadd.f32 %v2252, %v2373
      %v2462 = vadd.f32 %v2253, %v2378
      %v2463 = vadd.f32 %v2254, %v2381
      %v2464 = vadd.f32 %v2255, %v2386
      %v2465 = vadd.f32 %v2256, %v2389
      %v2466 = vadd.f32 %v2257, %v2394
      %v2467 = vadd.f32 %v2258, %v2397
      %v2468 = vadd.f32 %v2259, %v2402
      %v2469 = vadd.f32 %v2260, %v2405
      %v2470 = vadd.f32 %v2261, %v2410
      %v2471 = vadd.f32 %v2262, %v2413
      %v2472 = vadd.f32 %v2263, %v2418
      %v2473 = vadd.f32 %v2264, %v2421
      %v2474 = vadd.f32 %v2265, %v2426
      %v2475 = vadd.f32 %v2266, %v2429
      %v2476 = vadd.f32 %v2267, %v2434
      %v2477 = vadd.f32 %v2268, %v2437
      %v2478 = vadd.f32 %v2269, %v2442
      %v2479 = vadd.f32 %v2270, %v2445
      %vm2480 = vcmask 31744
      %2481 = vst.msk [vmem:[%s177] sm:$0xff] %vm2480, %v2448
      %2482 = vst.msk [vmem:[%s177 + $0x8] sm:$0xff] %vm2480, %v2449
      %2483 = vst.msk [vmem:[%s177 + $0x10] sm:$0xff] %vm2480, %v2450
      %2484 = vst.msk [vmem:[%s177 + $0x18] sm:$0xff] %vm2480, %v2451
      %2485 = vst.msk [vmem:[%s177 + $0x20] sm:$0xff] %vm2480, %v2452
      %2486 = vst.msk [vmem:[%s177 + $0x28] sm:$0xff] %vm2480, %v2453
      %2487 = vst.msk [vmem:[%s177 + $0x30] sm:$0xff] %vm2480, %v2454
      %2488 = vst.msk [vmem:[%s177 + $0x38] sm:$0xff] %vm2480, %v2455
      %2489 = vst.msk [vmem:[%s177 + $0x40] sm:$0xff] %vm2480, %v2456
      %2490 = vst.msk [vmem:[%s177 + $0x48] sm:$0xff] %vm2480, %v2457
      %2491 = vst.msk [vmem:[%s177 + $0x50] sm:$0xff] %vm2480, %v2458
      %2492 = vst.msk [vmem:[%s177 + $0x58] sm:$0xff] %vm2480, %v2459
      %2493 = vst.msk [vmem:[%s177 + $0x60] sm:$0xff] %vm2480, %v2460
      %2494 = vst.msk [vmem:[%s177 + $0x68] sm:$0xff] %vm2480, %v2461
      %2495 = vst.msk [vmem:[%s177 + $0x70] sm:$0xff] %vm2480, %v2462
      %2496 = vst.msk [vmem:[%s177 + $0x78] sm:$0xff] %vm2480, %v2463
      %2497 = vst.msk [vmem:[%s177 + $0x80] sm:$0xff] %vm2480, %v2464
      %2498 = vst.msk [vmem:[%s177 + $0x88] sm:$0xff] %vm2480, %v2465
      %2499 = vst.msk [vmem:[%s177 + $0x90] sm:$0xff] %vm2480, %v2466
      %2500 = vst.msk [vmem:[%s177 + $0x98] sm:$0xff] %vm2480, %v2467
      %2501 = vst.msk [vmem:[%s177 + $0xa0] sm:$0xff] %vm2480, %v2468
      %2502 = vst.msk [vmem:[%s177 + $0xa8] sm:$0xff] %vm2480, %v2469
      %2503 = vst.msk [vmem:[%s177 + $0xb0] sm:$0xff] %vm2480, %v2470
      %2504 = vst.msk [vmem:[%s177 + $0xb8] sm:$0xff] %vm2480, %v2471
      %2505 = vst.msk [vmem:[%s177 + $0xc0] sm:$0xff] %vm2480, %v2472
      %2506 = vst.msk [vmem:[%s177 + $0xc8] sm:$0xff] %vm2480, %v2473
      %2507 = vst.msk [vmem:[%s177 + $0xd0] sm:$0xff] %vm2480, %v2474
      %2508 = vst.msk [vmem:[%s177 + $0xd8] sm:$0xff] %vm2480, %v2475
      %2509 = vst.msk [vmem:[%s177 + $0xe0] sm:$0xff] %vm2480, %v2476
      %2510 = vst.msk [vmem:[%s177 + $0xe8] sm:$0xff] %vm2480, %v2477
      %2511 = vst.msk [vmem:[%s177 + $0xf0] sm:$0xff] %vm2480, %v2478
      %2512 = vst.msk [vmem:[%s177 + $0xf8] sm:$0xff] %vm2480, %v2479
      %v2513 = vsel %vm2480, %v2448, 0.0
      %v2514 = vsel %vm2480, %v2449, 0.0
      %v2515 = vadd.f32 %v2513, %v2514
      %v2516 = vsel %vm2480, %v2450, 0.0
      %v2517 = vadd.f32 %v2515, %v2516
      %v2518 = vsel %vm2480, %v2451, 0.0
      %v2519 = vadd.f32 %v2517, %v2518
      %v2520 = vsel %vm2480, %v2452, 0.0
      %v2521 = vadd.f32 %v2519, %v2520
      %v2522 = vsel %vm2480, %v2453, 0.0
      %v2523 = vadd.f32 %v2521, %v2522
      %v2524 = vsel %vm2480, %v2454, 0.0
      %v2525 = vadd.f32 %v2523, %v2524
      %v2526 = vsel %vm2480, %v2455, 0.0
      %v2527 = vadd.f32 %v2525, %v2526
      %v2528 = vsel %vm2480, %v2456, 0.0
      %v2529 = vadd.f32 %v2527, %v2528
      %v2530 = vsel %vm2480, %v2457, 0.0
      %v2531 = vadd.f32 %v2529, %v2530
      %v2532 = vsel %vm2480, %v2458, 0.0
      %v2533 = vadd.f32 %v2531, %v2532
      %v2534 = vsel %vm2480, %v2459, 0.0
      %v2535 = vadd.f32 %v2533, %v2534
      %v2536 = vsel %vm2480, %v2460, 0.0
      %v2537 = vadd.f32 %v2535, %v2536
      %v2538 = vsel %vm2480, %v2461, 0.0
      %v2539 = vadd.f32 %v2537, %v2538
      %v2540 = vsel %vm2480, %v2462, 0.0
      %v2541 = vadd.f32 %v2539, %v2540
      %v2542 = vsel %vm2480, %v2463, 0.0
      %v2543 = vadd.f32 %v2541, %v2542
      %v2544 = vsel %vm2480, %v2464, 0.0
      %v2545 = vadd.f32 %v2543, %v2544
      %v2546 = vsel %vm2480, %v2465, 0.0
      %v2547 = vadd.f32 %v2545, %v2546
      %v2548 = vsel %vm2480, %v2466, 0.0
      %v2549 = vadd.f32 %v2547, %v2548
      %v2550 = vsel %vm2480, %v2467, 0.0
      %v2551 = vadd.f32 %v2549, %v2550
      %v2552 = vsel %vm2480, %v2468, 0.0
      %v2553 = vadd.f32 %v2551, %v2552
      %v2554 = vsel %vm2480, %v2469, 0.0
      %v2555 = vadd.f32 %v2553, %v2554
      %v2556 = vsel %vm2480, %v2470, 0.0
      %v2557 = vadd.f32 %v2555, %v2556
      %v2558 = vsel %vm2480, %v2471, 0.0
      %v2559 = vadd.f32 %v2557, %v2558
      %v2560 = vsel %vm2480, %v2472, 0.0
      %v2561 = vadd.f32 %v2559, %v2560
      %v2562 = vsel %vm2480, %v2473, 0.0
      %v2563 = vadd.f32 %v2561, %v2562
      %v2564 = vsel %vm2480, %v2474, 0.0
      %v2565 = vadd.f32 %v2563, %v2564
      %v2566 = vsel %vm2480, %v2475, 0.0
      %v2567 = vadd.f32 %v2565, %v2566
      %v2568 = vsel %vm2480, %v2476, 0.0
      %v2569 = vadd.f32 %v2567, %v2568
      %v2570 = vsel %vm2480, %v2477, 0.0
      %v2571 = vadd.f32 %v2569, %v2570
      %v2572 = vsel %vm2480, %v2478, 0.0
      %v2573 = vadd.f32 %v2571, %v2572
      %v2574 = vsel %vm2480, %v2479, 0.0
      %v2575 = vadd.f32 %v2573, %v2574
      %v2576 = vrot.slane %v2575, 4
      %v2577 = vadd.f32 %v2575, %v2576
      %v2578 = vrot.slane %v2577, 2
      %v2579 = vadd.f32 %v2577, %v2578
      %v2580 = vrot.slane %v2579, 1
      %v2581 = vadd.f32 %v2579, %v2580
      %vm2582 = vcmask 24576
      %2583 = vst.msk [vmem:[%s181] sm:$0x1] %vm2582, %v2581
      %v2584 = vmul.f32 %v2448, %v2448
      %v2585 = vmul.f32 %v2449, %v2449
      %v2586 = vmul.f32 %v2450, %v2450
      %v2587 = vmul.f32 %v2451, %v2451
      %v2588 = vmul.f32 %v2452, %v2452
      %v2589 = vmul.f32 %v2453, %v2453
      %v2590 = vmul.f32 %v2454, %v2454
      %v2591 = vmul.f32 %v2455, %v2455
      %v2592 = vmul.f32 %v2456, %v2456
      %v2593 = vmul.f32 %v2457, %v2457
      %v2594 = vmul.f32 %v2458, %v2458
      %v2595 = vmul.f32 %v2459, %v2459
      %v2596 = vmul.f32 %v2460, %v2460
      %v2597 = vmul.f32 %v2461, %v2461
      %v2598 = vmul.f32 %v2462, %v2462
      %v2599 = vmul.f32 %v2463, %v2463
      %v2600 = vmul.f32 %v2464, %v2464
      %v2601 = vmul.f32 %v2465, %v2465
      %v2602 = vmul.f32 %v2466, %v2466
      %v2603 = vmul.f32 %v2467, %v2467
      %v2604 = vmul.f32 %v2468, %v2468
      %v2605 = vmul.f32 %v2469, %v2469
      %v2606 = vmul.f32 %v2470, %v2470
      %v2607 = vmul.f32 %v2471, %v2471
      %v2608 = vmul.f32 %v2472, %v2472
      %v2609 = vmul.f32 %v2473, %v2473
      %v2610 = vmul.f32 %v2474, %v2474
      %v2611 = vmul.f32 %v2475, %v2475
      %v2612 = vmul.f32 %v2476, %v2476
      %v2613 = vmul.f32 %v2477, %v2477
      %v2614 = vmul.f32 %v2478, %v2478
      %v2615 = vmul.f32 %v2479, %v2479
      %v2616 = vsel %vm2480, %v2584, 0.0
      %v2617 = vsel %vm2480, %v2585, 0.0
      %v2618 = vadd.f32 %v2616, %v2617
      %v2619 = vsel %vm2480, %v2586, 0.0
      %v2620 = vadd.f32 %v2618, %v2619
      %v2621 = vsel %vm2480, %v2587, 0.0
      %v2622 = vadd.f32 %v2620, %v2621
      %v2623 = vsel %vm2480, %v2588, 0.0
      %v2624 = vadd.f32 %v2622, %v2623
      %v2625 = vsel %vm2480, %v2589, 0.0
      %v2626 = vadd.f32 %v2624, %v2625
      %v2627 = vsel %vm2480, %v2590, 0.0
      %v2628 = vadd.f32 %v2626, %v2627
      %v2629 = vsel %vm2480, %v2591, 0.0
      %v2630 = vadd.f32 %v2628, %v2629
      %v2631 = vsel %vm2480, %v2592, 0.0
      %v2632 = vadd.f32 %v2630, %v2631
      %v2633 = vsel %vm2480, %v2593, 0.0
      %v2634 = vadd.f32 %v2632, %v2633
      %v2635 = vsel %vm2480, %v2594, 0.0
      %v2636 = vadd.f32 %v2634, %v2635
      %v2637 = vsel %vm2480, %v2595, 0.0
      %v2638 = vadd.f32 %v2636, %v2637
      %v2639 = vsel %vm2480, %v2596, 0.0
      %v2640 = vadd.f32 %v2638, %v2639
      %v2641 = vsel %vm2480, %v2597, 0.0
      %v2642 = vadd.f32 %v2640, %v2641
      %v2643 = vsel %vm2480, %v2598, 0.0
      %v2644 = vadd.f32 %v2642, %v2643
      %v2645 = vsel %vm2480, %v2599, 0.0
      %v2646 = vadd.f32 %v2644, %v2645
      %v2647 = vsel %vm2480, %v2600, 0.0
      %v2648 = vadd.f32 %v2646, %v2647
      %v2649 = vsel %vm2480, %v2601, 0.0
      %v2650 = vadd.f32 %v2648, %v2649
      %v2651 = vsel %vm2480, %v2602, 0.0
      %v2652 = vadd.f32 %v2650, %v2651
      %v2653 = vsel %vm2480, %v2603, 0.0
      %v2654 = vadd.f32 %v2652, %v2653
      %v2655 = vsel %vm2480, %v2604, 0.0
      %v2656 = vadd.f32 %v2654, %v2655
      %v2657 = vsel %vm2480, %v2605, 0.0
      %v2658 = vadd.f32 %v2656, %v2657
      %v2659 = vsel %vm2480, %v2606, 0.0
      %v2660 = vadd.f32 %v2658, %v2659
      %v2661 = vsel %vm2480, %v2607, 0.0
      %v2662 = vadd.f32 %v2660, %v2661
      %v2663 = vsel %vm2480, %v2608, 0.0
      %v2664 = vadd.f32 %v2662, %v2663
      %v2665 = vsel %vm2480, %v2609, 0.0
      %v2666 = vadd.f32 %v2664, %v2665
      %v2667 = vsel %vm2480, %v2610, 0.0
      %v2668 = vadd.f32 %v2666, %v2667
      %v2669 = vsel %vm2480, %v2611, 0.0
      %v2670 = vadd.f32 %v2668, %v2669
      %v2671 = vsel %vm2480, %v2612, 0.0
      %v2672 = vadd.f32 %v2670, %v2671
      %v2673 = vsel %vm2480, %v2613, 0.0
      %v2674 = vadd.f32 %v2672, %v2673
      %v2675 = vsel %vm2480, %v2614, 0.0
      %v2676 = vadd.f32 %v2674, %v2675
      %v2677 = vsel %vm2480, %v2615, 0.0
      %v2678 = vadd.f32 %v2676, %v2677
      %v2679 = vrot.slane %v2678, 4
      %v2680 = vadd.f32 %v2678, %v2679
      %v2681 = vrot.slane %v2680, 2
      %v2682 = vadd.f32 %v2680, %v2681
      %v2683 = vrot.slane %v2682, 1
      %v2684 = vadd.f32 %v2682, %v2683
      %2685 = vst.msk [vmem:[%s181 + $0x1] sm:$0x1] %vm2582, %v2684
      %p2686 = scmp.lt.s32.totalorder %s15, 1
      %s2687 = scalar_select %p2686, %s15, 1
      %s2688 = smul.addr %s2687, 32
      %s2689 = smul.addr %s2688, 8
      %s2690 = scalar_lea.vmem %s2, %s2689
      %p2691 = scmp.lt.s32.totalorder %s15, 1
      %s2692 = scalar_select %p2691, %s15, 1
      %s2693 = smul.addr %s2692, 2
      %s2694 = scalar_lea.vmem %s3, %s2693
      // Predicated region
      $region29: #{up_forward.3} parent=27 // pred_check
        %p2695 = pneg %p80
      $region30: #{up_forward.3} parent=27 // pred_check_branch
        %2697 = sbr.rel (%p2695) target = $region32
      $region31: #{up_forward.3} parent=27 // pred_region
        _
      $region32: #{up_forward.3} parent=27 // pred_fallthru
        _
      // Predicated region
      $region33: #{up_forward.3} parent=27 // pred_check
        %p2698 = pneg %p106
      $region34: #{up_forward.3} parent=27 // pred_check_branch
        %2700 = sbr.rel (%p2698) target = $region36
      $region35: #{up_forward.3} parent=27 // pred_region
        _
      $region36: #{up_forward.3} parent=27 // pred_fallthru
        _
    $region28: #{up_forward.3} parent=5 // pred_fallthru
      _
    %p2701 = scmp.le.s32.totalorder 2, %s10
    // Predicated region
    $region37: #{up_forward.3} parent=5 // pred_check
      %p2702 = pneg %p2701
    $region38: #{up_forward.3} parent=5 // pred_check_branch
      %2704 = sbr.rel (%p2702) target = $region40
    $region39: #{up_forward.3} parent=5 // pred_region
      %s2705 = ssub.s32 %s10, 2
      // Predicated region
      $region41: #{up_forward.3} parent=39 // pred_check
        %p2706 = pneg %p86
      $region42: #{up_forward.3} parent=39 // pred_check_branch
        %2708 = sbr.rel (%p2706) target = $region44
      $region43: #{up_forward.3} parent=39 // pred_region
        %p2709 = scmp.lt.s32.totalorder %s16, 1
        %s2710 = scalar_select %p2709, %s16, 1
        %s2711 = smul.addr %s2710, 32
        %s2712 = smul.addr %s2711, 8
        %s2713 = scalar_lea.vmem %s2, %s2712
      $region44: #{up_forward.3} parent=39 // pred_fallthru
        _
      // Predicated region
      $region45: #{up_forward.3} parent=39 // pred_check
        %p2714 = pneg %p112
      $region46: #{up_forward.3} parent=39 // pred_check_branch
        %2716 = sbr.rel (%p2714) target = $region48
      $region47: #{up_forward.3} parent=39 // pred_region
        %p2717 = scmp.lt.s32.totalorder %s16, 1
        %s2718 = scalar_select %p2717, %s16, 1
        %s2719 = smul.addr %s2718, 2
        %s2720 = scalar_lea.vmem %s3, %s2719
      $region48: #{up_forward.3} parent=39 // pred_fallthru
        _
    $region40: #{up_forward.3} parent=5 // pred_fallthru
      _
  $region6: #{up_forward.3} parent=0 // loop_footer
    %s14 = sadd.s32 1, %s10
  $region7: #{up_forward.3} parent=0 // loop_footer_branch
    %9 = sbr.rel target = $region3
  $region8: #{up_forward.3} parent=0 // loop_exit
    _

// kernel: up_forward.4
$region0: #{up_forward.4}
  #allocation0 [shape = 'u32[]', space=smem, size = 0x4, offset = 0x4, fixed_abs, tag = 'smem constant byte address 0x4 - core index']
  #allocation1 [shape = 'u32[144,128]{1,0:T(1,128)}', space=vmem, size = 0x12000, scoped, tag = 'internal scratch']
  %s0 = inlined_call_operand.vmem [shape: f32[2,18,18,4], index: 0, kind: input, shape index: {}]
  %s1 = inlined_call_operand.vmem [shape: bf16[3,3,4,4], index: 1, kind: input, shape index: {}]
  %s2 = inlined_call_operand.vmem [shape: f32[1,4], index: 2, kind: input, shape index: {}]
  %s3 = inlined_call_operand.vmem [shape: f32[1,4], index: 3, kind: input, shape index: {}]
  %s4 = inlined_call_operand.vmem [shape: f32[2,16,16,4], index: 4, kind: output, shape index: {0}]
  %s5 = inlined_call_operand.vmem [shape: f32[2,2,4], index: 5, kind: output, shape index: {1}]
  %6 = xla_tuple %s4, %s5
  %s7 = sld [smem:[#allocation0]]
  $region57: #{up_forward.4} parent=0
    _
  %s9 = ssub.s32 1, %s7
  %s10 = scalar_select 0, %s9, %s7
  loop: start=0, step=1, limit=4
  $region2: #{up_forward.4} parent=0 // loop_pre_header
    _
  $region3: #{up_forward.4} parent=0 // loop_header
    %s12 = sphi 0, %s16
    %p13 = scmp.ge.s32.totalorder %s12, 4
    %s22 = sphi 0, %s24
    %s25 = sphi 0, %s22
    %s26 = sphi 0, %s25
    %s42 = sphi 0, %s26
    %s46 = sphi 0, %s46
    %s48 = sphi 0, %s46
    %s49 = sphi 0, %s48
    %s63 = sphi 0, %s49
    %s67 = sphi 0, %s67
    %s69 = sphi 0, %s67
    %s70 = sphi 0, %s69
    %s84 = sphi 0, %s70
    %s88 = sphi 0, %s88
    %s90 = sphi 0, %s88
    %s91 = sphi 0, %s90
    %s105 = sphi 0, %s91
    %s111 = sphi 0, %s113
    %s114 = sphi 0, %s111
    %s115 = sphi 0, %s114
    %s131 = sphi 0, %s115
    %s137 = sphi 0, %s139
    %s140 = sphi 0, %s137
    %s141 = sphi 0, %s140
    %s157 = sphi 0, %s141
  $region4: #{up_forward.4} parent=0 // loop_header_branch
    %15 = sbr.rel (%p13) target = $region8
  $region5: #{up_forward.4} parent=0 // loop_body
    %s17 = ssub.s32 %s12, 1
    %s18 = ssub.s32 %s12, 2
    %s19 = sadd.s32 %s12, 1
    %s20 = ssub.s32 %s12, %s19
    %p21 = scmp.eq.s32.totalorder %s20, 0
    %s23 = sadd.s32 %s22, 1
    %s24 = scalar_select %p21, %s22, %s23
    %p27 = pneg %p21
    %p28 = scmp.eq.s32.totalorder %s12, 1
    %p29 = por %p27, %p28
    %p30 = scmp.ne.s32.totalorder %s22, %s25
    %p31 = scmp.eq.s32.totalorder %s12, 0
    %p32 = por %p30, %p31
    %p33 = scmp.ne.s32.totalorder %s22, %s25
    %p34 = scmp.eq.s32.totalorder %s17, 1
    %p35 = por %p33, %p34
    %p36 = scmp.ne.s32.totalorder %s25, %s26
    %p37 = scmp.eq.s32.totalorder %s17, 0
    %p38 = por %p36, %p37
    %p39 = scmp.ne.s32.totalorder %s25, %s26
    %p40 = scmp.eq.s32.totalorder %s18, 1
    %p41 = por %p39, %p40
    %p43 = scmp.ne.s32.totalorder %s26, %s42
    %p44 = scmp.eq.s32.totalorder %s18, 0
    %p45 = por %p43, %p44
    %s47 = sadd.s32 %s46, 1
    %p50 = scmp.eq.s32.totalorder %s12, 1
    %p51 = scmp.ne.s32.totalorder %s46, %s48
    %p52 = scmp.eq.s32.totalorder %s12, 0
    %p53 = por %p51, %p52
    %p54 = scmp.ne.s32.totalorder %s46, %s48
    %p55 = scmp.eq.s32.totalorder %s17, 1
    %p56 = por %p54, %p55
    %p57 = scmp.ne.s32.totalorder %s48, %s49
    %p58 = scmp.eq.s32.totalorder %s17, 0
    %p59 = por %p57, %p58
    %p60 = scmp.ne.s32.totalorder %s48, %s49
    %p61 = scmp.eq.s32.totalorder %s18, 1
    %p62 = por %p60, %p61
    %p64 = scmp.ne.s32.totalorder %s49, %s63
    %p65 = scmp.eq.s32.totalorder %s18, 0
    %p66 = por %p64, %p65
    %s68 = sadd.s32 %s67, 1
    %p71 = scmp.eq.s32.totalorder %s12, 1
    %p72 = scmp.ne.s32.totalorder %s67, %s69
    %p73 = scmp.eq.s32.totalorder %s12, 0
    %p74 = por %p72, %p73
    %p75 = scmp.ne.s32.totalorder %s67, %s69
    %p76 = scmp.eq.s32.totalorder %s17, 1
    %p77 = por %p75, %p76
    %p78 = scmp.ne.s32.totalorder %s69, %s70
    %p79 = scmp.eq.s32.totalorder %s17, 0
    %p80 = por %p78, %p79
    %p81 = scmp.ne.s32.totalorder %s69, %s70
    %p82 = scmp.eq.s32.totalorder %s18, 1
    %p83 = por %p81, %p82
    %p85 = scmp.ne.s32.totalorder %s70, %s84
    %p86 = scmp.eq.s32.totalorder %s18, 0
    %p87 = por %p85, %p86
    %s89 = sadd.s32 %s88, 1
    %p92 = scmp.eq.s32.totalorder %s12, 1
    %p93 = scmp.ne.s32.totalorder %s88, %s90
    %p94 = scmp.eq.s32.totalorder %s12, 0
    %p95 = por %p93, %p94
    %p96 = scmp.ne.s32.totalorder %s88, %s90
    %p97 = scmp.eq.s32.totalorder %s17, 1
    %p98 = por %p96, %p97
    %p99 = scmp.ne.s32.totalorder %s90, %s91
    %p100 = scmp.eq.s32.totalorder %s17, 0
    %p101 = por %p99, %p100
    %p102 = scmp.ne.s32.totalorder %s90, %s91
    %p103 = scmp.eq.s32.totalorder %s18, 1
    %p104 = por %p102, %p103
    %p106 = scmp.ne.s32.totalorder %s91, %s105
    %p107 = scmp.eq.s32.totalorder %s18, 0
    %p108 = por %p106, %p107
    %s109 = ssub.s32 %s12, %s19
    %p110 = scmp.eq.s32.totalorder %s109, 0
    %s112 = sadd.s32 %s111, 1
    %s113 = scalar_select %p110, %s111, %s112
    %p116 = pneg %p110
    %p117 = scmp.eq.s32.totalorder %s12, 1
    %p118 = por %p116, %p117
    %p119 = scmp.ne.s32.totalorder %s111, %s114
    %p120 = scmp.eq.s32.totalorder %s12, 0
    %p121 = por %p119, %p120
    %p122 = scmp.ne.s32.totalorder %s111, %s114
    %p123 = scmp.eq.s32.totalorder %s17, 1
    %p124 = por %p122, %p123
    %p125 = scmp.ne.s32.totalorder %s114, %s115
    %p126 = scmp.eq.s32.totalorder %s17, 0
    %p127 = por %p125, %p126
    %p128 = scmp.ne.s32.totalorder %s114, %s115
    %p129 = scmp.eq.s32.totalorder %s18, 1
    %p130 = por %p128, %p129
    %p132 = scmp.ne.s32.totalorder %s115, %s131
    %p133 = scmp.eq.s32.totalorder %s18, 0
    %p134 = por %p132, %p133
    %s135 = ssub.s32 %s12, %s19
    %p136 = scmp.eq.s32.totalorder %s135, 0
    %s138 = sadd.s32 %s137, 1
    %s139 = scalar_select %p136, %s137, %s138
    %p142 = pneg %p136
    %p143 = scmp.eq.s32.totalorder %s12, 1
    %p144 = por %p142, %p143
    %p145 = scmp.ne.s32.totalorder %s137, %s140
    %p146 = scmp.eq.s32.totalorder %s12, 0
    %p147 = por %p145, %p146
    %p148 = scmp.ne.s32.totalorder %s137, %s140
    %p149 = scmp.eq.s32.totalorder %s17, 1
    %p150 = por %p148, %p149
    %p151 = scmp.ne.s32.totalorder %s140, %s141
    %p152 = scmp.eq.s32.totalorder %s17, 0
    %p153 = por %p151, %p152
    %p154 = scmp.ne.s32.totalorder %s140, %s141
    %p155 = scmp.eq.s32.totalorder %s18, 1
    %p156 = por %p154, %p155
    %p158 = scmp.ne.s32.totalorder %s141, %s157
    %p159 = scmp.eq.s32.totalorder %s18, 0
    %p160 = por %p158, %p159
    %p161 = scmp.le.s32.totalorder 1, %s12
    %p162 = scmp.lt.s32.totalorder %s12, 3
    %p163 = pnand %p161, %p162
    %p164 = pneg %p163
    // Predicated region
    $region9: #{up_forward.4} parent=5 // pred_check
      _
    $region10: #{up_forward.4} parent=5 // pred_check_branch
      %166 = sbr.rel (%p163) target = $region12
    $region11: #{up_forward.4} parent=5 // pred_region
      %s167 = ssub.s32 %s12, 1
      // Predicated region
      $region13: #{up_forward.4} parent=11 // pred_check
        %p168 = pneg %p59
      $region14: #{up_forward.4} parent=11 // pred_check_branch
        %170 = sbr.rel (%p168) target = $region16
      $region15: #{up_forward.4} parent=11 // pred_region
        _
      $region16: #{up_forward.4} parent=11 // pred_fallthru
        _
      // Predicated region
      $region17: #{up_forward.4} parent=11 // pred_check
        %p171 = pneg %p80
      $region18: #{up_forward.4} parent=11 // pred_check_branch
        %173 = sbr.rel (%p171) target = $region20
      $region19: #{up_forward.4} parent=11 // pred_region
        _
      $region20: #{up_forward.4} parent=11 // pred_fallthru
        _
      // Predicated region
      $region21: #{up_forward.4} parent=11 // pred_check
        %p174 = pneg %p101
      $region22: #{up_forward.4} parent=11 // pred_check_branch
        %176 = sbr.rel (%p174) target = $region24
      $region23: #{up_forward.4} parent=11 // pred_region
        _
      $region24: #{up_forward.4} parent=11 // pred_fallthru
        _
    $region12: #{up_forward.4} parent=5 // pred_fallthru
      _
    %p177 = scmp.lt.s32.totalorder %s12, 2
    // Predicated region
    $region25: #{up_forward.4} parent=5 // pred_check
      %p178 = pneg %p177
    $region26: #{up_forward.4} parent=5 // pred_check_branch
      %180 = sbr.rel (%p178) target = $region28
    $region27: #{up_forward.4} parent=5 // pred_region
      // Predicated region
      $region29: #{up_forward.4} parent=27 // pred_check
        %p181 = pneg %p32
      $region30: #{up_forward.4} parent=27 // pred_check_branch
        %183 = sbr.rel (%p181) target = $region32
      $region31: #{up_forward.4} parent=27 // pred_region
        %p184 = scmp.lt.s32.totalorder %s12, 1
        %s185 = scalar_select %p184, %s12, 1
        %s186 = smul.addr %s185, 54
        %s187 = smul.addr %s186, 8
        %s188 = scalar_lea.vmem %s0, %s187
      $region32: #{up_forward.4} parent=27 // pred_fallthru
        _
    $region28: #{up_forward.4} parent=5 // pred_fallthru
      _
    %p189 = scmp.le.s32.totalorder 1, %s12
    %p190 = scmp.lt.s32.totalorder %s12, 3
    %p191 = pnand %p189, %p190
    %p192 = pneg %p191
    // Predicated region
    $region33: #{up_forward.4} parent=5 // pred_check
      _
    $region34: #{up_forward.4} parent=5 // pred_check_branch
      %194 = sbr.rel (%p191) target = $region36
    $region35: #{up_forward.4} parent=5 // pred_region
      %s195 = ssub.s32 %s12, 1
      %p196 = scmp.lt.s32.totalorder %s17, 1
      %s197 = scalar_select %p196, %s17, 1
      %s198 = smul.addr %s197, 54
      %s199 = smul.addr %s198, 8
      %s200 = scalar_lea.vmem %s0, %s199
      %p201 = pneg %p38
      %p202 = pneg %p35
      %p203 = pneg %p59
      %p204 = pneg %p56
      %p205 = pneg %p80
      %p206 = pneg %p77
      %p207 = pneg %p101
      %p208 = pneg %p98
      %p209 = pneg %p127
      %p210 = pneg %p124
      %p211 = scmp.lt.s32.totalorder %s17, 1
      %s212 = scalar_select %p211, %s17, 1
      %s213 = smul.addr %s212, 32
      %s214 = smul.addr %s213, 8
      %s215 = scalar_lea.vmem %s4, %s214
      %p216 = pneg %p153
      %p217 = pneg %p150
      %p218 = scmp.lt.s32.totalorder %s17, 1
      %s219 = scalar_select %p218, %s17, 1
      %s220 = smul.addr %s219, 2
      %s221 = scalar_lea.vmem %s5, %s220
      %p222 = scmp.lt.s32.totalorder %s17, 1
      %s223 = scalar_select %p222, %s17, 1
      %s224 = smul.addr %s223, 54
      %s225 = smul.addr %s224, 8
      %s226 = scalar_lea.vmem %s0, %s225
      %p227 = scmp.lt.s32.totalorder %s17, 1
      %s228 = scalar_select %p227, %s17, 1
      %s229 = smul.addr %s228, 32
      %s230 = smul.addr %s229, 8
      %s231 = scalar_lea.vmem %s4, %s230
      %p232 = scmp.lt.s32.totalorder %s17, 1
      %s233 = scalar_select %p232, %s17, 1
      %s234 = smul.addr %s233, 2
      %s235 = scalar_lea.vmem %s5, %s234
      %v237 = vld [vmem:[%s226] sm:$0xff]
      %v238 = vld [vmem:[%s226 + $0x8] sm:$0xff]
      %v239 = vld [vmem:[%s226 + $0x10] sm:$0x3]
      %v240 = vld [vmem:[%s226 + $0x18] sm:$0xff]
      %v241 = vld [vmem:[%s226 + $0x20] sm:$0xff]
      %v242 = vld [vmem:[%s226 + $0x28] sm:$0x3]
      %v243 = vld [vmem:[%s226 + $0x30] sm:$0xff]
      %v244 = vld [vmem:[%s226 + $0x38] sm:$0xff]
      %v245 = vld [vmem:[%s226 + $0x40] sm:$0x3]
      %v246 = vld [vmem:[%s226 + $0x48] sm:$0xff]
      %v247 = vld [vmem:[%s226 + $0x50] sm:$0xff]
      %v248 = vld [vmem:[%s226 + $0x58] sm:$0x3]
      %v249 = vld [vmem:[%s226 + $0x60] sm:$0xff]
      %v250 = vld [vmem:[%s226 + $0x68] sm:$0xff]
      %v251 = vld [vmem:[%s226 + $0x70] sm:$0x3]
      %v252 = vld [vmem:[%s226 + $0x78] sm:$0xff]
      %v253 = vld [vmem:[%s226 + $0x80] sm:$0xff]
      %v254 = vld [vmem:[%s226 + $0x88] sm:$0x3]
      %v255 = vld [vmem:[%s226 + $0x90] sm:$0xff]
      %v256 = vld [vmem:[%s226 + $0x98] sm:$0xff]
      %v257 = vld [vmem:[%s226 + $0xa0] sm:$0x3]
      %v258 = vld [vmem:[%s226 + $0xa8] sm:$0xff]
      %v259 = vld [vmem:[%s226 + $0xb0] sm:$0xff]
      %v260 = vld [vmem:[%s226 + $0xb8] sm:$0x3]
      %v261 = vld [vmem:[%s226 + $0xc0] sm:$0xff]
      %v262 = vld [vmem:[%s226 + $0xc8] sm:$0xff]
      %v263 = vld [vmem:[%s226 + $0xd0] sm:$0x3]
      %v264 = vld [vmem:[%s226 + $0xd8] sm:$0xff]
      %v265 = vld [vmem:[%s226 + $0xe0] sm:$0xff]
      %v266 = vld [vmem:[%s226 + $0xe8] sm:$0x3]
      %v267 = vld [vmem:[%s226 + $0xf0] sm:$0xff]
      %v268 = vld [vmem:[%s226 + $0xf8] sm:$0xff]
      %v269 = vld [vmem:[%s226 + $0x100] sm:$0x3]
      %v270 = vld [vmem:[%s226 + $0x108] sm:$0xff]
      %v271 = vld [vmem:[%s226 + $0x110] sm:$0xff]
      %v272 = vld [vmem:[%s226 + $0x118] sm:$0x3]
      %v273 = vld [vmem:[%s226 + $0x120] sm:$0xff]
      %v274 = vld [vmem:[%s226 + $0x128] sm:$0xff]
      %v275 = vld [vmem:[%s226 + $0x130] sm:$0x3]
      %v276 = vld [vmem:[%s226 + $0x138] sm:$0xff]
      %v277 = vld [vmem:[%s226 + $0x140] sm:$0xff]
      %v278 = vld [vmem:[%s226 + $0x148] sm:$0x3]
      %v279 = vld [vmem:[%s226 + $0x150] sm:$0xff]
      %v280 = vld [vmem:[%s226 + $0x158] sm:$0xff]
      %v281 = vld [vmem:[%s226 + $0x160] sm:$0x3]
      %v282 = vld [vmem:[%s226 + $0x168] sm:$0xff]
      %v283 = vld [vmem:[%s226 + $0x170] sm:$0xff]
      %v284 = vld [vmem:[%s226 + $0x178] sm:$0x3]
      %v285 = vld [vmem:[%s226 + $0x180] sm:$0xff]
      %v286 = vld [vmem:[%s226 + $0x188] sm:$0xff]
      %v287 = vld [vmem:[%s226 + $0x190] sm:$0x3]
      %v288 = vld [vmem:[%s226 + $0x198] sm:$0xff]
      %v289 = vld [vmem:[%s226 + $0x1a0] sm:$0xff]
      %v290 = vld [vmem:[%s226 + $0x1a8] sm:$0x3]
      %v291 = vld [vmem:[%s2] sm:$0x1]
      %v293 = vlaneseq
      %v294 = vshrl.u32 %v293, 7
      %v295 = vsub.s32 0, %v294
      %v296 = vrot.slane %v291, %v295
      %v298 = vmul.f32 %v237, %v296
      %v299 = vmul.f32 %v238, %v296
      %v300 = vmul.f32 %v239, %v296
      %v301 = vmul.f32 %v240, %v296
      %v302 = vmul.f32 %v241, %v296
      %v303 = vmul.f32 %v242, %v296
      %v304 = vmul.f32 %v243, %v296
      %v305 = vmul.f32 %v244, %v296
      %v306 = vmul.f32 %v245, %v296
      %v307 = vmul.f32 %v246, %v296
      %v308 = vmul.f32 %v247, %v296
      %v309 = vmul.f32 %v248, %v296
      %v310 = vmul.f32 %v249, %v296
      %v311 = vmul.f32 %v250, %v296
      %v312 = vmul.f32 %v251, %v296
      %v313 = vmul.f32 %v252, %v296
      %v314 = vmul.f32 %v253, %v296
      %v315 = vmul.f32 %v254, %v296
      %v316 = vmul.f32 %v255, %v296
      %v317 = vmul.f32 %v256, %v296
      %v318 = vmul.f32 %v257, %v296
      %v319 = vmul.f32 %v258, %v296
      %v320 = vmul.f32 %v259, %v296
      %v321 = vmul.f32 %v260, %v296
      %v322 = vmul.f32 %v261, %v296
      %v323 = vmul.f32 %v262, %v296
      %v324 = vmul.f32 %v263, %v296
      %v325 = vmul.f32 %v264, %v296
      %v326 = vmul.f32 %v265, %v296
      %v327 = vmul.f32 %v266, %v296
      %v328 = vmul.f32 %v267, %v296
      %v329 = vmul.f32 %v268, %v296
      %v330 = vmul.f32 %v269, %v296
      %v331 = vmul.f32 %v270, %v296
      %v332 = vmul.f32 %v271, %v296
      %v333 = vmul.f32 %v272, %v296
      %v334 = vmul.f32 %v273, %v296
      %v335 = vmul.f32 %v274, %v296
      %v336 = vmul.f32 %v275, %v296
      %v337 = vmul.f32 %v276, %v296
      %v338 = vmul.f32 %v277, %v296
      %v339 = vmul.f32 %v278, %v296
      %v340 = vmul.f32 %v279, %v296
      %v341 = vmul.f32 %v280, %v296
      %v342 = vmul.f32 %v281, %v296
      %v343 = vmul.f32 %v282, %v296
      %v344 = vmul.f32 %v283, %v296
      %v345 = vmul.f32 %v284, %v296
      %v346 = vmul.f32 %v285, %v296
      %v347 = vmul.f32 %v286, %v296
      %v348 = vmul.f32 %v287, %v296
      %v349 = vmul.f32 %v288, %v296
      %v350 = vmul.f32 %v289, %v296
      %v351 = vmul.f32 %v290, %v296
      %v352 = vld [vmem:[%s3] sm:$0x1]
      %v354 = vlaneseq
      %v355 = vshrl.u32 %v354, 7
      %v356 = vsub.s32 0, %v355
      %v357 = vrot.slane %v352, %v356
      %v359 = vadd.f32 %v298, %v357
      %v360 = vadd.f32 %v299, %v357
      %v361 = vadd.f32 %v300, %v357
      %v362 = vadd.f32 %v301, %v357
      %v363 = vadd.f32 %v302, %v357
      %v364 = vadd.f32 %v303, %v357
      %v365 = vadd.f32 %v304, %v357
      %v366 = vadd.f32 %v305, %v357
      %v367 = vadd.f32 %v306, %v357
      %v368 = vadd.f32 %v307, %v357
      %v369 = vadd.f32 %v308, %v357
      %v370 = vadd.f32 %v309, %v357
      %v371 = vadd.f32 %v310, %v357
      %v372 = vadd.f32 %v311, %v357
      %v373 = vadd.f32 %v312, %v357
      %v374 = vadd.f32 %v313, %v357
      %v375 = vadd.f32 %v314, %v357
      %v376 = vadd.f32 %v315, %v357
      %v377 = vadd.f32 %v316, %v357
      %v378 = vadd.f32 %v317, %v357
      %v379 = vadd.f32 %v318, %v357
      %v380 = vadd.f32 %v319, %v357
      %v381 = vadd.f32 %v320, %v357
      %v382 = vadd.f32 %v321, %v357
      %v383 = vadd.f32 %v322, %v357
      %v384 = vadd.f32 %v323, %v357
      %v385 = vadd.f32 %v324, %v357
      %v386 = vadd.f32 %v325, %v357
      %v387 = vadd.f32 %v326, %v357
      %v388 = vadd.f32 %v327, %v357
      %v389 = vadd.f32 %v328, %v357
      %v390 = vadd.f32 %v329, %v357
      %v391 = vadd.f32 %v330, %v357
      %v392 = vadd.f32 %v331, %v357
      %v393 = vadd.f32 %v332, %v357
      %v394 = vadd.f32 %v333, %v357
      %v395 = vadd.f32 %v334, %v357
      %v396 = vadd.f32 %v335, %v357
      %v397 = vadd.f32 %v336, %v357
      %v398 = vadd.f32 %v337, %v357
      %v399 = vadd.f32 %v338, %v357
      %v400 = vadd.f32 %v339, %v357
      %v401 = vadd.f32 %v340, %v357
      %v402 = vadd.f32 %v341, %v357
      %v403 = vadd.f32 %v342, %v357
      %v404 = vadd.f32 %v343, %v357
      %v405 = vadd.f32 %v344, %v357
      %v406 = vadd.f32 %v345, %v357
      %v407 = vadd.f32 %v346, %v357
      %v408 = vadd.f32 %v347, %v357
      %v409 = vadd.f32 %v348, %v357
      %v410 = vadd.f32 %v349, %v357
      %v411 = vadd.f32 %v350, %v357
      %v412 = vadd.f32 %v351, %v357
      %v413 = vmax.f32 %v359, 0.0
      %v414 = vmax.f32 %v360, 0.0
      %v415 = vmax.f32 %v361, 0.0
      %v416 = vmax.f32 %v362, 0.0
      %v417 = vmax.f32 %v363, 0.0
      %v418 = vmax.f32 %v364, 0.0
      %v419 = vmax.f32 %v365, 0.0
      %v420 = vmax.f32 %v366, 0.0
      %v421 = vmax.f32 %v367, 0.0
      %v422 = vmax.f32 %v368, 0.0
      %v423 = vmax.f32 %v369, 0.0
      %v424 = vmax.f32 %v370, 0.0
      %v425 = vmax.f32 %v371, 0.0
      %v426 = vmax.f32 %v372, 0.0
      %v427 = vmax.f32 %v373, 0.0
      %v428 = vmax.f32 %v374, 0.0
      %v429 = vmax.f32 %v375, 0.0
      %v430 = vmax.f32 %v376, 0.0
      %v431 = vmax.f32 %v377, 0.0
      %v432 = vmax.f32 %v378, 0.0
      %v433 = vmax.f32 %v379, 0.0
      %v434 = vmax.f32 %v380, 0.0
      %v435 = vmax.f32 %v381, 0.0
      %v436 = vmax.f32 %v382, 0.0
      %v437 = vmax.f32 %v383, 0.0
      %v438 = vmax.f32 %v384, 0.0
      %v439 = vmax.f32 %v385, 0.0
      %v440 = vmax.f32 %v386, 0.0
      %v441 = vmax.f32 %v387, 0.0
      %v442 = vmax.f32 %v388, 0.0
      %v443 = vmax.f32 %v389, 0.0
      %v444 = vmax.f32 %v390, 0.0
      %v445 = vmax.f32 %v391, 0.0
      %v446 = vmax.f32 %v392, 0.0
      %v447 = vmax.f32 %v393, 0.0
      %v448 = vmax.f32 %v394, 0.0
      %v449 = vmax.f32 %v395, 0.0
      %v450 = vmax.f32 %v396, 0.0
      %v451 = vmax.f32 %v397, 0.0
      %v452 = vmax.f32 %v398, 0.0
      %v453 = vmax.f32 %v399, 0.0
      %v454 = vmax.f32 %v400, 0.0
      %v455 = vmax.f32 %v401, 0.0
      %v456 = vmax.f32 %v402, 0.0
      %v457 = vmax.f32 %v403, 0.0
      %v458 = vmax.f32 %v404, 0.0
      %v459 = vmax.f32 %v405, 0.0
      %v460 = vmax.f32 %v406, 0.0
      %v461 = vmax.f32 %v407, 0.0
      %v462 = vmax.f32 %v408, 0.0
      %v463 = vmax.f32 %v409, 0.0
      %v464 = vmax.f32 %v410, 0.0
      %v465 = vmax.f32 %v411, 0.0
      %v466 = vmax.f32 %v412, 0.0
      %v467 = vlaneseq
      %v468 = vshrl.u32 %v467, 7
      %v469 = vadd.s32 %v468, 8
      %v470 = vadd.s32 %v468, 16
      %vm471 = vcmp.ge.s32.totalorder %v468, 1
      %vm472 = vcmp.ge.s32.totalorder %v469, 1
      %vm473 = vcmp.ge.s32.totalorder %v470, 1
      %vm474 = vmand 0, %vm471
      %vm475 = vmand 0, %vm472
      %vm476 = vmand 0, %vm473
      %vm477 = vmand 1, %vm471
      %vm478 = vmand 1, %vm472
      %vm479 = vmand 1, %vm473
      %vm480 = vcmp.le.s32.totalorder %v468, 16
      %vm481 = vcmp.le.s32.totalorder %v469, 16
      %vm482 = vcmp.le.s32.totalorder %v470, 16
      %vm483 = vmand %vm474, %vm480
      %vm484 = vmand %vm475, %vm481
      %vm485 = vmand %vm476, %vm482
      %vm486 = vmand %vm477, %vm480
      %vm487 = vmand %vm478, %vm481
      %vm488 = vmand %vm479, %vm482
      %v489 = vsel %vm483, %v413, 0.0
      %v490 = vsel %vm484, %v414, 0.0
      %v491 = vsel %vm485, %v415, 0.0
      %v492 = vsel %vm486, %v416, 0.0
      %v493 = vsel %vm487, %v417, 0.0
      %v494 = vsel %vm488, %v418, 0.0
      %v495 = vsel %vm486, %v419, 0.0
      %v496 = vsel %vm487, %v420, 0.0
      %v497 = vsel %vm488, %v421, 0.0
      %v498 = vsel %vm486, %v422, 0.0
      %v499 = vsel %vm487, %v423, 0.0
      %v500 = vsel %vm488, %v424, 0.0
      %v501 = vsel %vm486, %v425, 0.0
      %v502 = vsel %vm487, %v426, 0.0
      %v503 = vsel %vm488, %v427, 0.0
      %v504 = vsel %vm486, %v428, 0.0
      %v505 = vsel %vm487, %v429, 0.0
      %v506 = vsel %vm488, %v430, 0.0
      %v507 = vsel %vm486, %v431, 0.0
      %v508 = vsel %vm487, %v432, 0.0
      %v509 = vsel %vm488, %v433, 0.0
      %v510 = vsel %vm486, %v434, 0.0
      %v511 = vsel %vm487, %v435, 0.0
      %v512 = vsel %vm488, %v436, 0.0
      %v513 = vsel %vm486, %v437, 0.0
      %v514 = vsel %vm487, %v438, 0.0
      %v515 = vsel %vm488, %v439, 0.0
      %v516 = vsel %vm486, %v440, 0.0
      %v517 = vsel %vm487, %v441, 0.0
      %v518 = vsel %vm488, %v442, 0.0
      %v519 = vsel %vm486, %v443, 0.0
      %v520 = vsel %vm487, %v444, 0.0
      %v521 = vsel %vm488, %v445, 0.0
      %v522 = vsel %vm486, %v446, 0.0
      %v523 = vsel %vm487, %v447, 0.0
      %v524 = vsel %vm488, %v448, 0.0
      %v525 = vsel %vm486, %v449, 0.0
      %v526 = vsel %vm487, %v450, 0.0
      %v527 = vsel %vm488, %v451, 0.0
      %v528 = vsel %vm486, %v452, 0.0
      %v529 = vsel %vm487, %v453, 0.0
      %v530 = vsel %vm488, %v454, 0.0
      %v531 = vsel %vm486, %v455, 0.0
      %v532 = vsel %vm487, %v456, 0.0
      %v533 = vsel %vm488, %v457, 0.0
      %v534 = vsel %vm486, %v458, 0.0
      %v535 = vsel %vm487, %v459, 0.0
      %v536 = vsel %vm488, %v460, 0.0
      %v537 = vsel %vm486, %v461, 0.0
      %v538 = vsel %vm487, %v462, 0.0
      %v539 = vsel %vm488, %v463, 0.0
      %v540 = vsel %vm483, %v464, 0.0
      %v541 = vsel %vm484, %v465, 0.0
      %v542 = vsel %vm485, %v466, 0.0
      %v543 = vpack.c.bf16 %v490, %v489
      %v544 = vpack.c.bf16 %v493, %v492
      %v545 = vpack.c.bf16 %v496, %v495
      %v546 = vpack.c.bf16 %v499, %v498
      %v547 = vpack.c.bf16 %v502, %v501
      %v548 = vpack.c.bf16 %v505, %v504
      %v549 = vpack.c.bf16 %v508, %v507
      %v550 = vpack.c.bf16 %v511, %v510
      %v551 = vpack.c.bf16 %v514, %v513
      %v552 = vpack.c.bf16 %v517, %v516
      %v553 = vpack.c.bf16 %v520, %v519
      %v554 = vpack.c.bf16 %v523, %v522
      %v555 = vpack.c.bf16 %v526, %v525
      %v556 = vpack.c.bf16 %v529, %v528
      %v557 = vpack.c.bf16 %v532, %v531
      %v558 = vpack.c.bf16 %v535, %v534
      %v559 = vld [vmem:[%s1] sm:$0x3]
      %vm608 = vcmask 1046528
      %v609 = vrot.slane %v489, 1
      %v610 = vrot.slane %v490, 1
      %v611 = vsel %vm608, %v609, %v610
      %v612 = vrot.slane %v491, 1
      %v613 = vsel %vm608, %v610, %v612
      %v614 = vrot.slane %v492, 1
      %v615 = vrot.slane %v493, 1
      %v616 = vsel %vm608, %v614, %v615
      %v617 = vrot.slane %v494, 1
      %v618 = vsel %vm608, %v615, %v617
      %v619 = vrot.slane %v495, 1
      %v620 = vrot.slane %v496, 1
      %v621 = vsel %vm608, %v619, %v620
      %v622 = vrot.slane %v497, 1
      %v623 = vsel %vm608, %v620, %v622
      %v624 = vrot.slane %v498, 1
      %v625 = vrot.slane %v499, 1
      %v626 = vsel %vm608, %v624, %v625
      %v627 = vrot.slane %v500, 1
      %v628 = vsel %vm608, %v625, %v627
      %v629 = vrot.slane %v501, 1
      %v630 = vrot.slane %v502, 1
      %v631 = vsel %vm608, %v629, %v630
      %v632 = vrot.slane %v503, 1
      %v633 = vsel %vm608, %v630, %v632
      %v634 = vrot.slane %v504, 1
      %v635 = vrot.slane %v505, 1
      %v636 = vsel %vm608, %v634, %v635
      %v637 = vrot.slane %v506, 1
      %v638 = vsel %vm608, %v635, %v637
      %v639 = vrot.slane %v507, 1
      %v640 = vrot.slane %v508, 1
      %v641 = vsel %vm608, %v639, %v640
      %v642 = vrot.slane %v509, 1
      %v643 = vsel %vm608, %v640, %v642
      %v644 = vrot.slane %v510, 1
      %v645 = vrot.slane %v511, 1
      %v646 = vsel %vm608, %v644, %v645
      %v647 = vrot.slane %v512, 1
      %v648 = vsel %vm608, %v645, %v647
      %v649 = vrot.slane %v513, 1
      %v650 = vrot.slane %v514, 1
      %v651 = vsel %vm608, %v649, %v650
      %v652 = vrot.slane %v515, 1
      %v653 = vsel %vm608, %v650, %v652
      %v654 = vrot.slane %v516, 1
      %v655 = vrot.slane %v517, 1
      %v656 = vsel %vm608, %v654, %v655
      %v657 = vrot.slane %v518, 1
      %v658 = vsel %vm608, %v655, %v657
      %v659 = vrot.slane %v519, 1
      %v660 = vrot.slane %v520, 1
      %v661 = vsel %vm608, %v659, %v660
      %v662 = vrot.slane %v521, 1
      %v663 = vsel %vm608, %v660, %v662
      %v664 = vrot.slane %v522, 1
      %v665 = vrot.slane %v523, 1
      %v666 = vsel %vm608, %v664, %v665
      %v667 = vrot.slane %v524, 1
      %v668 = vsel %vm608, %v665, %v667
      %v669 = vrot.slane %v525, 1
      %v670 = vrot.slane %v526, 1
      %v671 = vsel %vm608, %v669, %v670
      %v672 = vrot.slane %v527, 1
      %v673 = vsel %vm608, %v670, %v672
      %v674 = vrot.slane %v528, 1
      %v675 = vrot.slane %v529, 1
      %v676 = vsel %vm608, %v674, %v675
      %v677 = vrot.slane %v530, 1
      %v678 = vsel %vm608, %v675, %v677
      %v679 = vrot.slane %v531, 1
      %v680 = vrot.slane %v532, 1
      %v681 = vsel %vm608, %v679, %v680
      %v682 = vrot.slane %v533, 1
      %v683 = vsel %vm608, %v680, %v682
      %v684 = vrot.slane %v534, 1
      %v685 = vrot.slane %v535, 1
      %v686 = vsel %vm608, %v684, %v685
      %v687 = vrot.slane %v536, 1
      %v688 = vsel %vm608, %v685, %v687
      %v721 = vpack.c.bf16 %v613, %v611
      %v722 = vpack.c.bf16 %v618, %v616
      %v723 = vpack.c.bf16 %v623, %v621
      %v724 = vpack.c.bf16 %v628, %v626
      %v725 = vpack.c.bf16 %v633, %v631
      %v726 = vpack.c.bf16 %v638, %v636
      %v727 = vpack.c.bf16 %v643, %v641
      %v728 = vpack.c.bf16 %v648, %v646
      %v729 = vpack.c.bf16 %v653, %v651
      %v730 = vpack.c.bf16 %v658, %v656
      %v731 = vpack.c.bf16 %v663, %v661
      %v732 = vpack.c.bf16 %v668, %v666
      %v733 = vpack.c.bf16 %v673, %v671
      %v734 = vpack.c.bf16 %v678, %v676
      %v735 = vpack.c.bf16 %v683, %v681
      %v736 = vpack.c.bf16 %v688, %v686
      %s737 = scalar_lea.vmem %s1, 2
      %v738 = vld [vmem:[%s737] sm:$0x3]
      %vm739 = vcmask 31744
      %v741 = vsel %vm739, %v721, 0
      %v744 = vsel %vm739, %v722, 0
      %v747 = vsel %vm739, %v723, 0
      %v750 = vsel %vm739, %v724, 0
      %v753 = vsel %vm739, %v725, 0
      %v756 = vsel %vm739, %v726, 0
      %v759 = vsel %vm739, %v727, 0
      %v762 = vsel %vm739, %v728, 0
      %v765 = vsel %vm739, %v729, 0
      %v768 = vsel %vm739, %v730, 0
      %v771 = vsel %vm739, %v731, 0
      %v774 = vsel %vm739, %v732, 0
      %v777 = vsel %vm739, %v733, 0
      %v780 = vsel %vm739, %v734, 0
      %v783 = vsel %vm739, %v735, 0
      %v786 = vsel %vm739, %v736, 0
      %vm788 = vcmask 1041408
      %v790 = vsel %vm788, %v738, 0
      %792 = vmatprep.subr.bf16.mxu0 0
      %793 = vmatpush1.bf16.msra.mxu0 %v790
      %794 = vmatprep.subr.bf16.mxu0 0
      %795 = vmatpush1.bf16.msra.mxu0 0
      %796 = vmatprep.subr.bf16.mxu0 0
      %797 = vmatpush1.bf16.msra.mxu0 0
      %798 = vmatprep.subr.bf16.mxu0 0
      %799 = vmatpush1.bf16.msra.mxu0 0
      %800 = vmatprep.subr.bf16.mxu0 0
      %801 = vmatpush1.bf16.msra.mxu0 0
      %802 = vmatprep.subr.bf16.mxu0 0
      %803 = vmatpush1.bf16.msra.mxu0 0
      %804 = vmatprep.subr.bf16.mxu0 0
      %805 = vmatpush1.bf16.msra.mxu0 0
      %806 = vmatprep.subr.bf16.mxu0 0
      %807 = vmatpush1.bf16.msra.mxu0 0
      %808 = vmatprep.subr.bf16.mxu0 0
      %809 = vmatpush1.bf16.msra.mxu0 0
      %810 = vmatprep.subr.bf16.mxu0 0
      %811 = vmatpush1.bf16.msra.mxu0 0
      %812 = vmatprep.subr.bf16.mxu0 0
      %813 = vmatpush1.bf16.msra.mxu0 0
      %814 = vmatprep.subr.bf16.mxu0 0
      %815 = vmatpush1.bf16.msra.mxu0 0
      %816 = vmatprep.subr.bf16.mxu0 0
      %817 = vmatpush1.bf16.msra.mxu0 0
      %818 = vmatprep.subr.bf16.mxu0 0
      %819 = vmatpush1.bf16.msra.mxu0 0
      %820 = vmatprep.subr.bf16.mxu0 0
      %821 = vmatpush1.bf16.msra.mxu0 0
      %822 = vmatprep.subr.bf16.mxu0 0
      %823 = vmatpush1.bf16.msra.mxu0 0
      %824 = vmatprep.mubr.bf16.mxu0 0
      %825 = vmatmul.mubr.bf16.gmra.mrb[0].mxu0 %v741
      %v826 = vpop.f32.mrb[0].mxu0
      %v827 = vadd.f32 0.0, %v826
      %v828 = vpop.f32.mrb[0].mxu0
      %v829 = vpop.f32.mrb[0].mxu0
      %v830 = vadd.f32 0.0, %v829
      %v831 = vpop.f32.mrb[0].mxu0
      %832 = vmatprep.mubr.bf16.mxu0 0
      %833 = vmatmul.mubr.bf16.gmra.mrb[0].mxu0 %v744
      %v834 = vpop.f32.mrb[0].mxu0
      %v835 = vadd.f32 0.0, %v834
      %v836 = vpop.f32.mrb[0].mxu0
      %v837 = vpop.f32.mrb[0].mxu0
      %v838 = vadd.f32 0.0, %v837
      %v839 = vpop.f32.mrb[0].mxu0
      %840 = vmatprep.mubr.bf16.mxu0 0
      %841 = vmatmul.mubr.bf16.gmra.mrb[0].mxu0 %v747
      %v842 = vpop.f32.mrb[0].mxu0
      %v843 = vadd.f32 0.0, %v842
      %v844 = vpop.f32.mrb[0].mxu0
      %v845 = vpop.f32.mrb[0].mxu0
      %v846 = vadd.f32 0.0, %v845
      %v847 = vpop.f32.mrb[0].mxu0
      %848 = vmatprep.mubr.bf16.mxu0 0
      %849 = vmatmul.mubr.bf16.gmra.mrb[0].mxu0 %v750
      %v850 = vpop.f32.mrb[0].mxu0
      %v851 = vadd.f32 0.0, %v850
      %v852 = vpop.f32.mrb[0].mxu0
      %v853 = vpop.f32.mrb[0].mxu0
      %v854 = vadd.f32 0.0, %v853
      %v855 = vpop.f32.mrb[0].mxu0
      %856 = vmatprep.mubr.bf16.mxu0 0
      %857 = vmatmul.mubr.bf16.gmra.mrb[0].mxu0 %v753
      %v858 = vpop.f32.mrb[0].mxu0
      %v859 = vadd.f32 0.0, %v858
      %v860 = vpop.f32.mrb[0].mxu0
      %v861 = vpop.f32.mrb[0].mxu0
      %v862 = vadd.f32 0.0, %v861
      %v863 = vpop.f32.mrb[0].mxu0
      %864 = vmatprep.mubr.bf16.mxu0 0
      %865 = vmatmul.mubr.bf16.gmra.mrb[0].mxu0 %v756
      %v866 = vpop.f32.mrb[0].mxu0
      %v867 = vadd.f32 0.0, %v866
      %v868 = vpop.f32.mrb[0].mxu0
      %v869 = vpop.f32.mrb[0].mxu0
      %v870 = vadd.f32 0.0, %v869
      %v871 = vpop.f32.mrb[0].mxu0
      %872 = vmatprep.mubr.bf16.mxu0 0
      %873 = vmatmul.mubr.bf16.gmra.mrb[0].mxu0 %v759
      %v874 = vpop.f32.mrb[0].mxu0
      %v875 = vadd.f32 0.0, %v874
      %v876 = vpop.f32.mrb[0].mxu0
      %v877 = vpop.f32.mrb[0].mxu0
      %v878 = vadd.f32 0.0, %v877
      %v879 = vpop.f32.mrb[0].mxu0
      %880 = vmatprep.mubr.bf16.mxu0 0
      %881 = vmatmul.mubr.bf16.gmra.mrb[0].mxu0 %v762
      %v882 = vpop.f32.mrb[0].mxu0
      %v883 = vadd.f32 0.0, %v882
      %v884 = vpop.f32.mrb[0].mxu0
      %v885 = vpop.f32.mrb[0].mxu0
      %v886 = vadd.f32 0.0, %v885
      %v887 = vpop.f32.mrb[0].mxu0
      %888 = vmatprep.mubr.bf16.mxu0 0
      %889 = vmatmul.mubr.bf16.gmra.mrb[0].mxu0 %v765
      %v890 = vpop.f32.mrb[0].mxu0
      %v891 = vadd.f32 0.0, %v890
      %v892 = vpop.f32.mrb[0].mxu0
      %v893 = vpop.f32.mrb[0].mxu0
      %v894 = vadd.f32 0.0, %v893
      %v895 = vpop.f32.mrb[0].mxu0
      %896 = vmatprep.mubr.bf16.mxu0 0
      %897 = vmatmul.mubr.bf16.gmra.mrb[0].mxu0 %v768
      %v898 = vpop.f32.mrb[0].mxu0
      %v899 = vadd.f32 0.0, %v898
      %v900 = vpop.f32.mrb[0].mxu0
      %v901 = vpop.f32.mrb[0].mxu0
      %v902 = vadd.f32 0.0, %v901
      %v903 = vpop.f32.mrb[0].mxu0
      %904 = vmatprep.mubr.bf16.mxu0 0
      %905 = vmatmul.mubr.bf16.gmra.mrb[0].mxu0 %v771
      %v906 = vpop.f32.mrb[0].mxu0
      %v907 = vadd.f32 0.0, %v906
      %v908 = vpop.f32.mrb[0].mxu0
      %v909 = vpop.f32.mrb[0].mxu0
      %v910 = vadd.f32 0.0, %v909
      %v911 = vpop.f32.mrb[0].mxu0
      %912 = vmatprep.mubr.bf16.mxu0 0
      %913 = vmatmul.mubr.bf16.gmra.mrb[0].mxu0 %v774
      %v914 = vpop.f32.mrb[0].mxu0
      %v915 = vadd.f32 0.0, %v914
      %v916 = vpop.f32.mrb[0].mxu0
      %v917 = vpop.f32.mrb[0].mxu0
      %v918 = vadd.f32 0.0, %v917
      %v919 = vpop.f32.mrb[0].mxu0
      %920 = vmatprep.mubr.bf16.mxu0 0
      %921 = vmatmul.mubr.bf16.gmra.mrb[0].mxu0 %v777
      %v922 = vpop.f32.mrb[0].mxu0
      %v923 = vadd.f32 0.0, %v922
      %v924 = vpop.f32.mrb[0].mxu0
      %v925 = vpop.f32.mrb[0].mxu0
      %v926 = vadd.f32 0.0, %v925
      %v927 = vpop.f32.mrb[0].mxu0
      %928 = vmatprep.mubr.bf16.mxu0 0
      %929 = vmatmul.mubr.bf16.gmra.mrb[0].mxu0 %v780
      %v930 = vpop.f32.mrb[0].mxu0
      %v931 = vadd.f32 0.0, %v930
      %v932 = vpop.f32.mrb[0].mxu0
      %v933 = vpop.f32.mrb[0].mxu0
      %v934 = vadd.f32 0.0, %v933
      %v935 = vpop.f32.mrb[0].mxu0
      %936 = vmatprep.mubr.bf16.mxu0 0
      %937 = vmatmul.mubr.bf16.gmra.mrb[0].mxu0 %v783
      %v938 = vpop.f32.mrb[0].mxu0
      %v939 = vadd.f32 0.0, %v938
      %v940 = vpop.f32.mrb[0].mxu0
      %v941 = vpop.f32.mrb[0].mxu0
      %v942 = vadd.f32 0.0, %v941
      %v943 = vpop.f32.mrb[0].mxu0
      %944 = vmatprep.mubr.bf16.mxu0 0
      %945 = vmatmul.mubr.bf16.gmra.mrb[0].mxu0 %v786
      %v946 = vpop.f32.mrb[0].mxu0
      %v947 = vadd.f32 0.0, %v946
      %v948 = vpop.f32.mrb[0].mxu0
      %v949 = vpop.f32.mrb[0].mxu0
      %v950 = vadd.f32 0.0, %v949
      %v951 = vpop.f32.mrb[0].mxu0
      %952 = vdwg.mxu0
      %v954 = vsel %vm739, %v543, 0
      %v957 = vsel %vm739, %v544, 0
      %v960 = vsel %vm739, %v545, 0
      %v963 = vsel %vm739, %v546, 0
      %v966 = vsel %vm739, %v547, 0
      %v969 = vsel %vm739, %v548, 0
      %v972 = vsel %vm739, %v549, 0
      %v975 = vsel %vm739, %v550, 0
      %v978 = vsel %vm739, %v551, 0
      %v981 = vsel %vm739, %v552, 0
      %v984 = vsel %vm739, %v553, 0
      %v987 = vsel %vm739, %v554, 0
      %v990 = vsel %vm739, %v555, 0
      %v993 = vsel %vm739, %v556, 0
      %v996 = vsel %vm739, %v557, 0
      %v999 = vsel %vm739, %v558, 0
      %v1002 = vsel %vm788, %v559, 0
      %1004 = vmatprep.subr.bf16.mxu0 0
      %1005 = vmatpush1.bf16.msra.mxu0 %v1002
      %1006 = vmatprep.subr.bf16.mxu0 0
      %1007 = vmatpush1.bf16.msra.mxu0 0
      %1008 = vmatprep.subr.bf16.mxu0 0
      %1009 = vmatpush1.bf16.msra.mxu0 0
      %1010 = vmatprep.subr.bf16.mxu0 0
      %1011 = vmatpush1.bf16.msra.mxu0 0
      %1012 = vmatprep.subr.bf16.mxu0 0
      %1013 = vmatpush1.bf16.msra.mxu0 0
      %1014 = vmatprep.subr.bf16.mxu0 0
      %1015 = vmatpush1.bf16.msra.mxu0 0
      %1016 = vmatprep.subr.bf16.mxu0 0
      %1017 = vmatpush1.bf16.msra.mxu0 0
      %1018 = vmatprep.subr.bf16.mxu0 0
      %1019 = vmatpush1.bf16.msra.mxu0 0
      %1020 = vmatprep.subr.bf16.mxu0 0
      %1021 = vmatpush1.bf16.msra.mxu0 0
      %1022 = vmatprep.subr.bf16.mxu0 0
      %1023 = vmatpush1.bf16.msra.mxu0 0
      %1024 = vmatprep.subr.bf16.mxu0 0
      %1025 = vmatpush1.bf16.msra.mxu0 0
      %1026 = vmatprep.subr.bf16.mxu0 0
      %1027 = vmatpush1.bf16.msra.mxu0 0
      %1028 = vmatprep.subr.bf16.mxu0 0
      %1029 = vmatpush1.bf16.msra.mxu0 0
      %1030 = vmatprep.subr.bf16.mxu0 0
      %1031 = vmatpush1.bf16.msra.mxu0 0
      %1032 = vmatprep.subr.bf16.mxu0 0
      %1033 = vmatpush1.bf16.msra.mxu0 0
      %1034 = vmatprep.subr.bf16.mxu0 0
      %1035 = vmatpush1.bf16.msra.mxu0 0
      %1036 = vmatprep.mubr.bf16.mxu0 0
      %1037 = vmatmul.mubr.bf16.gmra.mrb[0].mxu0 %v954
      %v1038 = vpop.f32.mrb[0].mxu0
      %v1039 = vadd.f32 %v827, %v1038
      %v1040 = vpop.f32.mrb[0].mxu0
      %v1041 = vpop.f32.mrb[0].mxu0
      %v1042 = vadd.f32 %v830, %v1041
      %v1043 = vpop.f32.mrb[0].mxu0
      %1044 = vmatprep.mubr.bf16.mxu0 0
      %1045 = vmatmul.mubr.bf16.gmra.mrb[0].mxu0 %v957
      %v1046 = vpop.f32.mrb[0].mxu0
      %v1047 = vadd.f32 %v835, %v1046
      %v1048 = vpop.f32.mrb[0].mxu0
      %v1049 = vpop.f32.mrb[0].mxu0
      %v1050 = vadd.f32 %v838, %v1049
      %v1051 = vpop.f32.mrb[0].mxu0
      %1052 = vmatprep.mubr.bf16.mxu0 0
      %1053 = vmatmul.mubr.bf16.gmra.mrb[0].mxu0 %v960
      %v1054 = vpop.f32.mrb[0].mxu0
      %v1055 = vadd.f32 %v843, %v1054
      %v1056 = vpop.f32.mrb[0].mxu0
      %v1057 = vpop.f32.mrb[0].mxu0
      %v1058 = vadd.f32 %v846, %v1057
      %v1059 = vpop.f32.mrb[0].mxu0
      %1060 = vmatprep.mubr.bf16.mxu0 0
      %1061 = vmatmul.mubr.bf16.gmra.mrb[0].mxu0 %v963
      %v1062 = vpop.f32.mrb[0].mxu0
      %v1063 = vadd.f32 %v851, %v1062
      %v1064 = vpop.f32.mrb[0].mxu0
      %v1065 = vpop.f32.mrb[0].mxu0
      %v1066 = vadd.f32 %v854, %v1065
      %v1067 = vpop.f32.mrb[0].mxu0
      %1068 = vmatprep.mubr.bf16.mxu0 0
      %1069 = vmatmul.mubr.bf16.gmra.mrb[0].mxu0 %v966
      %v1070 = vpop.f32.mrb[0].mxu0
      %v1071 = vadd.f32 %v859, %v1070
      %v1072 = vpop.f32.mrb[0].mxu0
      %v1073 = vpop.f32.mrb[0].mxu0
      %v1074 = vadd.f32 %v862, %v1073
      %v1075 = vpop.f32.mrb[0].mxu0
      %1076 = vmatprep.mubr.bf16.mxu0 0
      %1077 = vmatmul.mubr.bf16.gmra.mrb[0].mxu0 %v969
      %v1078 = vpop.f32.mrb[0].mxu0
      %v1079 = vadd.f32 %v867, %v1078
      %v1080 = vpop.f32.mrb[0].mxu0
      %v1081 = vpop.f32.mrb[0].mxu0
      %v1082 = vadd.f32 %v870, %v1081
      %v1083 = vpop.f32.mrb[0].mxu0
      %1084 = vmatprep.mubr.bf16.mxu0 0
      %1085 = vmatmul.mubr.bf16.gmra.mrb[0].mxu0 %v972
      %v1086 = vpop.f32.mrb[0].mxu0
      %v1087 = vadd.f32 %v875, %v1086
      %v1088 = vpop.f32.mrb[0].mxu0
      %v1089 = vpop.f32.mrb[0].mxu0
      %v1090 = vadd.f32 %v878, %v1089
      %v1091 = vpop.f32.mrb[0].mxu0
      %1092 = vmatprep.mubr.bf16.mxu0 0
      %1093 = vmatmul.mubr.bf16.gmra.mrb[0].mxu0 %v975
      %v1094 = vpop.f32.mrb[0].mxu0
      %v1095 = vadd.f32 %v883, %v1094
      %v1096 = vpop.f32.mrb[0].mxu0
      %v1097 = vpop.f32.mrb[0].mxu0
      %v1098 = vadd.f32 %v886, %v1097
      %v1099 = vpop.f32.mrb[0].mxu0
      %1100 = vmatprep.mubr.bf16.mxu0 0
      %1101 = vmatmul.mubr.bf16.gmra.mrb[0].mxu0 %v978
      %v1102 = vpop.f32.mrb[0].mxu0
      %v1103 = vadd.f32 %v891, %v1102
      %v1104 = vpop.f32.mrb[0].mxu0
      %v1105 = vpop.f32.mrb[0].mxu0
      %v1106 = vadd.f32 %v894, %v1105
      %v1107 = vpop.f32.mrb[0].mxu0
      %1108 = vmatprep.mubr.bf16.mxu0 0
      %1109 = vmatmul.mubr.bf16.gmra.mrb[0].mxu0 %v981
      %v1110 = vpop.f32.mrb[0].mxu0
      %v1111 = vadd.f32 %v899, %v1110
      %v1112 = vpop.f32.mrb[0].mxu0
      %v1113 = vpop.f32.mrb[0].mxu0
      %v1114 = vadd.f32 %v902, %v1113
      %v1115 = vpop.f32.mrb[0].mxu0
      %1116 = vmatprep.mubr.bf16.mxu0 0
      %1117 = vmatmul.mubr.bf16.gmra.mrb[0].mxu0 %v984
      %v1118 = vpop.f32.mrb[0].mxu0
      %v1119 = vadd.f32 %v907, %v1118
      %v1120 = vpop.f32.mrb[0].mxu0
      %v1121 = vpop.f32.mrb[0].mxu0
      %v1122 = vadd.f32 %v910, %v1121
      %v1123 = vpop.f32.mrb[0].mxu0
      %1124 = vmatprep.mubr.bf16.mxu0 0
      %1125 = vmatmul.mubr.bf16.gmra.mrb[0].mxu0 %v987
      %v1126 = vpop.f32.mrb[0].mxu0
      %v1127 = vadd.f32 %v915, %v1126
      %v1128 = vpop.f32.mrb[0].mxu0
      %v1129 = vpop.f32.mrb[0].mxu0
      %v1130 = vadd.f32 %v918, %v1129
      %v1131 = vpop.f32.mrb[0].mxu0
      %1132 = vmatprep.mubr.bf16.mxu0 0
      %1133 = vmatmul.mubr.bf16.gmra.mrb[0].mxu0 %v990
      %v1134 = vpop.f32.mrb[0].mxu0
      %v1135 = vadd.f32 %v923, %v1134
      %v1136 = vpop.f32.mrb[0].mxu0
      %v1137 = vpop.f32.mrb[0].mxu0
      %v1138 = vadd.f32 %v926, %v1137
      %v1139 = vpop.f32.mrb[0].mxu0
      %1140 = vmatprep.mubr.bf16.mxu0 0
      %1141 = vmatmul.mubr.bf16.gmra.mrb[0].mxu0 %v993
      %v1142 = vpop.f32.mrb[0].mxu0
      %v1143 = vadd.f32 %v931, %v1142
      %v1144 = vpop.f32.mrb[0].mxu0
      %v1145 = vpop.f32.mrb[0].mxu0
      %v1146 = vadd.f32 %v934, %v1145
      %v1147 = vpop.f32.mrb[0].mxu0
      %1148 = vmatprep.mubr.bf16.mxu0 0
      %1149 = vmatmul.mubr.bf16.gmra.mrb[0].mxu0 %v996
      %v1150 = vpop.f32.mrb[0].mxu0
      %v1151 = vadd.f32 %v939, %v1150
      %v1152 = vpop.f32.mrb[0].mxu0
      %v1153 = vpop.f32.mrb[0].mxu0
      %v1154 = vadd.f32 %v942, %v1153
      %v1155 = vpop.f32.mrb[0].mxu0
      %1156 = vmatprep.mubr.bf16.mxu0 0
      %1157 = vmatmul.mubr.bf16.gmra.mrb[0].mxu0 %v999
      %v1158 = vpop.f32.mrb[0].mxu0
      %v1159 = vadd.f32 %v947, %v1158
      %v1160 = vpop.f32.mrb[0].mxu0
      %v1161 = vpop.f32.mrb[0].mxu0
      %v1162 = vadd.f32 %v950, %v1161
      %v1163 = vpop.f32.mrb[0].mxu0
      %1164 = vdwg.mxu0
      %vm1165 = vcmask 1045504
      %v1166 = vrot.slane %v489, 2
      %v1167 = vrot.slane %v490, 2
      %v1168 = vsel %vm1165, %v1166, %v1167
      %v1169 = vrot.slane %v491, 2
      %v1170 = vsel %vm1165, %v1167, %v1169
      %v1171 = vrot.slane %v492, 2
      %v1172 = vrot.slane %v493, 2
      %v1173 = vsel %vm1165, %v1171, %v1172
      %v1174 = vrot.slane %v494, 2
      %v1175 = vsel %vm1165, %v1172, %v1174
      %v1176 = vrot.slane %v495, 2
      %v1177 = vrot.slane %v496, 2
      %v1178 = vsel %vm1165, %v1176, %v1177
      %v1179 = vrot.slane %v497, 2
      %v1180 = vsel %vm1165, %v1177, %v1179
      %v1181 = vrot.slane %v498, 2
      %v1182 = vrot.slane %v499, 2
      %v1183 = vsel %vm1165, %v1181, %v1182
      %v1184 = vrot.slane %v500, 2
      %v1185 = vsel %vm1165, %v1182, %v1184
      %v1186 = vrot.slane %v501, 2
      %v1187 = vrot.slane %v502, 2
      %v1188 = vsel %vm1165, %v1186, %v1187
      %v1189 = vrot.slane %v503, 2
      %v1190 = vsel %vm1165, %v1187, %v1189
      %v1191 = vrot.slane %v504, 2
      %v1192 = vrot.slane %v505, 2
      %v1193 = vsel %vm1165, %v1191, %v1192
      %v1194 = vrot.slane %v506, 2
      %v1195 = vsel %vm1165, %v1192, %v1194
      %v1196 = vrot.slane %v507, 2
      %v1197 = vrot.slane %v508, 2
      %v1198 = vsel %vm1165, %v1196, %v1197
      %v1199 = vrot.slane %v509, 2
      %v1200 = vsel %vm1165, %v1197, %v1199
      %v1201 = vrot.slane %v510, 2
      %v1202 = vrot.slane %v511, 2
      %v1203 = vsel %vm1165, %v1201, %v1202
      %v1204 = vrot.slane %v512, 2
      %v1205 = vsel %vm1165, %v1202, %v1204
      %v1206 = vrot.slane %v513, 2
      %v1207 = vrot.slane %v514, 2
      %v1208 = vsel %vm1165, %v1206, %v1207
      %v1209 = vrot.slane %v515, 2
      %v1210 = vsel %vm1165, %v1207, %v1209
      %v1211 = vrot.slane %v516, 2
      %v1212 = vrot.slane %v517, 2
      %v1213 = vsel %vm1165, %v1211, %v1212
      %v1214 = vrot.slane %v518, 2
      %v1215 = vsel %vm1165, %v1212, %v1214
      %v1216 = vrot.slane %v519, 2
      %v1217 = vrot.slane %v520, 2
      %v1218 = vsel %vm1165, %v1216, %v1217
      %v1219 = vrot.slane %v521, 2
      %v1220 = vsel %vm1165, %v1217, %v1219
      %v1221 = vrot.slane %v522, 2
      %v1222 = vrot.slane %v523, 2
      %v1223 = vsel %vm1165, %v1221, %v1222
      %v1224 = vrot.slane %v524, 2
      %v1225 = vsel %vm1165, %v1222, %v1224
      %v1226 = vrot.slane %v525, 2
      %v1227 = vrot.slane %v526, 2
      %v1228 = vsel %vm1165, %v1226, %v1227
      %v1229 = vrot.slane %v527, 2
      %v1230 = vsel %vm1165, %v1227, %v1229
      %v1231 = vrot.slane %v528, 2
      %v1232 = vrot.slane %v529, 2
      %v1233 = vsel %vm1165, %v1231, %v1232
      %v1234 = vrot.slane %v530, 2
      %v1235 = vsel %vm1165, %v1232, %v1234
      %v1236 = vrot.slane %v531, 2
      %v1237 = vrot.slane %v532, 2
      %v1238 = vsel %vm1165, %v1236, %v1237
      %v1239 = vrot.slane %v533, 2
      %v1240 = vsel %vm1165, %v1237, %v1239
      %v1241 = vrot.slane %v534, 2
      %v1242 = vrot.slane %v535, 2
      %v1243 = vsel %vm1165, %v1241, %v1242
      %v1244 = vrot.slane %v536, 2
      %v1245 = vsel %vm1165, %v1242, %v1244
      %v1278 = vpack.c.bf16 %v1170, %v1168
      %v1279 = vpack.c.bf16 %v1175, %v1173
      %v1280 = vpack.c.bf16 %v1180, %v1178
      %v1281 = vpack.c.bf16 %v1185, %v1183
      %v1282 = vpack.c.bf16 %v1190, %v1188
      %v1283 = vpack.c.bf16 %v1195, %v1193
      %v1284 = vpack.c.bf16 %v1200, %v1198
      %v1285 = vpack.c.bf16 %v1205, %v1203
      %v1286 = vpack.c.bf16 %v1210, %v1208
      %v1287 = vpack.c.bf16 %v1215, %v1213
      %v1288 = vpack.c.bf16 %v1220, %v1218
      %v1289 = vpack.c.bf16 %v1225, %v1223
      %v1290 = vpack.c.bf16 %v1230, %v1228
      %v1291 = vpack.c.bf16 %v1235, %v1233
      %v1292 = vpack.c.bf16 %v1240, %v1238
      %v1293 = vpack.c.bf16 %v1245, %v1243
      %s1294 = scalar_lea.vmem %s1, 4
      %v1295 = vld [vmem:[%s1294] sm:$0x3]
      %v1297 = vsel %vm739, %v1278, 0
      %v1300 = vsel %vm739, %v1279, 0
      %v1303 = vsel %vm739, %v1280, 0
      %v1306 = vsel %vm739, %v1281, 0
      %v1309 = vsel %vm739, %v1282, 0
      %v1312 = vsel %vm739, %v1283, 0
      %v1315 = vsel %vm739, %v1284, 0
      %v1318 = vsel %vm739, %v1285, 0
      %v1321 = vsel %vm739, %v1286, 0
      %v1324 = vsel %vm739, %v1287, 0
      %v1327 = vsel %vm739, %v1288, 0
      %v1330 = vsel %vm739, %v1289, 0
      %v1333 = vsel %vm739, %v1290, 0
      %v1336 = vsel %vm739, %v1291, 0
      %v1339 = vsel %vm739, %v1292, 0
      %v1342 = vsel %vm739, %v1293, 0
      %v1345 = vsel %vm788, %v1295, 0
      %1347 = vmatprep.subr.bf16.mxu0 0
      %1348 = vmatpush1.bf16.msra.mxu0 %v1345
      %1349 = vmatprep.subr.bf16.mxu0 0
      %1350 = vmatpush1.bf16.msra.mxu0 0
      %1351 = vmatprep.subr.bf16.mxu0 0
      %1352 = vmatpush1.bf16.msra.mxu0 0
      %1353 = vmatprep.subr.bf16.mxu0 0
      %1354 = vmatpush1.bf16.msra.mxu0 0
      %1355 = vmatprep.subr.bf16.mxu0 0
      %1356 = vmatpush1.bf16.msra.mxu0 0
      %1357 = vmatprep.subr.bf16.mxu0 0
      %1358 = vmatpush1.bf16.msra.mxu0 0
      %1359 = vmatprep.subr.bf16.mxu0 0
      %1360 = vmatpush1.bf16.msra.mxu0 0
      %1361 = vmatprep.subr.bf16.mxu0 0
      %1362 = vmatpush1.bf16.msra.mxu0 0
      %1363 = vmatprep.subr.bf16.mxu0 0
      %1364 = vmatpush1.bf16.msra.mxu0 0
      %1365 = vmatprep.subr.bf16.mxu0 0
      %1366 = vmatpush1.bf16.msra.mxu0 0
      %1367 = vmatprep.subr.bf16.mxu0 0
      %1368 = vmatpush1.bf16.msra.mxu0 0
      %1369 = vmatprep.subr.bf16.mxu0 0
      %1370 = vmatpush1.bf16.msra.mxu0 0
      %1371 = vmatprep.subr.bf16.mxu0 0
      %1372 = vmatpush1.bf16.msra.mxu0 0
      %1373 = vmatprep.subr.bf16.mxu0 0
      %1374 = vmatpush1.bf16.msra.mxu0 0
      %1375 = vmatprep.subr.bf16.mxu0 0
      %1376 = vmatpush1.bf16.msra.mxu0 0
      %1377 = vmatprep.subr.bf16.mxu0 0
      %1378 = vmatpush1.bf16.msra.mxu0 0
      %1379 = vmatprep.mubr.bf16.mxu0 0
      %1380 = vmatmul.mubr.bf16.gmra.mrb[0].mxu0 %v1297
      %v1381 = vpop.f32.mrb[0].mxu0
      %v1382 = vadd.f32 0.0, %v1381
      %v1383 = vpop.f32.mrb[0].mxu0
      %v1384 = vpop.f32.mrb[0].mxu0
      %v1385 = vadd.f32 0.0, %v1384
      %v1386 = vpop.f32.mrb[0].mxu0
      %1387 = vmatprep.mubr.bf16.mxu0 0
      %1388 = vmatmul.mubr.bf16.gmra.mrb[0].mxu0 %v1300
      %v1389 = vpop.f32.mrb[0].mxu0
      %v1390 = vadd.f32 0.0, %v1389
      %v1391 = vpop.f32.mrb[0].mxu0
      %v1392 = vpop.f32.mrb[0].mxu0
      %v1393 = vadd.f32 0.0, %v1392
      %v1394 = vpop.f32.mrb[0].mxu0
      %1395 = vmatprep.mubr.bf16.mxu0 0
      %1396 = vmatmul.mubr.bf16.gmra.mrb[0].mxu0 %v1303
      %v1397 = vpop.f32.mrb[0].mxu0
      %v1398 = vadd.f32 0.0, %v1397
      %v1399 = vpop.f32.mrb[0].mxu0
      %v1400 = vpop.f32.mrb[0].mxu0
      %v1401 = vadd.f32 0.0, %v1400
      %v1402 = vpop.f32.mrb[0].mxu0
      %1403 = vmatprep.mubr.bf16.mxu0 0
      %1404 = vmatmul.mubr.bf16.gmra.mrb[0].mxu0 %v1306
      %v1405 = vpop.f32.mrb[0].mxu0
      %v1406 = vadd.f32 0.0, %v1405
      %v1407 = vpop.f32.mrb[0].mxu0
      %v1408 = vpop.f32.mrb[0].mxu0
      %v1409 = vadd.f32 0.0, %v1408
      %v1410 = vpop.f32.mrb[0].mxu0
      %1411 = vmatprep.mubr.bf16.mxu0 0
      %1412 = vmatmul.mubr.bf16.gmra.mrb[0].mxu0 %v1309
      %v1413 = vpop.f32.mrb[0].mxu0
      %v1414 = vadd.f32 0.0, %v1413
      %v1415 = vpop.f32.mrb[0].mxu0
      %v1416 = vpop.f32.mrb[0].mxu0
      %v1417 = vadd.f32 0.0, %v1416
      %v1418 = vpop.f32.mrb[0].mxu0
      %1419 = vmatprep.mubr.bf16.mxu0 0
      %1420 = vmatmul.mubr.bf16.gmra.mrb[0].mxu0 %v1312
      %v1421 = vpop.f32.mrb[0].mxu0
      %v1422 = vadd.f32 0.0, %v1421
      %v1423 = vpop.f32.mrb[0].mxu0
      %v1424 = vpop.f32.mrb[0].mxu0
      %v1425 = vadd.f32 0.0, %v1424
      %v1426 = vpop.f32.mrb[0].mxu0
      %1427 = vmatprep.mubr.bf16.mxu0 0
      %1428 = vmatmul.mubr.bf16.gmra.mrb[0].mxu0 %v1315
      %v1429 = vpop.f32.mrb[0].mxu0
      %v1430 = vadd.f32 0.0, %v1429
      %v1431 = vpop.f32.mrb[0].mxu0
      %v1432 = vpop.f32.mrb[0].mxu0
      %v1433 = vadd.f32 0.0, %v1432
      %v1434 = vpop.f32.mrb[0].mxu0
      %1435 = vmatprep.mubr.bf16.mxu0 0
      %1436 = vmatmul.mubr.bf16.gmra.mrb[0].mxu0 %v1318
      %v1437 = vpop.f32.mrb[0].mxu0
      %v1438 = vadd.f32 0.0, %v1437
      %v1439 = vpop.f32.mrb[0].mxu0
      %v1440 = vpop.f32.mrb[0].mxu0
      %v1441 = vadd.f32 0.0, %v1440
      %v1442 = vpop.f32.mrb[0].mxu0
      %1443 = vmatprep.mubr.bf16.mxu0 0
      %1444 = vmatmul.mubr.bf16.gmra.mrb[0].mxu0 %v1321
      %v1445 = vpop.f32.mrb[0].mxu0
      %v1446 = vadd.f32 0.0, %v1445
      %v1447 = vpop.f32.mrb[0].mxu0
      %v1448 = vpop.f32.mrb[0].mxu0
      %v1449 = vadd.f32 0.0, %v1448
      %v1450 = vpop.f32.mrb[0].mxu0
      %1451 = vmatprep.mubr.bf16.mxu0 0
      %1452 = vmatmul.mubr.bf16.gmra.mrb[0].mxu0 %v1324
      %v1453 = vpop.f32.mrb[0].mxu0
      %v1454 = vadd.f32 0.0, %v1453
      %v1455 = vpop.f32.mrb[0].mxu0
      %v1456 = vpop.f32.mrb[0].mxu0
      %v1457 = vadd.f32 0.0, %v1456
      %v1458 = vpop.f32.mrb[0].mxu0
      %1459 = vmatprep.mubr.bf16.mxu0 0
      %1460 = vmatmul.mubr.bf16.gmra.mrb[0].mxu0 %v1327
      %v1461 = vpop.f32.mrb[0].mxu0
      %v1462 = vadd.f32 0.0, %v1461
      %v1463 = vpop.f32.mrb[0].mxu0
      %v1464 = vpop.f32.mrb[0].mxu0
      %v1465 = vadd.f32 0.0, %v1464
      %v1466 = vpop.f32.mrb[0].mxu0
      %1467 = vmatprep.mubr.bf16.mxu0 0
      %1468 = vmatmul.mubr.bf16.gmra.mrb[0].mxu0 %v1330
      %v1469 = vpop.f32.mrb[0].mxu0
      %v1470 = vadd.f32 0.0, %v1469
      %v1471 = vpop.f32.mrb[0].mxu0
      %v1472 = vpop.f32.mrb[0].mxu0
      %v1473 = vadd.f32 0.0, %v1472
      %v1474 = vpop.f32.mrb[0].mxu0
      %1475 = vmatprep.mubr.bf16.mxu0 0
      %1476 = vmatmul.mubr.bf16.gmra.mrb[0].mxu0 %v1333
      %v1477 = vpop.f32.mrb[0].mxu0
      %v1478 = vadd.f32 0.0, %v1477
      %v1479 = vpop.f32.mrb[0].mxu0
      %v1480 = vpop.f32.mrb[0].mxu0
      %v1481 = vadd.f32 0.0, %v1480
      %v1482 = vpop.f32.mrb[0].mxu0
      %1483 = vmatprep.mubr.bf16.mxu0 0
      %1484 = vmatmul.mubr.bf16.gmra.mrb[0].mxu0 %v1336
      %v1485 = vpop.f32.mrb[0].mxu0
      %v1486 = vadd.f32 0.0, %v1485
      %v1487 = vpop.f32.mrb[0].mxu0
      %v1488 = vpop.f32.mrb[0].mxu0
      %v1489 = vadd.f32 0.0, %v1488
      %v1490 = vpop.f32.mrb[0].mxu0
      %1491 = vmatprep.mubr.bf16.mxu0 0
      %1492 = vmatmul.mubr.bf16.gmra.mrb[0].mxu0 %v1339
      %v1493 = vpop.f32.mrb[0].mxu0
      %v1494 = vadd.f32 0.0, %v1493
      %v1495 = vpop.f32.mrb[0].mxu0
      %v1496 = vpop.f32.mrb[0].mxu0
      %v1497 = vadd.f32 0.0, %v1496
      %v1498 = vpop.f32.mrb[0].mxu0
      %1499 = vmatprep.mubr.bf16.mxu0 0
      %1500 = vmatmul.mubr.bf16.gmra.mrb[0].mxu0 %v1342
      %v1501 = vpop.f32.mrb[0].mxu0
      %v1502 = vadd.f32 0.0, %v1501
      %v1503 = vpop.f32.mrb[0].mxu0
      %v1504 = vpop.f32.mrb[0].mxu0
      %v1505 = vadd.f32 0.0, %v1504
      %v1506 = vpop.f32.mrb[0].mxu0
      %1507 = vdwg.mxu0
      %v1508 = vadd.f32 %v1039, %v1382
      %v1509 = vadd.f32 %v1042, %v1385
      %v1510 = vadd.f32 %v1047, %v1390
      %v1511 = vadd.f32 %v1050, %v1393
      %v1512 = vadd.f32 %v1055, %v1398
      %v1513 = vadd.f32 %v1058, %v1401
      %v1514 = vadd.f32 %v1063, %v1406
      %v1515 = vadd.f32 %v1066, %v1409
      %v1516 = vadd.f32 %v1071, %v1414
      %v1517 = vadd.f32 %v1074, %v1417
      %v1518 = vadd.f32 %v1079, %v1422
      %v1519 = vadd.f32 %v1082, %v1425
      %v1520 = vadd.f32 %v1087, %v1430
      %v1521 = vadd.f32 %v1090, %v1433
      %v1522 = vadd.f32 %v1095, %v1438
      %v1523 = vadd.f32 %v1098, %v1441
      %v1524 = vadd.f32 %v1103, %v1446
      %v1525 = vadd.f32 %v1106, %v1449
      %v1526 = vadd.f32 %v1111, %v1454
      %v1527 = vadd.f32 %v1114, %v1457
      %v1528 = vadd.f32 %v1119, %v1462
      %v1529 = vadd.f32 %v1122, %v1465
      %v1530 = vadd.f32 %v1127, %v1470
      %v1531 = vadd.f32 %v1130, %v1473
      %v1532 = vadd.f32 %v1135, %v1478
      %v1533 = vadd.f32 %v1138, %v1481
      %v1534 = vadd.f32 %v1143, %v1486
      %v1535 = vadd.f32 %v1146, %v1489
      %v1536 = vadd.f32 %v1151, %v1494
      %v1537 = vadd.f32 %v1154, %v1497
      %v1538 = vadd.f32 %v1159, %v1502
      %v1539 = vadd.f32 %v1162, %v1505
      %v1540 = vpack.c.bf16 %v538, %v537
      %s1541 = scalar_lea.vmem %s1, 6
      %v1542 = vld [vmem:[%s1541] sm:$0x3]
      %v1544 = vsel %vm739, %v1540, 0
      %v1547 = vsel %vm788, %v1542, 0
      %1549 = vmatprep.subr.bf16.mxu0 0
      %1550 = vmatpush1.bf16.msra.mxu0 %v1547
      %1551 = vmatprep.subr.bf16.mxu0 0
      %1552 = vmatpush1.bf16.msra.mxu0 0
      %1553 = vmatprep.subr.bf16.mxu0 0
      %1554 = vmatpush1.bf16.msra.mxu0 0
      %1555 = vmatprep.subr.bf16.mxu0 0
      %1556 = vmatpush1.bf16.msra.mxu0 0
      %1557 = vmatprep.subr.bf16.mxu0 0
      %1558 = vmatpush1.bf16.msra.mxu0 0
      %1559 = vmatprep.subr.bf16.mxu0 0
      %1560 = vmatpush1.bf16.msra.mxu0 0
      %1561 = vmatprep.subr.bf16.mxu0 0
      %1562 = vmatpush1.bf16.msra.mxu0 0
      %1563 = vmatprep.subr.bf16.mxu0 0
      %1564 = vmatpush1.bf16.msra.mxu0 0
      %1565 = vmatprep.subr.bf16.mxu0 0
      %1566 = vmatpush1.bf16.msra.mxu0 0
      %1567 = vmatprep.subr.bf16.mxu0 0
      %1568 = vmatpush1.bf16.msra.mxu0 0
      %1569 = vmatprep.subr.bf16.mxu0 0
      %1570 = vmatpush1.bf16.msra.mxu0 0
      %1571 = vmatprep.subr.bf16.mxu0 0
      %1572 = vmatpush1.bf16.msra.mxu0 0
      %1573 = vmatprep.subr.bf16.mxu0 0
      %1574 = vmatpush1.bf16.msra.mxu0 0
      %1575 = vmatprep.subr.bf16.mxu0 0
      %1576 = vmatpush1.bf16.msra.mxu0 0
      %1577 = vmatprep.subr.bf16.mxu0 0
      %1578 = vmatpush1.bf16.msra.mxu0 0
      %1579 = vmatprep.subr.bf16.mxu0 0
      %1580 = vmatpush1.bf16.msra.mxu0 0
      %1581 = vmatprep.mubr.bf16.mxu0 0
      %1582 = vmatmul.mubr.bf16.gmra.mrb[0].mxu0 %v957
      %v1583 = vpop.f32.mrb[0].mxu0
      %v1584 = vadd.f32 0.0, %v1583
      %v1585 = vpop.f32.mrb[0].mxu0
      %v1586 = vpop.f32.mrb[0].mxu0
      %v1587 = vadd.f32 0.0, %v1586
      %v1588 = vpop.f32.mrb[0].mxu0
      %1589 = vmatprep.mubr.bf16.mxu0 0
      %1590 = vmatmul.mubr.bf16.gmra.mrb[0].mxu0 %v960
      %v1591 = vpop.f32.mrb[0].mxu0
      %v1592 = vadd.f32 0.0, %v1591
      %v1593 = vpop.f32.mrb[0].mxu0
      %v1594 = vpop.f32.mrb[0].mxu0
      %v1595 = vadd.f32 0.0, %v1594
      %v1596 = vpop.f32.mrb[0].mxu0
      %1597 = vmatprep.mubr.bf16.mxu0 0
      %1598 = vmatmul.mubr.bf16.gmra.mrb[0].mxu0 %v963
      %v1599 = vpop.f32.mrb[0].mxu0
      %v1600 = vadd.f32 0.0, %v1599
      %v1601 = vpop.f32.mrb[0].mxu0
      %v1602 = vpop.f32.mrb[0].mxu0
      %v1603 = vadd.f32 0.0, %v1602
      %v1604 = vpop.f32.mrb[0].mxu0
      %1605 = vmatprep.mubr.bf16.mxu0 0
      %1606 = vmatmul.mubr.bf16.gmra.mrb[0].mxu0 %v966
      %v1607 = vpop.f32.mrb[0].mxu0
      %v1608 = vadd.f32 0.0, %v1607
      %v1609 = vpop.f32.mrb[0].mxu0
      %v1610 = vpop.f32.mrb[0].mxu0
      %v1611 = vadd.f32 0.0, %v1610
      %v1612 = vpop.f32.mrb[0].mxu0
      %1613 = vmatprep.mubr.bf16.mxu0 0
      %1614 = vmatmul.mubr.bf16.gmra.mrb[0].mxu0 %v969
      %v1615 = vpop.f32.mrb[0].mxu0
      %v1616 = vadd.f32 0.0, %v1615
      %v1617 = vpop.f32.mrb[0].mxu0
      %v1618 = vpop.f32.mrb[0].mxu0
      %v1619 = vadd.f32 0.0, %v1618
      %v1620 = vpop.f32.mrb[0].mxu0
      %1621 = vmatprep.mubr.bf16.mxu0 0
      %1622 = vmatmul.mubr.bf16.gmra.mrb[0].mxu0 %v972
      %v1623 = vpop.f32.mrb[0].mxu0
      %v1624 = vadd.f32 0.0, %v1623
      %v1625 = vpop.f32.mrb[0].mxu0
      %v1626 = vpop.f32.mrb[0].mxu0
      %v1627 = vadd.f32 0.0, %v1626
      %v1628 = vpop.f32.mrb[0].mxu0
      %1629 = vmatprep.mubr.bf16.mxu0 0
      %1630 = vmatmul.mubr.bf16.gmra.mrb[0].mxu0 %v975
      %v1631 = vpop.f32.mrb[0].mxu0
      %v1632 = vadd.f32 0.0, %v1631
      %v1633 = vpop.f32.mrb[0].mxu0
      %v1634 = vpop.f32.mrb[0].mxu0
      %v1635 = vadd.f32 0.0, %v1634
      %v1636 = vpop.f32.mrb[0].mxu0
      %1637 = vmatprep.mubr.bf16.mxu0 0
      %1638 = vmatmul.mubr.bf16.gmra.mrb[0].mxu0 %v978
      %v1639 = vpop.f32.mrb[0].mxu0
      %v1640 = vadd.f32 0.0, %v1639
      %v1641 = vpop.f32.mrb[0].mxu0
      %v1642 = vpop.f32.mrb[0].mxu0
      %v1643 = vadd.f32 0.0, %v1642
      %v1644 = vpop.f32.mrb[0].mxu0
      %1645 = vmatprep.mubr.bf16.mxu0 0
      %1646 = vmatmul.mubr.bf16.gmra.mrb[0].mxu0 %v981
      %v1647 = vpop.f32.mrb[0].mxu0
      %v1648 = vadd.f32 0.0, %v1647
      %v1649 = vpop.f32.mrb[0].mxu0
      %v1650 = vpop.f32.mrb[0].mxu0
      %v1651 = vadd.f32 0.0, %v1650
      %v1652 = vpop.f32.mrb[0].mxu0
      %1653 = vmatprep.mubr.bf16.mxu0 0
      %1654 = vmatmul.mubr.bf16.gmra.mrb[0].mxu0 %v984
      %v1655 = vpop.f32.mrb[0].mxu0
      %v1656 = vadd.f32 0.0, %v1655
      %v1657 = vpop.f32.mrb[0].mxu0
      %v1658 = vpop.f32.mrb[0].mxu0
      %v1659 = vadd.f32 0.0, %v1658
      %v1660 = vpop.f32.mrb[0].mxu0
      %1661 = vmatprep.mubr.bf16.mxu0 0
      %1662 = vmatmul.mubr.bf16.gmra.mrb[0].mxu0 %v987
      %v1663 = vpop.f32.mrb[0].mxu0
      %v1664 = vadd.f32 0.0, %v1663
      %v1665 = vpop.f32.mrb[0].mxu0
      %v1666 = vpop.f32.mrb[0].mxu0
      %v1667 = vadd.f32 0.0, %v1666
      %v1668 = vpop.f32.mrb[0].mxu0
      %1669 = vmatprep.mubr.bf16.mxu0 0
      %1670 = vmatmul.mubr.bf16.gmra.mrb[0].mxu0 %v990
      %v1671 = vpop.f32.mrb[0].mxu0
      %v1672 = vadd.f32 0.0, %v1671
      %v1673 = vpop.f32.mrb[0].mxu0
      %v1674 = vpop.f32.mrb[0].mxu0
      %v1675 = vadd.f32 0.0, %v1674
      %v1676 = vpop.f32.mrb[0].mxu0
      %1677 = vmatprep.mubr.bf16.mxu0 0
      %1678 = vmatmul.mubr.bf16.gmra.mrb[0].mxu0 %v993
      %v1679 = vpop.f32.mrb[0].mxu0
      %v1680 = vadd.f32 0.0, %v1679
      %v1681 = vpop.f32.mrb[0].mxu0
      %v1682 = vpop.f32.mrb[0].mxu0
      %v1683 = vadd.f32 0.0, %v1682
      %v1684 = vpop.f32.mrb[0].mxu0
      %1685 = vmatprep.mubr.bf16.mxu0 0
      %1686 = vmatmul.mubr.bf16.gmra.mrb[0].mxu0 %v996
      %v1687 = vpop.f32.mrb[0].mxu0
      %v1688 = vadd.f32 0.0, %v1687
      %v1689 = vpop.f32.mrb[0].mxu0
      %v1690 = vpop.f32.mrb[0].mxu0
      %v1691 = vadd.f32 0.0, %v1690
      %v1692 = vpop.f32.mrb[0].mxu0
      %1693 = vmatprep.mubr.bf16.mxu0 0
      %1694 = vmatmul.mubr.bf16.gmra.mrb[0].mxu0 %v999
      %v1695 = vpop.f32.mrb[0].mxu0
      %v1696 = vadd.f32 0.0, %v1695
      %v1697 = vpop.f32.mrb[0].mxu0
      %v1698 = vpop.f32.mrb[0].mxu0
      %v1699 = vadd.f32 0.0, %v1698
      %v1700 = vpop.f32.mrb[0].mxu0
      %1701 = vmatprep.mubr.bf16.mxu0 0
      %1702 = vmatmul.mubr.bf16.gmra.mrb[0].mxu0 %v1544
      %v1703 = vpop.f32.mrb[0].mxu0
      %v1704 = vadd.f32 0.0, %v1703
      %v1705 = vpop.f32.mrb[0].mxu0
      %v1706 = vpop.f32.mrb[0].mxu0
      %v1707 = vadd.f32 0.0, %v1706
      %v1708 = vpop.f32.mrb[0].mxu0
      %1709 = vdwg.mxu0
      %v1710 = vadd.f32 %v1508, %v1584
      %v1711 = vadd.f32 %v1509, %v1587
      %v1712 = vadd.f32 %v1510, %v1592
      %v1713 = vadd.f32 %v1511, %v1595
      %v1714 = vadd.f32 %v1512, %v1600
      %v1715 = vadd.f32 %v1513, %v1603
      %v1716 = vadd.f32 %v1514, %v1608
      %v1717 = vadd.f32 %v1515, %v1611
      %v1718 = vadd.f32 %v1516, %v1616
      %v1719 = vadd.f32 %v1517, %v1619
      %v1720 = vadd.f32 %v1518, %v1624
      %v1721 = vadd.f32 %v1519, %v1627
      %v1722 = vadd.f32 %v1520, %v1632
      %v1723 = vadd.f32 %v1521, %v1635
      %v1724 = vadd.f32 %v1522, %v1640
      %v1725 = vadd.f32 %v1523, %v1643
      %v1726 = vadd.f32 %v1524, %v1648
      %v1727 = vadd.f32 %v1525, %v1651
      %v1728 = vadd.f32 %v1526, %v1656
      %v1729 = vadd.f32 %v1527, %v1659
      %v1730 = vadd.f32 %v1528, %v1664
      %v1731 = vadd.f32 %v1529, %v1667
      %v1732 = vadd.f32 %v1530, %v1672
      %v1733 = vadd.f32 %v1531, %v1675
      %v1734 = vadd.f32 %v1532, %v1680
      %v1735 = vadd.f32 %v1533, %v1683
      %v1736 = vadd.f32 %v1534, %v1688
      %v1737 = vadd.f32 %v1535, %v1691
      %v1738 = vadd.f32 %v1536, %v1696
      %v1739 = vadd.f32 %v1537, %v1699
      %v1740 = vadd.f32 %v1538, %v1704
      %v1741 = vadd.f32 %v1539, %v1707
      %v1745 = vrot.slane %v537, 1
      %v1746 = vrot.slane %v538, 1
      %v1747 = vsel %vm608, %v1745, %v1746
      %v1748 = vrot.slane %v539, 1
      %v1749 = vsel %vm608, %v1746, %v1748
      %v1752 = vpack.c.bf16 %v1749, %v1747
      %s1753 = scalar_lea.vmem %s1, 8
      %v1754 = vld [vmem:[%s1753] sm:$0x3]
      %v1756 = vsel %vm739, %v1752, 0
      %v1759 = vsel %vm788, %v1754, 0
      %1761 = vmatprep.subr.bf16.mxu0 0
      %1762 = vmatpush1.bf16.msra.mxu0 %v1759
      %1763 = vmatprep.subr.bf16.mxu0 0
      %1764 = vmatpush1.bf16.msra.mxu0 0
      %1765 = vmatprep.subr.bf16.mxu0 0
      %1766 = vmatpush1.bf16.msra.mxu0 0
      %1767 = vmatprep.subr.bf16.mxu0 0
      %1768 = vmatpush1.bf16.msra.mxu0 0
      %1769 = vmatprep.subr.bf16.mxu0 0
      %1770 = vmatpush1.bf16.msra.mxu0 0
      %1771 = vmatprep.subr.bf16.mxu0 0
      %1772 = vmatpush1.bf16.msra.mxu0 0
      %1773 = vmatprep.subr.bf16.mxu0 0
      %1774 = vmatpush1.bf16.msra.mxu0 0
      %1775 = vmatprep.subr.bf16.mxu0 0
      %1776 = vmatpush1.bf16.msra.mxu0 0
      %1777 = vmatprep.subr.bf16.mxu0 0
      %1778 = vmatpush1.bf16.msra.mxu0 0
      %1779 = vmatprep.subr.bf16.mxu0 0
      %1780 = vmatpush1.bf16.msra.mxu0 0
      %1781 = vmatprep.subr.bf16.mxu0 0
      %1782 = vmatpush1.bf16.msra.mxu0 0
      %1783 = vmatprep.subr.bf16.mxu0 0
      %1784 = vmatpush1.bf16.msra.mxu0 0
      %1785 = vmatprep.subr.bf16.mxu0 0
      %1786 = vmatpush1.bf16.msra.mxu0 0
      %1787 = vmatprep.subr.bf16.mxu0 0
      %1788 = vmatpush1.bf16.msra.mxu0 0
      %1789 = vmatprep.subr.bf16.mxu0 0
      %1790 = vmatpush1.bf16.msra.mxu0 0
      %1791 = vmatprep.subr.bf16.mxu0 0
      %1792 = vmatpush1.bf16.msra.mxu0 0
      %1793 = vmatprep.mubr.bf16.mxu0 0
      %1794 = vmatmul.mubr.bf16.gmra.mrb[0].mxu0 %v744
      %v1795 = vpop.f32.mrb[0].mxu0
      %v1796 = vadd.f32 0.0, %v1795
      %v1797 = vpop.f32.mrb[0].mxu0
      %v1798 = vpop.f32.mrb[0].mxu0
      %v1799 = vadd.f32 0.0, %v1798
      %v1800 = vpop.f32.mrb[0].mxu0
      %1801 = vmatprep.mubr.bf16.mxu0 0
      %1802 = vmatmul.mubr.bf16.gmra.mrb[0].mxu0 %v747
      %v1803 = vpop.f32.mrb[0].mxu0
      %v1804 = vadd.f32 0.0, %v1803
      %v1805 = vpop.f32.mrb[0].mxu0
      %v1806 = vpop.f32.mrb[0].mxu0
      %v1807 = vadd.f32 0.0, %v1806
      %v1808 = vpop.f32.mrb[0].mxu0
      %1809 = vmatprep.mubr.bf16.mxu0 0
      %1810 = vmatmul.mubr.bf16.gmra.mrb[0].mxu0 %v750
      %v1811 = vpop.f32.mrb[0].mxu0
      %v1812 = vadd.f32 0.0, %v1811
      %v1813 = vpop.f32.mrb[0].mxu0
      %v1814 = vpop.f32.mrb[0].mxu0
      %v1815 = vadd.f32 0.0, %v1814
      %v1816 = vpop.f32.mrb[0].mxu0
      %1817 = vmatprep.mubr.bf16.mxu0 0
      %1818 = vmatmul.mubr.bf16.gmra.mrb[0].mxu0 %v753
      %v1819 = vpop.f32.mrb[0].mxu0
      %v1820 = vadd.f32 0.0, %v1819
      %v1821 = vpop.f32.mrb[0].mxu0
      %v1822 = vpop.f32.mrb[0].mxu0
      %v1823 = vadd.f32 0.0, %v1822
      %v1824 = vpop.f32.mrb[0].mxu0
      %1825 = vmatprep.mubr.bf16.mxu0 0
      %1826 = vmatmul.mubr.bf16.gmra.mrb[0].mxu0 %v756
      %v1827 = vpop.f32.mrb[0].mxu0
      %v1828 = vadd.f32 0.0, %v1827
      %v1829 = vpop.f32.mrb[0].mxu0
      %v1830 = vpop.f32.mrb[0].mxu0
      %v1831 = vadd.f32 0.0, %v1830
      %v1832 = vpop.f32.mrb[0].mxu0
      %1833 = vmatprep.mubr.bf16.mxu0 0
      %1834 = vmatmul.mubr.bf16.gmra.mrb[0].mxu0 %v759
      %v1835 = vpop.f32.mrb[0].mxu0
      %v1836 = vadd.f32 0.0, %v1835
      %v1837 = vpop.f32.mrb[0].mxu0
      %v1838 = vpop.f32.mrb[0].mxu0
      %v1839 = vadd.f32 0.0, %v1838
      %v1840 = vpop.f32.mrb[0].mxu0
      %1841 = vmatprep.mubr.bf16.mxu0 0
      %1842 = vmatmul.mubr.bf16.gmra.mrb[0].mxu0 %v762
      %v1843 = vpop.f32.mrb[0].mxu0
      %v1844 = vadd.f32 0.0, %v1843
      %v1845 = vpop.f32.mrb[0].mxu0
      %v1846 = vpop.f32.mrb[0].mxu0
      %v1847 = vadd.f32 0.0, %v1846
      %v1848 = vpop.f32.mrb[0].mxu0
      %1849 = vmatprep.mubr.bf16.mxu0 0
      %1850 = vmatmul.mubr.bf16.gmra.mrb[0].mxu0 %v765
      %v1851 = vpop.f32.mrb[0].mxu0
      %v1852 = vadd.f32 0.0, %v1851
      %v1853 = vpop.f32.mrb[0].mxu0
      %v1854 = vpop.f32.mrb[0].mxu0
      %v1855 = vadd.f32 0.0, %v1854
      %v1856 = vpop.f32.mrb[0].mxu0
      %1857 = vmatprep.mubr.bf16.mxu0 0
      %1858 = vmatmul.mubr.bf16.gmra.mrb[0].mxu0 %v768
      %v1859 = vpop.f32.mrb[0].mxu0
      %v1860 = vadd.f32 0.0, %v1859
      %v1861 = vpop.f32.mrb[0].mxu0
      %v1862 = vpop.f32.mrb[0].mxu0
      %v1863 = vadd.f32 0.0, %v1862
      %v1864 = vpop.f32.mrb[0].mxu0
      %1865 = vmatprep.mubr.bf16.mxu0 0
      %1866 = vmatmul.mubr.bf16.gmra.mrb[0].mxu0 %v771
      %v1867 = vpop.f32.mrb[0].mxu0
      %v1868 = vadd.f32 0.0, %v1867
      %v1869 = vpop.f32.mrb[0].mxu0
      %v1870 = vpop.f32.mrb[0].mxu0
      %v1871 = vadd.f32 0.0, %v1870
      %v1872 = vpop.f32.mrb[0].mxu0
      %1873 = vmatprep.mubr.bf16.mxu0 0
      %1874 = vmatmul.mubr.bf16.gmra.mrb[0].mxu0 %v774
      %v1875 = vpop.f32.mrb[0].mxu0
      %v1876 = vadd.f32 0.0, %v1875
      %v1877 = vpop.f32.mrb[0].mxu0
      %v1878 = vpop.f32.mrb[0].mxu0
      %v1879 = vadd.f32 0.0, %v1878
      %v1880 = vpop.f32.mrb[0].mxu0
      %1881 = vmatprep.mubr.bf16.mxu0 0
      %1882 = vmatmul.mubr.bf16.gmra.mrb[0].mxu0 %v777
      %v1883 = vpop.f32.mrb[0].mxu0
      %v1884 = vadd.f32 0.0, %v1883
      %v1885 = vpop.f32.mrb[0].mxu0
      %v1886 = vpop.f32.mrb[0].mxu0
      %v1887 = vadd.f32 0.0, %v1886
      %v1888 = vpop.f32.mrb[0].mxu0
      %1889 = vmatprep.mubr.bf16.mxu0 0
      %1890 = vmatmul.mubr.bf16.gmra.mrb[0].mxu0 %v780
      %v1891 = vpop.f32.mrb[0].mxu0
      %v1892 = vadd.f32 0.0, %v1891
      %v1893 = vpop.f32.mrb[0].mxu0
      %v1894 = vpop.f32.mrb[0].mxu0
      %v1895 = vadd.f32 0.0, %v1894
      %v1896 = vpop.f32.mrb[0].mxu0
      %1897 = vmatprep.mubr.bf16.mxu0 0
      %1898 = vmatmul.mubr.bf16.gmra.mrb[0].mxu0 %v783
      %v1899 = vpop.f32.mrb[0].mxu0
      %v1900 = vadd.f32 0.0, %v1899
      %v1901 = vpop.f32.mrb[0].mxu0
      %v1902 = vpop.f32.mrb[0].mxu0
      %v1903 = vadd.f32 0.0, %v1902
      %v1904 = vpop.f32.mrb[0].mxu0
      %1905 = vmatprep.mubr.bf16.mxu0 0
      %1906 = vmatmul.mubr.bf16.gmra.mrb[0].mxu0 %v786
      %v1907 = vpop.f32.mrb[0].mxu0
      %v1908 = vadd.f32 0.0, %v1907
      %v1909 = vpop.f32.mrb[0].mxu0
      %v1910 = vpop.f32.mrb[0].mxu0
      %v1911 = vadd.f32 0.0, %v1910
      %v1912 = vpop.f32.mrb[0].mxu0
      %1913 = vmatprep.mubr.bf16.mxu0 0
      %1914 = vmatmul.mubr.bf16.gmra.mrb[0].mxu0 %v1756
      %v1915 = vpop.f32.mrb[0].mxu0
      %v1916 = vadd.f32 0.0, %v1915
      %v1917 = vpop.f32.mrb[0].mxu0
      %v1918 = vpop.f32.mrb[0].mxu0
      %v1919 = vadd.f32 0.0, %v1918
      %v1920 = vpop.f32.mrb[0].mxu0
      %1921 = vdwg.mxu0
      %v1922 = vadd.f32 %v1710, %v1796
      %v1923 = vadd.f32 %v1711, %v1799
      %v1924 = vadd.f32 %v1712, %v1804
      %v1925 = vadd.f32 %v1713, %v1807
      %v1926 = vadd.f32 %v1714, %v1812
      %v1927 = vadd.f32 %v1715, %v1815
      %v1928 = vadd.f32 %v1716, %v1820
      %v1929 = vadd.f32 %v1717, %v1823
      %v1930 = vadd.f32 %v1718, %v1828
      %v1931 = vadd.f32 %v1719, %v1831
      %v1932 = vadd.f32 %v1720, %v1836
      %v1933 = vadd.f32 %v1721, %v1839
      %v1934 = vadd.f32 %v1722, %v1844
      %v1935 = vadd.f32 %v1723, %v1847
      %v1936 = vadd.f32 %v1724, %v1852
      %v1937 = vadd.f32 %v1725, %v1855
      %v1938 = vadd.f32 %v1726, %v1860
      %v1939 = vadd.f32 %v1727, %v1863
      %v1940 = vadd.f32 %v1728, %v1868
      %v1941 = vadd.f32 %v1729, %v1871
      %v1942 = vadd.f32 %v1730, %v1876
      %v1943 = vadd.f32 %v1731, %v1879
      %v1944 = vadd.f32 %v1732, %v1884
      %v1945 = vadd.f32 %v1733, %v1887
      %v1946 = vadd.f32 %v1734, %v1892
      %v1947 = vadd.f32 %v1735, %v1895
      %v1948 = vadd.f32 %v1736, %v1900
      %v1949 = vadd.f32 %v1737, %v1903
      %v1950 = vadd.f32 %v1738, %v1908
      %v1951 = vadd.f32 %v1739, %v1911
      %v1952 = vadd.f32 %v1740, %v1916
      %v1953 = vadd.f32 %v1741, %v1919
      %v1954 = vrot.slane %v537, 2
      %v1955 = vrot.slane %v538, 2
      %v1956 = vsel %vm1165, %v1954, %v1955
      %v1957 = vrot.slane %v539, 2
      %v1958 = vsel %vm1165, %v1955, %v1957
      %v1961 = vpack.c.bf16 %v1958, %v1956
      %s1962 = scalar_lea.vmem %s1, 10
      %v1963 = vld [vmem:[%s1962] sm:$0x3]
      %v1965 = vsel %vm739, %v1961, 0
      %v1968 = vsel %vm788, %v1963, 0
      %1970 = vmatprep.subr.bf16.mxu0 0
      %1971 = vmatpush1.bf16.msra.mxu0 %v1968
      %1972 = vmatprep.subr.bf16.mxu0 0
      %1973 = vmatpush1.bf16.msra.mxu0 0
      %1974 = vmatprep.subr.bf16.mxu0 0
      %1975 = vmatpush1.bf16.msra.mxu0 0
      %1976 = vmatprep.subr.bf16.mxu0 0
      %1977 = vmatpush1.bf16.msra.mxu0 0
      %1978 = vmatprep.subr.bf16.mxu0 0
      %1979 = vmatpush1.bf16.msra.mxu0 0
      %1980 = vmatprep.subr.bf16.mxu0 0
      %1981 = vmatpush1.bf16.msra.mxu0 0
      %1982 = vmatprep.subr.bf16.mxu0 0
      %1983 = vmatpush1.bf16.msra.mxu0 0
      %1984 = vmatprep.subr.bf16.mxu0 0
      %1985 = vmatpush1.bf16.msra.mxu0 0
      %1986 = vmatprep.subr.bf16.mxu0 0
      %1987 = vmatpush1.bf16.msra.mxu0 0
      %1988 = vmatprep.subr.bf16.mxu0 0
      %1989 = vmatpush1.bf16.msra.mxu0 0
      %1990 = vmatprep.subr.bf16.mxu0 0
      %1991 = vmatpush1.bf16.msra.mxu0 0
      %1992 = vmatprep.subr.bf16.mxu0 0
      %1993 = vmatpush1.bf16.msra.mxu0 0
      %1994 = vmatprep.subr.bf16.mxu0 0
      %1995 = vmatpush1.bf16.msra.mxu0 0
      %1996 = vmatprep.subr.bf16.mxu0 0
      %1997 = vmatpush1.bf16.msra.mxu0 0
      %1998 = vmatprep.subr.bf16.mxu0 0
      %1999 = vmatpush1.bf16.msra.mxu0 0
      %2000 = vmatprep.subr.bf16.mxu0 0
      %2001 = vmatpush1.bf16.msra.mxu0 0
      %2002 = vmatprep.mubr.bf16.mxu0 0
      %2003 = vmatmul.mubr.bf16.gmra.mrb[0].mxu0 %v1300
      %v2004 = vpop.f32.mrb[0].mxu0
      %v2005 = vadd.f32 0.0, %v2004
      %v2006 = vpop.f32.mrb[0].mxu0
      %v2007 = vpop.f32.mrb[0].mxu0
      %v2008 = vadd.f32 0.0, %v2007
      %v2009 = vpop.f32.mrb[0].mxu0
      %2010 = vmatprep.mubr.bf16.mxu0 0
      %2011 = vmatmul.mubr.bf16.gmra.mrb[0].mxu0 %v1303
      %v2012 = vpop.f32.mrb[0].mxu0
      %v2013 = vadd.f32 0.0, %v2012
      %v2014 = vpop.f32.mrb[0].mxu0
      %v2015 = vpop.f32.mrb[0].mxu0
      %v2016 = vadd.f32 0.0, %v2015
      %v2017 = vpop.f32.mrb[0].mxu0
      %2018 = vmatprep.mubr.bf16.mxu0 0
      %2019 = vmatmul.mubr.bf16.gmra.mrb[0].mxu0 %v1306
      %v2020 = vpop.f32.mrb[0].mxu0
      %v2021 = vadd.f32 0.0, %v2020
      %v2022 = vpop.f32.mrb[0].mxu0
      %v2023 = vpop.f32.mrb[0].mxu0
      %v2024 = vadd.f32 0.0, %v2023
      %v2025 = vpop.f32.mrb[0].mxu0
      %2026 = vmatprep.mubr.bf16.mxu0 0
      %2027 = vmatmul.mubr.bf16.gmra.mrb[0].mxu0 %v1309
      %v2028 = vpop.f32.mrb[0].mxu0
      %v2029 = vadd.f32 0.0, %v2028
      %v2030 = vpop.f32.mrb[0].mxu0
      %v2031 = vpop.f32.mrb[0].mxu0
      %v2032 = vadd.f32 0.0, %v2031
      %v2033 = vpop.f32.mrb[0].mxu0
      %2034 = vmatprep.mubr.bf16.mxu0 0
      %2035 = vmatmul.mubr.bf16.gmra.mrb[0].mxu0 %v1312
      %v2036 = vpop.f32.mrb[0].mxu0
      %v2037 = vadd.f32 0.0, %v2036
      %v2038 = vpop.f32.mrb[0].mxu0
      %v2039 = vpop.f32.mrb[0].mxu0
      %v2040 = vadd.f32 0.0, %v2039
      %v2041 = vpop.f32.mrb[0].mxu0
      %2042 = vmatprep.mubr.bf16.mxu0 0
      %2043 = vmatmul.mubr.bf16.gmra.mrb[0].mxu0 %v1315
      %v2044 = vpop.f32.mrb[0].mxu0
      %v2045 = vadd.f32 0.0, %v2044
      %v2046 = vpop.f32.mrb[0].mxu0
      %v2047 = vpop.f32.mrb[0].mxu0
      %v2048 = vadd.f32 0.0, %v2047
      %v2049 = vpop.f32.mrb[0].mxu0
      %2050 = vmatprep.mubr.bf16.mxu0 0
      %2051 = vmatmul.mubr.bf16.gmra.mrb[0].mxu0 %v1318
      %v2052 = vpop.f32.mrb[0].mxu0
      %v2053 = vadd.f32 0.0, %v2052
      %v2054 = vpop.f32.mrb[0].mxu0
      %v2055 = vpop.f32.mrb[0].mxu0
      %v2056 = vadd.f32 0.0, %v2055
      %v2057 = vpop.f32.mrb[0].mxu0
      %2058 = vmatprep.mubr.bf16.mxu0 0
      %2059 = vmatmul.mubr.bf16.gmra.mrb[0].mxu0 %v1321
      %v2060 = vpop.f32.mrb[0].mxu0
      %v2061 = vadd.f32 0.0, %v2060
      %v2062 = vpop.f32.mrb[0].mxu0
      %v2063 = vpop.f32.mrb[0].mxu0
      %v2064 = vadd.f32 0.0, %v2063
      %v2065 = vpop.f32.mrb[0].mxu0
      %2066 = vmatprep.mubr.bf16.mxu0 0
      %2067 = vmatmul.mubr.bf16.gmra.mrb[0].mxu0 %v1324
      %v2068 = vpop.f32.mrb[0].mxu0
      %v2069 = vadd.f32 0.0, %v2068
      %v2070 = vpop.f32.mrb[0].mxu0
      %v2071 = vpop.f32.mrb[0].mxu0
      %v2072 = vadd.f32 0.0, %v2071
      %v2073 = vpop.f32.mrb[0].mxu0
      %2074 = vmatprep.mubr.bf16.mxu0 0
      %2075 = vmatmul.mubr.bf16.gmra.mrb[0].mxu0 %v1327
      %v2076 = vpop.f32.mrb[0].mxu0
      %v2077 = vadd.f32 0.0, %v2076
      %v2078 = vpop.f32.mrb[0].mxu0
      %v2079 = vpop.f32.mrb[0].mxu0
      %v2080 = vadd.f32 0.0, %v2079
      %v2081 = vpop.f32.mrb[0].mxu0
      %2082 = vmatprep.mubr.bf16.mxu0 0
      %2083 = vmatmul.mubr.bf16.gmra.mrb[0].mxu0 %v1330
      %v2084 = vpop.f32.mrb[0].mxu0
      %v2085 = vadd.f32 0.0, %v2084
      %v2086 = vpop.f32.mrb[0].mxu0
      %v2087 = vpop.f32.mrb[0].mxu0
      %v2088 = vadd.f32 0.0, %v2087
      %v2089 = vpop.f32.mrb[0].mxu0
      %2090 = vmatprep.mubr.bf16.mxu0 0
      %2091 = vmatmul.mubr.bf16.gmra.mrb[0].mxu0 %v1333
      %v2092 = vpop.f32.mrb[0].mxu0
      %v2093 = vadd.f32 0.0, %v2092
      %v2094 = vpop.f32.mrb[0].mxu0
      %v2095 = vpop.f32.mrb[0].mxu0
      %v2096 = vadd.f32 0.0, %v2095
      %v2097 = vpop.f32.mrb[0].mxu0
      %2098 = vmatprep.mubr.bf16.mxu0 0
      %2099 = vmatmul.mubr.bf16.gmra.mrb[0].mxu0 %v1336
      %v2100 = vpop.f32.mrb[0].mxu0
      %v2101 = vadd.f32 0.0, %v2100
      %v2102 = vpop.f32.mrb[0].mxu0
      %v2103 = vpop.f32.mrb[0].mxu0
      %v2104 = vadd.f32 0.0, %v2103
      %v2105 = vpop.f32.mrb[0].mxu0
      %2106 = vmatprep.mubr.bf16.mxu0 0
      %2107 = vmatmul.mubr.bf16.gmra.mrb[0].mxu0 %v1339
      %v2108 = vpop.f32.mrb[0].mxu0
      %v2109 = vadd.f32 0.0, %v2108
      %v2110 = vpop.f32.mrb[0].mxu0
      %v2111 = vpop.f32.mrb[0].mxu0
      %v2112 = vadd.f32 0.0, %v2111
      %v2113 = vpop.f32.mrb[0].mxu0
      %2114 = vmatprep.mubr.bf16.mxu0 0
      %2115 = vmatmul.mubr.bf16.gmra.mrb[0].mxu0 %v1342
      %v2116 = vpop.f32.mrb[0].mxu0
      %v2117 = vadd.f32 0.0, %v2116
      %v2118 = vpop.f32.mrb[0].mxu0
      %v2119 = vpop.f32.mrb[0].mxu0
      %v2120 = vadd.f32 0.0, %v2119
      %v2121 = vpop.f32.mrb[0].mxu0
      %2122 = vmatprep.mubr.bf16.mxu0 0
      %2123 = vmatmul.mubr.bf16.gmra.mrb[0].mxu0 %v1965
      %v2124 = vpop.f32.mrb[0].mxu0
      %v2125 = vadd.f32 0.0, %v2124
      %v2126 = vpop.f32.mrb[0].mxu0
      %v2127 = vpop.f32.mrb[0].mxu0
      %v2128 = vadd.f32 0.0, %v2127
      %v2129 = vpop.f32.mrb[0].mxu0
      %2130 = vdwg.mxu0
      %v2131 = vadd.f32 %v1922, %v2005
      %v2132 = vadd.f32 %v1923, %v2008
      %v2133 = vadd.f32 %v1924, %v2013
      %v2134 = vadd.f32 %v1925, %v2016
      %v2135 = vadd.f32 %v1926, %v2021
      %v2136 = vadd.f32 %v1927, %v2024
      %v2137 = vadd.f32 %v1928, %v2029
      %v2138 = vadd.f32 %v1929, %v2032
      %v2139 = vadd.f32 %v1930, %v2037
      %v2140 = vadd.f32 %v1931, %v2040
      %v2141 = vadd.f32 %v1932, %v2045
      %v2142 = vadd.f32 %v1933, %v2048
      %v2143 = vadd.f32 %v1934, %v2053
      %v2144 = vadd.f32 %v1935, %v2056
      %v2145 = vadd.f32 %v1936, %v2061
      %v2146 = vadd.f32 %v1937, %v2064
      %v2147 = vadd.f32 %v1938, %v2069
      %v2148 = vadd.f32 %v1939, %v2072
      %v2149 = vadd.f32 %v1940, %v2077
      %v2150 = vadd.f32 %v1941, %v2080
      %v2151 = vadd.f32 %v1942, %v2085
      %v2152 = vadd.f32 %v1943, %v2088
      %v2153 = vadd.f32 %v1944, %v2093
      %v2154 = vadd.f32 %v1945, %v2096
      %v2155 = vadd.f32 %v1946, %v2101
      %v2156 = vadd.f32 %v1947, %v2104
      %v2157 = vadd.f32 %v1948, %v2109
      %v2158 = vadd.f32 %v1949, %v2112
      %v2159 = vadd.f32 %v1950, %v2117
      %v2160 = vadd.f32 %v1951, %v2120
      %v2161 = vadd.f32 %v1952, %v2125
      %v2162 = vadd.f32 %v1953, %v2128
      %v2163 = vpack.c.bf16 %v541, %v540
      %s2164 = scalar_lea.vmem %s1, 12
      %v2165 = vld [vmem:[%s2164] sm:$0x3]
      %v2167 = vsel %vm739, %v2163, 0
      %v2170 = vsel %vm788, %v2165, 0
      %2172 = vmatprep.subr.bf16.mxu0 0
      %2173 = vmatpush1.bf16.msra.mxu0 %v2170
      %2174 = vmatprep.subr.bf16.mxu0 0
      %2175 = vmatpush1.bf16.msra.mxu0 0
      %2176 = vmatprep.subr.bf16.mxu0 0
      %2177 = vmatpush1.bf16.msra.mxu0 0
      %2178 = vmatprep.subr.bf16.mxu0 0
      %2179 = vmatpush1.bf16.msra.mxu0 0
      %2180 = vmatprep.subr.bf16.mxu0 0
      %2181 = vmatpush1.bf16.msra.mxu0 0
      %2182 = vmatprep.subr.bf16.mxu0 0
      %2183 = vmatpush1.bf16.msra.mxu0 0
      %2184 = vmatprep.subr.bf16.mxu0 0
      %2185 = vmatpush1.bf16.msra.mxu0 0
      %2186 = vmatprep.subr.bf16.mxu0 0
      %2187 = vmatpush1.bf16.msra.mxu0 0
      %2188 = vmatprep.subr.bf16.mxu0 0
      %2189 = vmatpush1.bf16.msra.mxu0 0
      %2190 = vmatprep.subr.bf16.mxu0 0
      %2191 = vmatpush1.bf16.msra.mxu0 0
      %2192 = vmatprep.subr.bf16.mxu0 0
      %2193 = vmatpush1.bf16.msra.mxu0 0
      %2194 = vmatprep.subr.bf16.mxu0 0
      %2195 = vmatpush1.bf16.msra.mxu0 0
      %2196 = vmatprep.subr.bf16.mxu0 0
      %2197 = vmatpush1.bf16.msra.mxu0 0
      %2198 = vmatprep.subr.bf16.mxu0 0
      %2199 = vmatpush1.bf16.msra.mxu0 0
      %2200 = vmatprep.subr.bf16.mxu0 0
      %2201 = vmatpush1.bf16.msra.mxu0 0
      %2202 = vmatprep.subr.bf16.mxu0 0
      %2203 = vmatpush1.bf16.msra.mxu0 0
      %2204 = vmatprep.mubr.bf16.mxu0 0
      %2205 = vmatmul.mubr.bf16.gmra.mrb[0].mxu0 %v960
      %v2206 = vpop.f32.mrb[0].mxu0
      %v2207 = vadd.f32 0.0, %v2206
      %v2208 = vpop.f32.mrb[0].mxu0
      %v2209 = vpop.f32.mrb[0].mxu0
      %v2210 = vadd.f32 0.0, %v2209
      %v2211 = vpop.f32.mrb[0].mxu0
      %2212 = vmatprep.mubr.bf16.mxu0 0
      %2213 = vmatmul.mubr.bf16.gmra.mrb[0].mxu0 %v963
      %v2214 = vpop.f32.mrb[0].mxu0
      %v2215 = vadd.f32 0.0, %v2214
      %v2216 = vpop.f32.mrb[0].mxu0
      %v2217 = vpop.f32.mrb[0].mxu0
      %v2218 = vadd.f32 0.0, %v2217
      %v2219 = vpop.f32.mrb[0].mxu0
      %2220 = vmatprep.mubr.bf16.mxu0 0
      %2221 = vmatmul.mubr.bf16.gmra.mrb[0].mxu0 %v966
      %v2222 = vpop.f32.mrb[0].mxu0
      %v2223 = vadd.f32 0.0, %v2222
      %v2224 = vpop.f32.mrb[0].mxu0
      %v2225 = vpop.f32.mrb[0].mxu0
      %v2226 = vadd.f32 0.0, %v2225
      %v2227 = vpop.f32.mrb[0].mxu0
      %2228 = vmatprep.mubr.bf16.mxu0 0
      %2229 = vmatmul.mubr.bf16.gmra.mrb[0].mxu0 %v969
      %v2230 = vpop.f32.mrb[0].mxu0
      %v2231 = vadd.f32 0.0, %v2230
      %v2232 = vpop.f32.mrb[0].mxu0
      %v2233 = vpop.f32.mrb[0].mxu0
      %v2234 = vadd.f32 0.0, %v2233
      %v2235 = vpop.f32.mrb[0].mxu0
      %2236 = vmatprep.mubr.bf16.mxu0 0
      %2237 = vmatmul.mubr.bf16.gmra.mrb[0].mxu0 %v972
      %v2238 = vpop.f32.mrb[0].mxu0
      %v2239 = vadd.f32 0.0, %v2238
      %v2240 = vpop.f32.mrb[0].mxu0
      %v2241 = vpop.f32.mrb[0].mxu0
      %v2242 = vadd.f32 0.0, %v2241
      %v2243 = vpop.f32.mrb[0].mxu0
      %2244 = vmatprep.mubr.bf16.mxu0 0
      %2245 = vmatmul.mubr.bf16.gmra.mrb[0].mxu0 %v975
      %v2246 = vpop.f32.mrb[0].mxu0
      %v2247 = vadd.f32 0.0, %v2246
      %v2248 = vpop.f32.mrb[0].mxu0
      %v2249 = vpop.f32.mrb[0].mxu0
      %v2250 = vadd.f32 0.0, %v2249
      %v2251 = vpop.f32.mrb[0].mxu0
      %2252 = vmatprep.mubr.bf16.mxu0 0
      %2253 = vmatmul.mubr.bf16.gmra.mrb[0].mxu0 %v978
      %v2254 = vpop.f32.mrb[0].mxu0
      %v2255 = vadd.f32 0.0, %v2254
      %v2256 = vpop.f32.mrb[0].mxu0
      %v2257 = vpop.f32.mrb[0].mxu0
      %v2258 = vadd.f32 0.0, %v2257
      %v2259 = vpop.f32.mrb[0].mxu0
      %2260 = vmatprep.mubr.bf16.mxu0 0
      %2261 = vmatmul.mubr.bf16.gmra.mrb[0].mxu0 %v981
      %v2262 = vpop.f32.mrb[0].mxu0
      %v2263 = vadd.f32 0.0, %v2262
      %v2264 = vpop.f32.mrb[0].mxu0
      %v2265 = vpop.f32.mrb[0].mxu0
      %v2266 = vadd.f32 0.0, %v2265
      %v2267 = vpop.f32.mrb[0].mxu0
      %2268 = vmatprep.mubr.bf16.mxu0 0
      %2269 = vmatmul.mubr.bf16.gmra.mrb[0].mxu0 %v984
      %v2270 = vpop.f32.mrb[0].mxu0
      %v2271 = vadd.f32 0.0, %v2270
      %v2272 = vpop.f32.mrb[0].mxu0
      %v2273 = vpop.f32.mrb[0].mxu0
      %v2274 = vadd.f32 0.0, %v2273
      %v2275 = vpop.f32.mrb[0].mxu0
      %2276 = vmatprep.mubr.bf16.mxu0 0
      %2277 = vmatmul.mubr.bf16.gmra.mrb[0].mxu0 %v987
      %v2278 = vpop.f32.mrb[0].mxu0
      %v2279 = vadd.f32 0.0, %v2278
      %v2280 = vpop.f32.mrb[0].mxu0
      %v2281 = vpop.f32.mrb[0].mxu0
      %v2282 = vadd.f32 0.0, %v2281
      %v2283 = vpop.f32.mrb[0].mxu0
      %2284 = vmatprep.mubr.bf16.mxu0 0
      %2285 = vmatmul.mubr.bf16.gmra.mrb[0].mxu0 %v990
      %v2286 = vpop.f32.mrb[0].mxu0
      %v2287 = vadd.f32 0.0, %v2286
      %v2288 = vpop.f32.mrb[0].mxu0
      %v2289 = vpop.f32.mrb[0].mxu0
      %v2290 = vadd.f32 0.0, %v2289
      %v2291 = vpop.f32.mrb[0].mxu0
      %2292 = vmatprep.mubr.bf16.mxu0 0
      %2293 = vmatmul.mubr.bf16.gmra.mrb[0].mxu0 %v993
      %v2294 = vpop.f32.mrb[0].mxu0
      %v2295 = vadd.f32 0.0, %v2294
      %v2296 = vpop.f32.mrb[0].mxu0
      %v2297 = vpop.f32.mrb[0].mxu0
      %v2298 = vadd.f32 0.0, %v2297
      %v2299 = vpop.f32.mrb[0].mxu0
      %2300 = vmatprep.mubr.bf16.mxu0 0
      %2301 = vmatmul.mubr.bf16.gmra.mrb[0].mxu0 %v996
      %v2302 = vpop.f32.mrb[0].mxu0
      %v2303 = vadd.f32 0.0, %v2302
      %v2304 = vpop.f32.mrb[0].mxu0
      %v2305 = vpop.f32.mrb[0].mxu0
      %v2306 = vadd.f32 0.0, %v2305
      %v2307 = vpop.f32.mrb[0].mxu0
      %2308 = vmatprep.mubr.bf16.mxu0 0
      %2309 = vmatmul.mubr.bf16.gmra.mrb[0].mxu0 %v999
      %v2310 = vpop.f32.mrb[0].mxu0
      %v2311 = vadd.f32 0.0, %v2310
      %v2312 = vpop.f32.mrb[0].mxu0
      %v2313 = vpop.f32.mrb[0].mxu0
      %v2314 = vadd.f32 0.0, %v2313
      %v2315 = vpop.f32.mrb[0].mxu0
      %2316 = vmatprep.mubr.bf16.mxu0 0
      %2317 = vmatmul.mubr.bf16.gmra.mrb[0].mxu0 %v1544
      %v2318 = vpop.f32.mrb[0].mxu0
      %v2319 = vadd.f32 0.0, %v2318
      %v2320 = vpop.f32.mrb[0].mxu0
      %v2321 = vpop.f32.mrb[0].mxu0
      %v2322 = vadd.f32 0.0, %v2321
      %v2323 = vpop.f32.mrb[0].mxu0
      %2324 = vmatprep.mubr.bf16.mxu0 0
      %2325 = vmatmul.mubr.bf16.gmra.mrb[0].mxu0 %v2167
      %v2326 = vpop.f32.mrb[0].mxu0
      %v2327 = vadd.f32 0.0, %v2326
      %v2328 = vpop.f32.mrb[0].mxu0
      %v2329 = vpop.f32.mrb[0].mxu0
      %v2330 = vadd.f32 0.0, %v2329
      %v2331 = vpop.f32.mrb[0].mxu0
      %2332 = vdwg.mxu0
      %v2333 = vadd.f32 %v2131, %v2207
      %v2334 = vadd.f32 %v2132, %v2210
      %v2335 = vadd.f32 %v2133, %v2215
      %v2336 = vadd.f32 %v2134, %v2218
      %v2337 = vadd.f32 %v2135, %v2223
      %v2338 = vadd.f32 %v2136, %v2226
      %v2339 = vadd.f32 %v2137, %v2231
      %v2340 = vadd.f32 %v2138, %v2234
      %v2341 = vadd.f32 %v2139, %v2239
      %v2342 = vadd.f32 %v2140, %v2242
      %v2343 = vadd.f32 %v2141, %v2247
      %v2344 = vadd.f32 %v2142, %v2250
      %v2345 = vadd.f32 %v2143, %v2255
      %v2346 = vadd.f32 %v2144, %v2258
      %v2347 = vadd.f32 %v2145, %v2263
      %v2348 = vadd.f32 %v2146, %v2266
      %v2349 = vadd.f32 %v2147, %v2271
      %v2350 = vadd.f32 %v2148, %v2274
      %v2351 = vadd.f32 %v2149, %v2279
      %v2352 = vadd.f32 %v2150, %v2282
      %v2353 = vadd.f32 %v2151, %v2287
      %v2354 = vadd.f32 %v2152, %v2290
      %v2355 = vadd.f32 %v2153, %v2295
      %v2356 = vadd.f32 %v2154, %v2298
      %v2357 = vadd.f32 %v2155, %v2303
      %v2358 = vadd.f32 %v2156, %v2306
      %v2359 = vadd.f32 %v2157, %v2311
      %v2360 = vadd.f32 %v2158, %v2314
      %v2361 = vadd.f32 %v2159, %v2319
      %v2362 = vadd.f32 %v2160, %v2322
      %v2363 = vadd.f32 %v2161, %v2327
      %v2364 = vadd.f32 %v2162, %v2330
      %v2368 = vrot.slane %v540, 1
      %v2369 = vrot.slane %v541, 1
      %v2370 = vsel %vm608, %v2368, %v2369
      %v2371 = vrot.slane %v542, 1
      %v2372 = vsel %vm608, %v2369, %v2371
      %v2375 = vpack.c.bf16 %v2372, %v2370
      %s2376 = scalar_lea.vmem %s1, 14
      %v2377 = vld [vmem:[%s2376] sm:$0x3]
      %v2379 = vsel %vm739, %v2375, 0
      %v2382 = vsel %vm788, %v2377, 0
      %2384 = vmatprep.subr.bf16.mxu0 0
      %2385 = vmatpush1.bf16.msra.mxu0 %v2382
      %2386 = vmatprep.subr.bf16.mxu0 0
      %2387 = vmatpush1.bf16.msra.mxu0 0
      %2388 = vmatprep.subr.bf16.mxu0 0
      %2389 = vmatpush1.bf16.msra.mxu0 0
      %2390 = vmatprep.subr.bf16.mxu0 0
      %2391 = vmatpush1.bf16.msra.mxu0 0
      %2392 = vmatprep.subr.bf16.mxu0 0
      %2393 = vmatpush1.bf16.msra.mxu0 0
      %2394 = vmatprep.subr.bf16.mxu0 0
      %2395 = vmatpush1.bf16.msra.mxu0 0
      %2396 = vmatprep.subr.bf16.mxu0 0
      %2397 = vmatpush1.bf16.msra.mxu0 0
      %2398 = vmatprep.subr.bf16.mxu0 0
      %2399 = vmatpush1.bf16.msra.mxu0 0
      %2400 = vmatprep.subr.bf16.mxu0 0
      %2401 = vmatpush1.bf16.msra.mxu0 0
      %2402 = vmatprep.subr.bf16.mxu0 0
      %2403 = vmatpush1.bf16.msra.mxu0 0
      %2404 = vmatprep.subr.bf16.mxu0 0
      %2405 = vmatpush1.bf16.msra.mxu0 0
      %2406 = vmatprep.subr.bf16.mxu0 0
      %2407 = vmatpush1.bf16.msra.mxu0 0
      %2408 = vmatprep.subr.bf16.mxu0 0
      %2409 = vmatpush1.bf16.msra.mxu0 0
      %2410 = vmatprep.subr.bf16.mxu0 0
      %2411 = vmatpush1.bf16.msra.mxu0 0
      %2412 = vmatprep.subr.bf16.mxu0 0
      %2413 = vmatpush1.bf16.msra.mxu0 0
      %2414 = vmatprep.subr.bf16.mxu0 0
      %2415 = vmatpush1.bf16.msra.mxu0 0
      %2416 = vmatprep.mubr.bf16.mxu0 0
      %2417 = vmatmul.mubr.bf16.gmra.mrb[0].mxu0 %v747
      %v2418 = vpop.f32.mrb[0].mxu0
      %v2419 = vadd.f32 0.0, %v2418
      %v2420 = vpop.f32.mrb[0].mxu0
      %v2421 = vpop.f32.mrb[0].mxu0
      %v2422 = vadd.f32 0.0, %v2421
      %v2423 = vpop.f32.mrb[0].mxu0
      %2424 = vmatprep.mubr.bf16.mxu0 0
      %2425 = vmatmul.mubr.bf16.gmra.mrb[0].mxu0 %v750
      %v2426 = vpop.f32.mrb[0].mxu0
      %v2427 = vadd.f32 0.0, %v2426
      %v2428 = vpop.f32.mrb[0].mxu0
      %v2429 = vpop.f32.mrb[0].mxu0
      %v2430 = vadd.f32 0.0, %v2429
      %v2431 = vpop.f32.mrb[0].mxu0
      %2432 = vmatprep.mubr.bf16.mxu0 0
      %2433 = vmatmul.mubr.bf16.gmra.mrb[0].mxu0 %v753
      %v2434 = vpop.f32.mrb[0].mxu0
      %v2435 = vadd.f32 0.0, %v2434
      %v2436 = vpop.f32.mrb[0].mxu0
      %v2437 = vpop.f32.mrb[0].mxu0
      %v2438 = vadd.f32 0.0, %v2437
      %v2439 = vpop.f32.mrb[0].mxu0
      %2440 = vmatprep.mubr.bf16.mxu0 0
      %2441 = vmatmul.mubr.bf16.gmra.mrb[0].mxu0 %v756
      %v2442 = vpop.f32.mrb[0].mxu0
      %v2443 = vadd.f32 0.0, %v2442
      %v2444 = vpop.f32.mrb[0].mxu0
      %v2445 = vpop.f32.mrb[0].mxu0
      %v2446 = vadd.f32 0.0, %v2445
      %v2447 = vpop.f32.mrb[0].mxu0
      %2448 = vmatprep.mubr.bf16.mxu0 0
      %2449 = vmatmul.mubr.bf16.gmra.mrb[0].mxu0 %v759
      %v2450 = vpop.f32.mrb[0].mxu0
      %v2451 = vadd.f32 0.0, %v2450
      %v2452 = vpop.f32.mrb[0].mxu0
      %v2453 = vpop.f32.mrb[0].mxu0
      %v2454 = vadd.f32 0.0, %v2453
      %v2455 = vpop.f32.mrb[0].mxu0
      %2456 = vmatprep.mubr.bf16.mxu0 0
      %2457 = vmatmul.mubr.bf16.gmra.mrb[0].mxu0 %v762
      %v2458 = vpop.f32.mrb[0].mxu0
      %v2459 = vadd.f32 0.0, %v2458
      %v2460 = vpop.f32.mrb[0].mxu0
      %v2461 = vpop.f32.mrb[0].mxu0
      %v2462 = vadd.f32 0.0, %v2461
      %v2463 = vpop.f32.mrb[0].mxu0
      %2464 = vmatprep.mubr.bf16.mxu0 0
      %2465 = vmatmul.mubr.bf16.gmra.mrb[0].mxu0 %v765
      %v2466 = vpop.f32.mrb[0].mxu0
      %v2467 = vadd.f32 0.0, %v2466
      %v2468 = vpop.f32.mrb[0].mxu0
      %v2469 = vpop.f32.mrb[0].mxu0
      %v2470 = vadd.f32 0.0, %v2469
      %v2471 = vpop.f32.mrb[0].mxu0
      %2472 = vmatprep.mubr.bf16.mxu0 0
      %2473 = vmatmul.mubr.bf16.gmra.mrb[0].mxu0 %v768
      %v2474 = vpop.f32.mrb[0].mxu0
      %v2475 = vadd.f32 0.0, %v2474
      %v2476 = vpop.f32.mrb[0].mxu0
      %v2477 = vpop.f32.mrb[0].mxu0
      %v2478 = vadd.f32 0.0, %v2477
      %v2479 = vpop.f32.mrb[0].mxu0
      %2480 = vmatprep.mubr.bf16.mxu0 0
      %2481 = vmatmul.mubr.bf16.gmra.mrb[0].mxu0 %v771
      %v2482 = vpop.f32.mrb[0].mxu0
      %v2483 = vadd.f32 0.0, %v2482
      %v2484 = vpop.f32.mrb[0].mxu0
      %v2485 = vpop.f32.mrb[0].mxu0
      %v2486 = vadd.f32 0.0, %v2485
      %v2487 = vpop.f32.mrb[0].mxu0
      %2488 = vmatprep.mubr.bf16.mxu0 0
      %2489 = vmatmul.mubr.bf16.gmra.mrb[0].mxu0 %v774
      %v2490 = vpop.f32.mrb[0].mxu0
      %v2491 = vadd.f32 0.0, %v2490
      %v2492 = vpop.f32.mrb[0].mxu0
      %v2493 = vpop.f32.mrb[0].mxu0
      %v2494 = vadd.f32 0.0, %v2493
      %v2495 = vpop.f32.mrb[0].mxu0
      %2496 = vmatprep.mubr.bf16.mxu0 0
      %2497 = vmatmul.mubr.bf16.gmra.mrb[0].mxu0 %v777
      %v2498 = vpop.f32.mrb[0].mxu0
      %v2499 = vadd.f32 0.0, %v2498
      %v2500 = vpop.f32.mrb[0].mxu0
      %v2501 = vpop.f32.mrb[0].mxu0
      %v2502 = vadd.f32 0.0, %v2501
      %v2503 = vpop.f32.mrb[0].mxu0
      %2504 = vmatprep.mubr.bf16.mxu0 0
      %2505 = vmatmul.mubr.bf16.gmra.mrb[0].mxu0 %v780
      %v2506 = vpop.f32.mrb[0].mxu0
      %v2507 = vadd.f32 0.0, %v2506
      %v2508 = vpop.f32.mrb[0].mxu0
      %v2509 = vpop.f32.mrb[0].mxu0
      %v2510 = vadd.f32 0.0, %v2509
      %v2511 = vpop.f32.mrb[0].mxu0
      %2512 = vmatprep.mubr.bf16.mxu0 0
      %2513 = vmatmul.mubr.bf16.gmra.mrb[0].mxu0 %v783
      %v2514 = vpop.f32.mrb[0].mxu0
      %v2515 = vadd.f32 0.0, %v2514
      %v2516 = vpop.f32.mrb[0].mxu0
      %v2517 = vpop.f32.mrb[0].mxu0
      %v2518 = vadd.f32 0.0, %v2517
      %v2519 = vpop.f32.mrb[0].mxu0
      %2520 = vmatprep.mubr.bf16.mxu0 0
      %2521 = vmatmul.mubr.bf16.gmra.mrb[0].mxu0 %v786
      %v2522 = vpop.f32.mrb[0].mxu0
      %v2523 = vadd.f32 0.0, %v2522
      %v2524 = vpop.f32.mrb[0].mxu0
      %v2525 = vpop.f32.mrb[0].mxu0
      %v2526 = vadd.f32 0.0, %v2525
      %v2527 = vpop.f32.mrb[0].mxu0
      %2528 = vmatprep.mubr.bf16.mxu0 0
      %2529 = vmatmul.mubr.bf16.gmra.mrb[0].mxu0 %v1756
      %v2530 = vpop.f32.mrb[0].mxu0
      %v2531 = vadd.f32 0.0, %v2530
      %v2532 = vpop.f32.mrb[0].mxu0
      %v2533 = vpop.f32.mrb[0].mxu0
      %v2534 = vadd.f32 0.0, %v2533
      %v2535 = vpop.f32.mrb[0].mxu0
      %2536 = vmatprep.mubr.bf16.mxu0 0
      %2537 = vmatmul.mubr.bf16.gmra.mrb[0].mxu0 %v2379
      %v2538 = vpop.f32.mrb[0].mxu0
      %v2539 = vadd.f32 0.0, %v2538
      %v2540 = vpop.f32.mrb[0].mxu0
      %v2541 = vpop.f32.mrb[0].mxu0
      %v2542 = vadd.f32 0.0, %v2541
      %v2543 = vpop.f32.mrb[0].mxu0
      %2544 = vdwg.mxu0
      %v2545 = vadd.f32 %v2333, %v2419
      %v2546 = vadd.f32 %v2334, %v2422
      %v2547 = vadd.f32 %v2335, %v2427
      %v2548 = vadd.f32 %v2336, %v2430
      %v2549 = vadd.f32 %v2337, %v2435
      %v2550 = vadd.f32 %v2338, %v2438
      %v2551 = vadd.f32 %v2339, %v2443
      %v2552 = vadd.f32 %v2340, %v2446
      %v2553 = vadd.f32 %v2341, %v2451
      %v2554 = vadd.f32 %v2342, %v2454
      %v2555 = vadd.f32 %v2343, %v2459
      %v2556 = vadd.f32 %v2344, %v2462
      %v2557 = vadd.f32 %v2345, %v2467
      %v2558 = vadd.f32 %v2346, %v2470
      %v2559 = vadd.f32 %v2347, %v2475
      %v2560 = vadd.f32 %v2348, %v2478
      %v2561 = vadd.f32 %v2349, %v2483
      %v2562 = vadd.f32 %v2350, %v2486
      %v2563 = vadd.f32 %v2351, %v2491
      %v2564 = vadd.f32 %v2352, %v2494
      %v2565 = vadd.f32 %v2353, %v2499
      %v2566 = vadd.f32 %v2354, %v2502
      %v2567 = vadd.f32 %v2355, %v2507
      %v2568 = vadd.f32 %v2356, %v2510
      %v2569 = vadd.f32 %v2357, %v2515
      %v2570 = vadd.f32 %v2358, %v2518
      %v2571 = vadd.f32 %v2359, %v2523
      %v2572 = vadd.f32 %v2360, %v2526
      %v2573 = vadd.f32 %v2361, %v2531
      %v2574 = vadd.f32 %v2362, %v2534
      %v2575 = vadd.f32 %v2363, %v2539
      %v2576 = vadd.f32 %v2364, %v2542
      %v2577 = vrot.slane %v540, 2
      %v2578 = vrot.slane %v541, 2
      %v2579 = vsel %vm1165, %v2577, %v2578
      %v2580 = vrot.slane %v542, 2
      %v2581 = vsel %vm1165, %v2578, %v2580
      %v2584 = vpack.c.bf16 %v2581, %v2579
      %s2585 = scalar_lea.vmem %s1, 16
      %v2586 = vld [vmem:[%s2585] sm:$0x3]
      %v2588 = vsel %vm739, %v2584, 0
      %v2591 = vsel %vm788, %v2586, 0
      %2593 = vmatprep.subr.bf16.mxu0 0
      %2594 = vmatpush1.bf16.msra.mxu0 %v2591
      %2595 = vmatprep.subr.bf16.mxu0 0
      %2596 = vmatpush1.bf16.msra.mxu0 0
      %2597 = vmatprep.subr.bf16.mxu0 0
      %2598 = vmatpush1.bf16.msra.mxu0 0
      %2599 = vmatprep.subr.bf16.mxu0 0
      %2600 = vmatpush1.bf16.msra.mxu0 0
      %2601 = vmatprep.subr.bf16.mxu0 0
      %2602 = vmatpush1.bf16.msra.mxu0 0
      %2603 = vmatprep.subr.bf16.mxu0 0
      %2604 = vmatpush1.bf16.msra.mxu0 0
      %2605 = vmatprep.subr.bf16.mxu0 0
      %2606 = vmatpush1.bf16.msra.mxu0 0
      %2607 = vmatprep.subr.bf16.mxu0 0
      %2608 = vmatpush1.bf16.msra.mxu0 0
      %2609 = vmatprep.subr.bf16.mxu0 0
      %2610 = vmatpush1.bf16.msra.mxu0 0
      %2611 = vmatprep.subr.bf16.mxu0 0
      %2612 = vmatpush1.bf16.msra.mxu0 0
      %2613 = vmatprep.subr.bf16.mxu0 0
      %2614 = vmatpush1.bf16.msra.mxu0 0
      %2615 = vmatprep.subr.bf16.mxu0 0
      %2616 = vmatpush1.bf16.msra.mxu0 0
      %2617 = vmatprep.subr.bf16.mxu0 0
      %2618 = vmatpush1.bf16.msra.mxu0 0
      %2619 = vmatprep.subr.bf16.mxu0 0
      %2620 = vmatpush1.bf16.msra.mxu0 0
      %2621 = vmatprep.subr.bf16.mxu0 0
      %2622 = vmatpush1.bf16.msra.mxu0 0
      %2623 = vmatprep.subr.bf16.mxu0 0
      %2624 = vmatpush1.bf16.msra.mxu0 0
      %2625 = vmatprep.mubr.bf16.mxu0 0
      %2626 = vmatmul.mubr.bf16.gmra.mrb[0].mxu0 %v1303
      %v2627 = vpop.f32.mrb[0].mxu0
      %v2628 = vadd.f32 0.0, %v2627
      %v2629 = vpop.f32.mrb[0].mxu0
      %v2630 = vpop.f32.mrb[0].mxu0
      %v2631 = vadd.f32 0.0, %v2630
      %v2632 = vpop.f32.mrb[0].mxu0
      %2633 = vmatprep.mubr.bf16.mxu0 0
      %2634 = vmatmul.mubr.bf16.gmra.mrb[0].mxu0 %v1306
      %v2635 = vpop.f32.mrb[0].mxu0
      %v2636 = vadd.f32 0.0, %v2635
      %v2637 = vpop.f32.mrb[0].mxu0
      %v2638 = vpop.f32.mrb[0].mxu0
      %v2639 = vadd.f32 0.0, %v2638
      %v2640 = vpop.f32.mrb[0].mxu0
      %2641 = vmatprep.mubr.bf16.mxu0 0
      %2642 = vmatmul.mubr.bf16.gmra.mrb[0].mxu0 %v1309
      %v2643 = vpop.f32.mrb[0].mxu0
      %v2644 = vadd.f32 0.0, %v2643
      %v2645 = vpop.f32.mrb[0].mxu0
      %v2646 = vpop.f32.mrb[0].mxu0
      %v2647 = vadd.f32 0.0, %v2646
      %v2648 = vpop.f32.mrb[0].mxu0
      %2649 = vmatprep.mubr.bf16.mxu0 0
      %2650 = vmatmul.mubr.bf16.gmra.mrb[0].mxu0 %v1312
      %v2651 = vpop.f32.mrb[0].mxu0
      %v2652 = vadd.f32 0.0, %v2651
      %v2653 = vpop.f32.mrb[0].mxu0
      %v2654 = vpop.f32.mrb[0].mxu0
      %v2655 = vadd.f32 0.0, %v2654
      %v2656 = vpop.f32.mrb[0].mxu0
      %2657 = vmatprep.mubr.bf16.mxu0 0
      %2658 = vmatmul.mubr.bf16.gmra.mrb[0].mxu0 %v1315
      %v2659 = vpop.f32.mrb[0].mxu0
      %v2660 = vadd.f32 0.0, %v2659
      %v2661 = vpop.f32.mrb[0].mxu0
      %v2662 = vpop.f32.mrb[0].mxu0
      %v2663 = vadd.f32 0.0, %v2662
      %v2664 = vpop.f32.mrb[0].mxu0
      %2665 = vmatprep.mubr.bf16.mxu0 0
      %2666 = vmatmul.mubr.bf16.gmra.mrb[0].mxu0 %v1318
      %v2667 = vpop.f32.mrb[0].mxu0
      %v2668 = vadd.f32 0.0, %v2667
      %v2669 = vpop.f32.mrb[0].mxu0
      %v2670 = vpop.f32.mrb[0].mxu0
      %v2671 = vadd.f32 0.0, %v2670
      %v2672 = vpop.f32.mrb[0].mxu0
      %2673 = vmatprep.mubr.bf16.mxu0 0
      %2674 = vmatmul.mubr.bf16.gmra.mrb[0].mxu0 %v1321
      %v2675 = vpop.f32.mrb[0].mxu0
      %v2676 = vadd.f32 0.0, %v2675
      %v2677 = vpop.f32.mrb[0].mxu0
      %v2678 = vpop.f32.mrb[0].mxu0
      %v2679 = vadd.f32 0.0, %v2678
      %v2680 = vpop.f32.mrb[0].mxu0
      %2681 = vmatprep.mubr.bf16.mxu0 0
      %2682 = vmatmul.mubr.bf16.gmra.mrb[0].mxu0 %v1324
      %v2683 = vpop.f32.mrb[0].mxu0
      %v2684 = vadd.f32 0.0, %v2683
      %v2685 = vpop.f32.mrb[0].mxu0
      %v2686 = vpop.f32.mrb[0].mxu0
      %v2687 = vadd.f32 0.0, %v2686
      %v2688 = vpop.f32.mrb[0].mxu0
      %2689 = vmatprep.mubr.bf16.mxu0 0
      %2690 = vmatmul.mubr.bf16.gmra.mrb[0].mxu0 %v1327
      %v2691 = vpop.f32.mrb[0].mxu0
      %v2692 = vadd.f32 0.0, %v2691
      %v2693 = vpop.f32.mrb[0].mxu0
      %v2694 = vpop.f32.mrb[0].mxu0
      %v2695 = vadd.f32 0.0, %v2694
      %v2696 = vpop.f32.mrb[0].mxu0
      %2697 = vmatprep.mubr.bf16.mxu0 0
      %2698 = vmatmul.mubr.bf16.gmra.mrb[0].mxu0 %v1330
      %v2699 = vpop.f32.mrb[0].mxu0
      %v2700 = vadd.f32 0.0, %v2699
      %v2701 = vpop.f32.mrb[0].mxu0
      %v2702 = vpop.f32.mrb[0].mxu0
      %v2703 = vadd.f32 0.0, %v2702
      %v2704 = vpop.f32.mrb[0].mxu0
      %2705 = vmatprep.mubr.bf16.mxu0 0
      %2706 = vmatmul.mubr.bf16.gmra.mrb[0].mxu0 %v1333
      %v2707 = vpop.f32.mrb[0].mxu0
      %v2708 = vadd.f32 0.0, %v2707
      %v2709 = vpop.f32.mrb[0].mxu0
      %v2710 = vpop.f32.mrb[0].mxu0
      %v2711 = vadd.f32 0.0, %v2710
      %v2712 = vpop.f32.mrb[0].mxu0
      %2713 = vmatprep.mubr.bf16.mxu0 0
      %2714 = vmatmul.mubr.bf16.gmra.mrb[0].mxu0 %v1336
      %v2715 = vpop.f32.mrb[0].mxu0
      %v2716 = vadd.f32 0.0, %v2715
      %v2717 = vpop.f32.mrb[0].mxu0
      %v2718 = vpop.f32.mrb[0].mxu0
      %v2719 = vadd.f32 0.0, %v2718
      %v2720 = vpop.f32.mrb[0].mxu0
      %2721 = vmatprep.mubr.bf16.mxu0 0
      %2722 = vmatmul.mubr.bf16.gmra.mrb[0].mxu0 %v1339
      %v2723 = vpop.f32.mrb[0].mxu0
      %v2724 = vadd.f32 0.0, %v2723
      %v2725 = vpop.f32.mrb[0].mxu0
      %v2726 = vpop.f32.mrb[0].mxu0
      %v2727 = vadd.f32 0.0, %v2726
      %v2728 = vpop.f32.mrb[0].mxu0
      %2729 = vmatprep.mubr.bf16.mxu0 0
      %2730 = vmatmul.mubr.bf16.gmra.mrb[0].mxu0 %v1342
      %v2731 = vpop.f32.mrb[0].mxu0
      %v2732 = vadd.f32 0.0, %v2731
      %v2733 = vpop.f32.mrb[0].mxu0
      %v2734 = vpop.f32.mrb[0].mxu0
      %v2735 = vadd.f32 0.0, %v2734
      %v2736 = vpop.f32.mrb[0].mxu0
      %2737 = vmatprep.mubr.bf16.mxu0 0
      %2738 = vmatmul.mubr.bf16.gmra.mrb[0].mxu0 %v1965
      %v2739 = vpop.f32.mrb[0].mxu0
      %v2740 = vadd.f32 0.0, %v2739
      %v2741 = vpop.f32.mrb[0].mxu0
      %v2742 = vpop.f32.mrb[0].mxu0
      %v2743 = vadd.f32 0.0, %v2742
      %v2744 = vpop.f32.mrb[0].mxu0
      %2745 = vmatprep.mubr.bf16.mxu0 0
      %2746 = vmatmul.mubr.bf16.gmra.mrb[0].mxu0 %v2588
      %v2747 = vpop.f32.mrb[0].mxu0
      %v2748 = vadd.f32 0.0, %v2747
      %v2749 = vpop.f32.mrb[0].mxu0
      %v2750 = vpop.f32.mrb[0].mxu0
      %v2751 = vadd.f32 0.0, %v2750
      %v2752 = vpop.f32.mrb[0].mxu0
      %2753 = vdwg.mxu0
      %v2754 = vadd.f32 %v2545, %v2628
      %v2755 = vadd.f32 %v2546, %v2631
      %v2756 = vadd.f32 %v2547, %v2636
      %v2757 = vadd.f32 %v2548, %v2639
      %v2758 = vadd.f32 %v2549, %v2644
      %v2759 = vadd.f32 %v2550, %v2647
      %v2760 = vadd.f32 %v2551, %v2652
      %v2761 = vadd.f32 %v2552, %v2655
      %v2762 = vadd.f32 %v2553, %v2660
      %v2763 = vadd.f32 %v2554, %v2663
      %v2764 = vadd.f32 %v2555, %v2668
      %v2765 = vadd.f32 %v2556, %v2671
      %v2766 = vadd.f32 %v2557, %v2676
      %v2767 = vadd.f32 %v2558, %v2679
      %v2768 = vadd.f32 %v2559, %v2684
      %v2769 = vadd.f32 %v2560, %v2687
      %v2770 = vadd.f32 %v2561, %v2692
      %v2771 = vadd.f32 %v2562, %v2695
      %v2772 = vadd.f32 %v2563, %v2700
      %v2773 = vadd.f32 %v2564, %v2703
      %v2774 = vadd.f32 %v2565, %v2708
      %v2775 = vadd.f32 %v2566, %v2711
      %v2776 = vadd.f32 %v2567, %v2716
      %v2777 = vadd.f32 %v2568, %v2719
      %v2778 = vadd.f32 %v2569, %v2724
      %v2779 = vadd.f32 %v2570, %v2727
      %v2780 = vadd.f32 %v2571, %v2732
      %v2781 = vadd.f32 %v2572, %v2735
      %v2782 = vadd.f32 %v2573, %v2740
      %v2783 = vadd.f32 %v2574, %v2743
      %v2784 = vadd.f32 %v2575, %v2748
      %v2785 = vadd.f32 %v2576, %v2751
      %2786 = vst.msk [vmem:[%s231] sm:$0xff] %vm739, %v2754
      %2787 = vst.msk [vmem:[%s231 + $0x8] sm:$0xff] %vm739, %v2755
      %2788 = vst.msk [vmem:[%s231 + $0x10] sm:$0xff] %vm739, %v2756
      %2789 = vst.msk [vmem:[%s231 + $0x18] sm:$0xff] %vm739, %v2757
      %2790 = vst.msk [vmem:[%s231 + $0x20] sm:$0xff] %vm739, %v2758
      %2791 = vst.msk [vmem:[%s231 + $0x28] sm:$0xff] %vm739, %v2759
      %2792 = vst.msk [vmem:[%s231 + $0x30] sm:$0xff] %vm739, %v2760
      %2793 = vst.msk [vmem:[%s231 + $0x38] sm:$0xff] %vm739, %v2761
      %2794 = vst.msk [vmem:[%s231 + $0x40] sm:$0xff] %vm739, %v2762
      %2795 = vst.msk [vmem:[%s231 + $0x48] sm:$0xff] %vm739, %v2763
      %2796 = vst.msk [vmem:[%s231 + $0x50] sm:$0xff] %vm739, %v2764
      %2797 = vst.msk [vmem:[%s231 + $0x58] sm:$0xff] %vm739, %v2765
      %2798 = vst.msk [vmem:[%s231 + $0x60] sm:$0xff] %vm739, %v2766
      %2799 = vst.msk [vmem:[%s231 + $0x68] sm:$0xff] %vm739, %v2767
      %2800 = vst.msk [vmem:[%s231 + $0x70] sm:$0xff] %vm739, %v2768
      %2801 = vst.msk [vmem:[%s231 + $0x78] sm:$0xff] %vm739, %v2769
      %2802 = vst.msk [vmem:[%s231 + $0x80] sm:$0xff] %vm739, %v2770
      %2803 = vst.msk [vmem:[%s231 + $0x88] sm:$0xff] %vm739, %v2771
      %2804 = vst.msk [vmem:[%s231 + $0x90] sm:$0xff] %vm739, %v2772
      %2805 = vst.msk [vmem:[%s231 + $0x98] sm:$0xff] %vm739, %v2773
      %2806 = vst.msk [vmem:[%s231 + $0xa0] sm:$0xff] %vm739, %v2774
      %2807 = vst.msk [vmem:[%s231 + $0xa8] sm:$0xff] %vm739, %v2775
      %2808 = vst.msk [vmem:[%s231 + $0xb0] sm:$0xff] %vm739, %v2776
      %2809 = vst.msk [vmem:[%s231 + $0xb8] sm:$0xff] %vm739, %v2777
      %2810 = vst.msk [vmem:[%s231 + $0xc0] sm:$0xff] %vm739, %v2778
      %2811 = vst.msk [vmem:[%s231 + $0xc8] sm:$0xff] %vm739, %v2779
      %2812 = vst.msk [vmem:[%s231 + $0xd0] sm:$0xff] %vm739, %v2780
      %2813 = vst.msk [vmem:[%s231 + $0xd8] sm:$0xff] %vm739, %v2781
      %2814 = vst.msk [vmem:[%s231 + $0xe0] sm:$0xff] %vm739, %v2782
      %2815 = vst.msk [vmem:[%s231 + $0xe8] sm:$0xff] %vm739, %v2783
      %2816 = vst.msk [vmem:[%s231 + $0xf0] sm:$0xff] %vm739, %v2784
      %2817 = vst.msk [vmem:[%s231 + $0xf8] sm:$0xff] %vm739, %v2785
      %v2818 = vsel %vm739, %v2754, 0.0
      %v2819 = vsel %vm739, %v2755, 0.0
      %v2820 = vadd.f32 %v2818, %v2819
      %v2821 = vsel %vm739, %v2756, 0.0
      %v2822 = vadd.f32 %v2820, %v2821
      %v2823 = vsel %vm739, %v2757, 0.0
      %v2824 = vadd.f32 %v2822, %v2823
      %v2825 = vsel %vm739, %v2758, 0.0
      %v2826 = vadd.f32 %v2824, %v2825
      %v2827 = vsel %vm739, %v2759, 0.0
      %v2828 = vadd.f32 %v2826, %v2827
      %v2829 = vsel %vm739, %v2760, 0.0
      %v2830 = vadd.f32 %v2828, %v2829
      %v2831 = vsel %vm739, %v2761, 0.0
      %v2832 = vadd.f32 %v2830, %v2831
      %v2833 = vsel %vm739, %v2762, 0.0
      %v2834 = vadd.f32 %v2832, %v2833
      %v2835 = vsel %vm739, %v2763, 0.0
      %v2836 = vadd.f32 %v2834, %v2835
      %v2837 = vsel %vm739, %v2764, 0.0
      %v2838 = vadd.f32 %v2836, %v2837
      %v2839 = vsel %vm739, %v2765, 0.0
      %v2840 = vadd.f32 %v2838, %v2839
      %v2841 = vsel %vm739, %v2766, 0.0
      %v2842 = vadd.f32 %v2840, %v2841
      %v2843 = vsel %vm739, %v2767, 0.0
      %v2844 = vadd.f32 %v2842, %v2843
      %v2845 = vsel %vm739, %v2768, 0.0
      %v2846 = vadd.f32 %v2844, %v2845
      %v2847 = vsel %vm739, %v2769, 0.0
      %v2848 = vadd.f32 %v2846, %v2847
      %v2849 = vsel %vm739, %v2770, 0.0
      %v2850 = vadd.f32 %v2848, %v2849
      %v2851 = vsel %vm739, %v2771, 0.0
      %v2852 = vadd.f32 %v2850, %v2851
      %v2853 = vsel %vm739, %v2772, 0.0
      %v2854 = vadd.f32 %v2852, %v2853
      %v2855 = vsel %vm739, %v2773, 0.0
      %v2856 = vadd.f32 %v2854, %v2855
      %v2857 = vsel %vm739, %v2774, 0.0
      %v2858 = vadd.f32 %v2856, %v2857
      %v2859 = vsel %vm739, %v2775, 0.0
      %v2860 = vadd.f32 %v2858, %v2859
      %v2861 = vsel %vm739, %v2776, 0.0
      %v2862 = vadd.f32 %v2860, %v2861
      %v2863 = vsel %vm739, %v2777, 0.0
      %v2864 = vadd.f32 %v2862, %v2863
      %v2865 = vsel %vm739, %v2778, 0.0
      %v2866 = vadd.f32 %v2864, %v2865
      %v2867 = vsel %vm739, %v2779, 0.0
      %v2868 = vadd.f32 %v2866, %v2867
      %v2869 = vsel %vm739, %v2780, 0.0
      %v2870 = vadd.f32 %v2868, %v2869
      %v2871 = vsel %vm739, %v2781, 0.0
      %v2872 = vadd.f32 %v2870, %v2871
      %v2873 = vsel %vm739, %v2782, 0.0
      %v2874 = vadd.f32 %v2872, %v2873
      %v2875 = vsel %vm739, %v2783, 0.0
      %v2876 = vadd.f32 %v2874, %v2875
      %v2877 = vsel %vm739, %v2784, 0.0
      %v2878 = vadd.f32 %v2876, %v2877
      %v2879 = vsel %vm739, %v2785, 0.0
      %v2880 = vadd.f32 %v2878, %v2879
      %v2881 = vrot.slane %v2880, 4
      %v2882 = vadd.f32 %v2880, %v2881
      %v2883 = vrot.slane %v2882, 2
      %v2884 = vadd.f32 %v2882, %v2883
      %v2885 = vrot.slane %v2884, 1
      %v2886 = vadd.f32 %v2884, %v2885
      %vm2887 = vcmask 24576
      %2888 = vst.msk [vmem:[%s235] sm:$0x1] %vm2887, %v2886
      %v2889 = vmul.f32 %v2754, %v2754
      %v2890 = vmul.f32 %v2755, %v2755
      %v2891 = vmul.f32 %v2756, %v2756
      %v2892 = vmul.f32 %v2757, %v2757
      %v2893 = vmul.f32 %v2758, %v2758
      %v2894 = vmul.f32 %v2759, %v2759
      %v2895 = vmul.f32 %v2760, %v2760
      %v2896 = vmul.f32 %v2761, %v2761
      %v2897 = vmul.f32 %v2762, %v2762
      %v2898 = vmul.f32 %v2763, %v2763
      %v2899 = vmul.f32 %v2764, %v2764
      %v2900 = vmul.f32 %v2765, %v2765
      %v2901 = vmul.f32 %v2766, %v2766
      %v2902 = vmul.f32 %v2767, %v2767
      %v2903 = vmul.f32 %v2768, %v2768
      %v2904 = vmul.f32 %v2769, %v2769
      %v2905 = vmul.f32 %v2770, %v2770
      %v2906 = vmul.f32 %v2771, %v2771
      %v2907 = vmul.f32 %v2772, %v2772
      %v2908 = vmul.f32 %v2773, %v2773
      %v2909 = vmul.f32 %v2774, %v2774
      %v2910 = vmul.f32 %v2775, %v2775
      %v2911 = vmul.f32 %v2776, %v2776
      %v2912 = vmul.f32 %v2777, %v2777
      %v2913 = vmul.f32 %v2778, %v2778
      %v2914 = vmul.f32 %v2779, %v2779
      %v2915 = vmul.f32 %v2780, %v2780
      %v2916 = vmul.f32 %v2781, %v2781
      %v2917 = vmul.f32 %v2782, %v2782
      %v2918 = vmul.f32 %v2783, %v2783
      %v2919 = vmul.f32 %v2784, %v2784
      %v2920 = vmul.f32 %v2785, %v2785
      %v2921 = vsel %vm739, %v2889, 0.0
      %v2922 = vsel %vm739, %v2890, 0.0
      %v2923 = vadd.f32 %v2921, %v2922
      %v2924 = vsel %vm739, %v2891, 0.0
      %v2925 = vadd.f32 %v2923, %v2924
      %v2926 = vsel %vm739, %v2892, 0.0
      %v2927 = vadd.f32 %v2925, %v2926
      %v2928 = vsel %vm739, %v2893, 0.0
      %v2929 = vadd.f32 %v2927, %v2928
      %v2930 = vsel %vm739, %v2894, 0.0
      %v2931 = vadd.f32 %v2929, %v2930
      %v2932 = vsel %vm739, %v2895, 0.0
      %v2933 = vadd.f32 %v2931, %v2932
      %v2934 = vsel %vm739, %v2896, 0.0
      %v2935 = vadd.f32 %v2933, %v2934
      %v2936 = vsel %vm739, %v2897, 0.0
      %v2937 = vadd.f32 %v2935, %v2936
      %v2938 = vsel %vm739, %v2898, 0.0
      %v2939 = vadd.f32 %v2937, %v2938
      %v2940 = vsel %vm739, %v2899, 0.0
      %v2941 = vadd.f32 %v2939, %v2940
      %v2942 = vsel %vm739, %v2900, 0.0
      %v2943 = vadd.f32 %v2941, %v2942
      %v2944 = vsel %vm739, %v2901, 0.0
      %v2945 = vadd.f32 %v2943, %v2944
      %v2946 = vsel %vm739, %v2902, 0.0
      %v2947 = vadd.f32 %v2945, %v2946
      %v2948 = vsel %vm739, %v2903, 0.0
      %v2949 = vadd.f32 %v2947, %v2948
      %v2950 = vsel %vm739, %v2904, 0.0
      %v2951 = vadd.f32 %v2949, %v2950
      %v2952 = vsel %vm739, %v2905, 0.0
      %v2953 = vadd.f32 %v2951, %v2952
      %v2954 = vsel %vm739, %v2906, 0.0
      %v2955 = vadd.f32 %v2953, %v2954
      %v2956 = vsel %vm739, %v2907, 0.0
      %v2957 = vadd.f32 %v2955, %v2956
      %v2958 = vsel %vm739, %v2908, 0.0
      %v2959 = vadd.f32 %v2957, %v2958
      %v2960 = vsel %vm739, %v2909, 0.0
      %v2961 = vadd.f32 %v2959, %v2960
      %v2962 = vsel %vm739, %v2910, 0.0
      %v2963 = vadd.f32 %v2961, %v2962
      %v2964 = vsel %vm739, %v2911, 0.0
      %v2965 = vadd.f32 %v2963, %v2964
      %v2966 = vsel %vm739, %v2912, 0.0
      %v2967 = vadd.f32 %v2965, %v2966
      %v2968 = vsel %vm739, %v2913, 0.0
      %v2969 = vadd.f32 %v2967, %v2968
      %v2970 = vsel %vm739, %v2914, 0.0
      %v2971 = vadd.f32 %v2969, %v2970
      %v2972 = vsel %vm739, %v2915, 0.0
      %v2973 = vadd.f32 %v2971, %v2972
      %v2974 = vsel %vm739, %v2916, 0.0
      %v2975 = vadd.f32 %v2973, %v2974
      %v2976 = vsel %vm739, %v2917, 0.0
      %v2977 = vadd.f32 %v2975, %v2976
      %v2978 = vsel %vm739, %v2918, 0.0
      %v2979 = vadd.f32 %v2977, %v2978
      %v2980 = vsel %vm739, %v2919, 0.0
      %v2981 = vadd.f32 %v2979, %v2980
      %v2982 = vsel %vm739, %v2920, 0.0
      %v2983 = vadd.f32 %v2981, %v2982
      %v2984 = vrot.slane %v2983, 4
      %v2985 = vadd.f32 %v2983, %v2984
      %v2986 = vrot.slane %v2985, 2
      %v2987 = vadd.f32 %v2985, %v2986
      %v2988 = vrot.slane %v2987, 1
      %v2989 = vadd.f32 %v2987, %v2988
      %2990 = vst.msk [vmem:[%s235 + $0x1] sm:$0x1] %vm2887, %v2989
      %p2991 = scmp.lt.s32.totalorder %s17, 1
      %s2992 = scalar_select %p2991, %s17, 1
      %s2993 = smul.addr %s2992, 32
      %s2994 = smul.addr %s2993, 8
      %s2995 = scalar_lea.vmem %s4, %s2994
      %p2996 = scmp.lt.s32.totalorder %s17, 1
      %s2997 = scalar_select %p2996, %s17, 1
      %s2998 = smul.addr %s2997, 2
      %s2999 = scalar_lea.vmem %s5, %s2998
      // Predicated region
      $region37: #{up_forward.4} parent=35 // pred_check
        %p3000 = pneg %p124
      $region38: #{up_forward.4} parent=35 // pred_check_branch
        %3002 = sbr.rel (%p3000) target = $region40
      $region39: #{up_forward.4} parent=35 // pred_region
        _
      $region40: #{up_forward.4} parent=35 // pred_fallthru
        _
      // Predicated region
      $region41: #{up_forward.4} parent=35 // pred_check
        %p3003 = pneg %p150
      $region42: #{up_forward.4} parent=35 // pred_check_branch
        %3005 = sbr.rel (%p3003) target = $region44
      $region43: #{up_forward.4} parent=35 // pred_region
        _
      $region44: #{up_forward.4} parent=35 // pred_fallthru
        _
    $region36: #{up_forward.4} parent=5 // pred_fallthru
      _
    %p3006 = scmp.le.s32.totalorder 2, %s12
    // Predicated region
    $region45: #{up_forward.4} parent=5 // pred_check
      %p3007 = pneg %p3006
    $region46: #{up_forward.4} parent=5 // pred_check_branch
      %3009 = sbr.rel (%p3007) target = $region48
    $region47: #{up_forward.4} parent=5 // pred_region
      %s3010 = ssub.s32 %s12, 2
      // Predicated region
      $region49: #{up_forward.4} parent=47 // pred_check
        %p3011 = pneg %p130
      $region50: #{up_forward.4} parent=47 // pred_check_branch
        %3013 = sbr.rel (%p3011) target = $region52
      $region51: #{up_forward.4} parent=47 // pred_region
        %p3014 = scmp.lt.s32.totalorder %s18, 1
        %s3015 = scalar_select %p3014, %s18, 1
        %s3016 = smul.addr %s3015, 32
        %s3017 = smul.addr %s3016, 8
        %s3018 = scalar_lea.vmem %s4, %s3017
      $region52: #{up_forward.4} parent=47 // pred_fallthru
        _
      // Predicated region
      $region53: #{up_forward.4} parent=47 // pred_check
        %p3019 = pneg %p156
      $region54: #{up_forward.4} parent=47 // pred_check_branch
        %3021 = sbr.rel (%p3019) target = $region56
      $region55: #{up_forward.4} parent=47 // pred_region
        %p3022 = scmp.lt.s32.totalorder %s18, 1
        %s3023 = scalar_select %p3022, %s18, 1
        %s3024 = smul.addr %s3023, 2
        %s3025 = scalar_lea.vmem %s5, %s3024
      $region56: #{up_forward.4} parent=47 // pred_fallthru
        _
    $region48: #{up_forward.4} parent=5 // pred_fallthru
      _
  $region6: #{up_forward.4} parent=0 // loop_footer
    %s16 = sadd.s32 1, %s12
  $region7: #{up_forward.4} parent=0 // loop_footer_branch
    %11 = sbr.rel target = $region3
  $region8: #{up_forward.4} parent=0 // loop_exit
    _

</llo_original>
